<compile_context>
chip_gen: v5e
topology: v5e:2x2
jax: 0.10.0
libtpu: 0.0.40
codegen_flags: <defaults>
</compile_context>

<pallas_src>
import functools

import jax
import jax.numpy as jnp
from jax.experimental import pallas as pl
from jax.experimental.pallas import tpu as pltpu

BN_EPS = 1e-5
ACT_DTYPE = jnp.bfloat16          # inter-layer activation / slab storage dtype

_VMEM_LIMIT_CACHE = [None]


def _vmem_limit_bytes():
    """~3/4 of physical VMEM (~96 MiB on v5e/v6e, ~48 MiB on v7x)."""
    if _VMEM_LIMIT_CACHE[0] is None:
        limit = 48 * 1024 * 1024                    # safe default (fits v7x)
        try:
            cap = int(getattr(pltpu.get_tpu_info(), "vmem_capacity_bytes", 0))
            if cap > 0:
                limit = (cap * 3) // 4
        except Exception:
            pass
        _VMEM_LIMIT_CACHE[0] = limit
    return _VMEM_LIMIT_CACHE[0]


def _pick_row_tile(hp, wp, target_m=512):
    """Smallest divisor TH of hp with TH*wp >= target_m (healthy MXU M dim)."""
    for d in range(1, hp + 1):
        if hp % d == 0 and d * wp >= min(target_m, hp * wp):
            return d
    return hp


# ---------------------------------------------------------------------------
# MaxPool2d(2), fused with the zero 1-px halo the first conv consumes.
# ---------------------------------------------------------------------------
def maxpool_pad_kernel(x_ref, o_ref):
    # x_ref: (1, Ho, 2, Wo, 2*C) f32 input with each 2x2 window pre-grouped by
    #        a metadata-only XLA reshape (h = 2*ho + r, lane j = s*C + c with
    #        w = 2*wo + s).
    # o_ref: (1, Ho+2, Wo+2, C) bf16 pooled image with a zero 1-px halo.
    _, Ho, _, Wo, two_c = x_ref.shape
    C = two_c // 2
    x = x_ref[...]
    m = jnp.maximum(x[:, :, 0, :, :], x[:, :, 1, :, :])    # max over the H pair
    p = jnp.maximum(m[..., :C], m[..., C:])                # max over the W pair
    # Zero only the 1-px halo; the interior is fully overwritten below.
    o_ref[0, 0:1, :, :] = jnp.zeros((1, Wo + 2, C), o_ref.dtype)
    o_ref[0, Ho + 1:Ho + 2, :, :] = jnp.zeros((1, Wo + 2, C), o_ref.dtype)
    o_ref[0, :, 0:1, :] = jnp.zeros((Ho + 2, 1, C), o_ref.dtype)
    o_ref[0, :, Wo + 1:Wo + 2, :] = jnp.zeros((Ho + 2, 1, C), o_ref.dtype)
    o_ref[0, 1:Ho + 1, 1:Wo + 1, :] = p[0].astype(o_ref.dtype)


def maxpool2x2_with_halo(x_nhwc):
    N, H, W, C = x_nhwc.shape
    Ho, Wo = H // 2, W // 2
    xr = x_nhwc.reshape(N, Ho, 2, Wo, 2 * C)   # groups the 2x2 windows (XLA)
    return pl.pallas_call(
        maxpool_pad_kernel,
        grid=(N,),
        in_specs=[pl.BlockSpec((1, Ho, 2, Wo, 2 * C),
                               lambda n: (n, 0, 0, 0, 0))],
        out_specs=pl.BlockSpec((1, Ho + 2, Wo + 2, C), lambda n: (n, 0, 0, 0)),
        out_shape=jax.ShapeDtypeStruct((N, Ho + 2, Wo + 2, C), ACT_DTYPE),
        compiler_params=pltpu.CompilerParams(
            dimension_semantics=("parallel",),
            vmem_limit_bytes=_vmem_limit_bytes()),
    )(xr)


# ---------------------------------------------------------------------------
# Fused layer: [previous layer's BN + ReLU] -> 3x3 conv (im2col MXU matmul)
#              -> this layer's BN statistics -> raw output (padded slab).
# ---------------------------------------------------------------------------
def conv_fused_kernel(x_ref, scale_ref, shift_ref, w_ref,
                      y_ref, sum_ref, ssq_ref, im2col_ref,
                      *, apply_bn_act, pad_output):
    # x_ref:      (1, Hp+2, Wp+2, Cin) bf16 zero-halo slab with the PREVIOUS
    #             layer's raw conv output (or the maxpool activation for the
    #             first layer).  Resident per image n across the band axis t.
    # scale_ref:  (1, Cin) f32 previous layer's folded BN scale (gamma*rsqrt).
    # shift_ref:  (1, Cin) f32 previous layer's folded BN shift.
    # w_ref:      (9*Cin, Cout) bf16 im2col conv weights.
    # y_ref:      this layer's RAW conv output:
    #               pad_output=True : (1, Hp+2, Wp+2, Cout) bf16 zero-halo slab
    #                                 (resident per n) read by the next layer
    #               pad_output=False: (1, TH, Wp, Cout) bf16 row band
    # sum_ref:    (1, 1, Cout) f32 per-image channel sum      (resident over t)
    # ssq_ref:    (1, 1, Cout) f32 per-image channel sum of squares
    # im2col_ref: (TH*Wp, 9*Cin) bf16 VMEM scratch for this band's patches.
    t = pl.program_id(1)
    Cout = w_ref.shape[1]
    Cin = w_ref.shape[0] // 9
    Hp = x_ref.shape[1] - 2
    Wp = x_ref.shape[2] - 2
    TH = im2col_ref.shape[0] // Wp

    @pl.when(t == 0)
    def _init():
        sum_ref[...] = jnp.zeros_like(sum_ref)
        ssq_ref[...] = jnp.zeros_like(ssq_ref)
        if pad_output:
            # Zero ONLY the 1-px halo of the output slab; the interior is
            # fully overwritten by the row bands below.
            y_ref[0, 0:1, :, :] = jnp.zeros((1, Wp + 2, Cout), y_ref.dtype)
            y_ref[0, Hp + 1:Hp + 2, :, :] = jnp.zeros((1, Wp + 2, Cout),
                                                      y_ref.dtype)
            y_ref[0, :, 0:1, :] = jnp.zeros((Hp + 2, 1, Cout), y_ref.dtype)
            y_ref[0, :, Wp + 1:Wp + 2, :] = jnp.zeros((Hp + 2, 1, Cout),
                                                      y_ref.dtype)

    # Padded-input rows feeding this band of TH output rows.
    row0 = pl.multiple_of(t * TH, TH)
    xb = x_ref[0, pl.ds(row0, TH + 2), :, :].astype(jnp.float32)

    if apply_bn_act:
        # Fused: previous layer's BatchNorm + ReLU applied on the fly (saves a
        # full HBM write + read of the activation).  The conv's zero padding
        # must stay exactly zero, so mask the halo back after the affine.
        act = jnp.maximum(xb * scale_ref[...] + shift_ref[...], 0.0)
        grow = jax.lax.broadcasted_iota(jnp.int32, (TH + 2, Wp + 2, 1), 0) + row0
        gcol = jax.lax.broadcasted_iota(jnp.int32, (TH + 2, Wp + 2, 1), 1)
        interior = (grow >= 1) & (grow <= Hp) & (gcol >= 1) & (gcol <= Wp)
        act = jnp.where(interior, act, 0.0)
    else:
        act = xb                         # maxpool slab: halo is already zero

    # im2col: the 9 shifted taps land in adjacent lane groups of the bf16
    # scratch, giving ONE (TH*Wp, 9*Cin) x (9*Cin, Cout) MXU matmul per band.
    for k in range(9):
        ky, kx = divmod(k, 3)
        tap = act[ky:ky + TH, kx:kx + Wp, :].reshape(TH * Wp, Cin)
        im2col_ref[:, k * Cin:(k + 1) * Cin] = tap.astype(im2col_ref.dtype)

    acc = jnp.dot(im2col_ref[...], w_ref[...],
                  preferred_element_type=jnp.float32)        # (TH*Wp, Cout)

    # One-pass BatchNorm training statistics (f32 resident accumulators).
    sum_ref[...] += jnp.sum(acc, axis=0).reshape(1, 1, Cout)
    ssq_ref[...] += jnp.sum(acc * acc, axis=0).reshape(1, 1, Cout)

    if pad_output:
        # Raw conv output goes straight into the interior of the padded slab
        # the next layer reads (its BN + ReLU is fused there).
        y_ref[0, pl.ds(row0 + 1, TH), pl.ds(1, Wp), :] = (
            acc.reshape(TH, Wp, Cout).astype(y_ref.dtype))
    else:
        y_ref[...] = acc.reshape(1, TH, Wp, Cout).astype(y_ref.dtype)


def conv_bn_relu_fused_layer(x_slab, w, prev_scale, prev_shift, *, pad_output):
    """One fused [prev BN+ReLU] -> Conv3x3(no bias) -> [BN statistics] layer."""
    N, Hpad, Wpad, Cin = x_slab.shape
    Hp, Wp = Hpad - 2, Wpad - 2
    Cout = w.shape[-1]
    TH = _pick_row_tile(Hp, Wp)
    T = Hp // TH

    w2 = w.reshape(9 * Cin, Cout).astype(jnp.bfloat16)       # im2col weights
    apply_bn_act = prev_scale is not None
    if not apply_bn_act:                                     # first conv layer
        prev_scale = jnp.ones((Cin,), jnp.float32)
        prev_shift = jnp.zeros((Cin,), jnp.float32)
    scale_in = prev_scale.astype(jnp.float32).reshape(1, Cin)
    shift_in = prev_shift.astype(jnp.float32).reshape(1, Cin)

    if pad_output:
        y_shape = jax.ShapeDtypeStruct((N, Hpad, Wpad, Cout), ACT_DTYPE)
        y_spec = pl.BlockSpec((1, Hpad, Wpad, Cout), lambda n, t: (n, 0, 0, 0))
    else:
        y_shape = jax.ShapeDtypeStruct((N, Hp, Wp, Cout), ACT_DTYPE)
        y_spec = pl.BlockSpec((1, TH, Wp, Cout), lambda n, t: (n, t, 0, 0))

    kernel = functools.partial(conv_fused_kernel,
                               apply_bn_act=apply_bn_act,
                               pad_output=pad_output)
    return pl.pallas_call(
        kernel,
        grid=(N, T),
        in_specs=[
            pl.BlockSpec((1, Hpad, Wpad, Cin), lambda n, t: (n, 0, 0, 0)),
            pl.BlockSpec((1, Cin), lambda n, t: (0, 0)),
            pl.BlockSpec((1, Cin), lambda n, t: (0, 0)),
            pl.BlockSpec((9 * Cin, Cout), lambda n, t: (0, 0)),
        ],
        out_specs=(
            y_spec,
            pl.BlockSpec((1, 1, Cout), lambda n, t: (n, 0, 0)),
            pl.BlockSpec((1, 1, Cout), lambda n, t: (n, 0, 0)),
        ),
        out_shape=(
            y_shape,
            jax.ShapeDtypeStruct((N, 1, Cout), jnp.float32),
            jax.ShapeDtypeStruct((N, 1, Cout), jnp.float32),
        ),
        scratch_shapes=[pltpu.VMEM((TH * Wp, 9 * Cin), jnp.bfloat16)],
        compiler_params=pltpu.CompilerParams(
            dimension_semantics=("parallel", "arbitrary"),
            vmem_limit_bytes=_vmem_limit_bytes()),
    )(x_slab, scale_in, shift_in, w2)


def _fold_bn(sums, ssqs, gamma, beta, count):
    """Fold BN training stats into per-channel scale/shift (O(Cout), in XLA)."""
    mean = jnp.sum(sums, axis=(0, 1)) / count
    mean_sq = jnp.sum(ssqs, axis=(0, 1)) / count
    var = jnp.maximum(mean_sq - mean * mean, 0.0)            # biased batch var
    scale = gamma * jax.lax.rsqrt(var + BN_EPS)
    shift = beta - mean * scale
    return scale, shift


# ---------------------------------------------------------------------------
# Final BatchNorm + ReLU (only needed for the last conv layer).
# ---------------------------------------------------------------------------
def bn_relu_kernel(y_ref, scale_ref, shift_ref, o_ref):
    # y_ref: (1, TH, Wp, C) bf16 raw conv band; scale/shift: (1, C) f32.
    # o_ref: (1, TH, Wp, C) f32 final activation band.
    y = y_ref[...].astype(jnp.float32)
    o_ref[...] = jnp.maximum(y * scale_ref[...] + shift_ref[...], 0.0)


def bn_relu_output(y, scale, shift):
    N, Hp, Wp, C = y.shape
    TH = _pick_row_tile(Hp, Wp)
    T = Hp // TH
    return pl.pallas_call(
        bn_relu_kernel,
        grid=(N, T),
        in_specs=[
            pl.BlockSpec((1, TH, Wp, C), lambda n, t: (n, t, 0, 0)),
            pl.BlockSpec((1, C), lambda n, t: (0, 0)),
            pl.BlockSpec((1, C), lambda n, t: (0, 0)),
        ],
        out_specs=pl.BlockSpec((1, TH, Wp, C), lambda n, t: (n, t, 0, 0)),
        out_shape=jax.ShapeDtypeStruct((N, Hp, Wp, C), jnp.float32),
        compiler_params=pltpu.CompilerParams(
            dimension_semantics=("parallel", "parallel"),
            vmem_limit_bytes=_vmem_limit_bytes()),
    )(y, scale.astype(jnp.float32).reshape(1, C),
      shift.astype(jnp.float32).reshape(1, C))


# ---------------------------------------------------------------------------
# DownSampling.forward
# ---------------------------------------------------------------------------
def downsampling_forward(x_nchw, params):
    """DownSampling.forward: (N, Cin, H, W) -> (N, Cout, H//2, W//2)."""
    N, _, H, W = x_nchw.shape
    assert H % 2 == 0 and W % 2 == 0
    Hp, Wp = H // 2, W // 2
    x_nhwc = jnp.transpose(x_nchw, (0, 2, 3, 1))             # NCHW -> NHWC
    cur = maxpool2x2_with_halo(x_nhwc)                       # (N,Hp+2,Wp+2,Cin)

    count = jnp.float32(N * Hp * Wp)
    scale = shift = None
    for li, (w, gamma, beta) in enumerate(params):
        last = li == len(params) - 1
        cur, sums, ssqs = conv_bn_relu_fused_layer(
            cur, w, scale, shift, pad_output=not last)
        scale, shift = _fold_bn(sums, ssqs, gamma, beta, count)

    out = bn_relu_output(cur, scale, shift)                  # (N, Hp, Wp, Cout)
    return jnp.transpose(out, (0, 3, 1, 2))                  # NHWC -> NCHW


def init_params(key, in_channels, out_channels):
    """Deterministic synthetic parameters for the three conv/BN layers."""
    params = []
    cin = in_channels
    for _ in range(3):
        key, sub = jax.random.split(key)
        w = 0.1 * jax.random.normal(sub, (3, 3, cin, out_channels), jnp.float32)
        gamma = jnp.ones((out_channels,), jnp.float32)       # BatchNorm2d weight
        beta = jnp.zeros((out_channels,), jnp.float32)       # BatchNorm2d bias
        params.append((w, gamma, beta))
        cin = out_channels
    return params


def reference_forward(x_nchw, params):
    """Pure-JAX reference mirroring the kernels' bf16-storage / f32-BN math."""
    x = jnp.transpose(x_nchw, (0, 2, 3, 1))
    N, H, W, C = x.shape
    pooled = x.reshape(N, H // 2, 2, W // 2, 2, C).max(axis=(2, 4))
    act = pooled.astype(jnp.bfloat16).astype(jnp.float32)    # bf16 slab storage
    for w, gamma, beta in params:
        y = jax.lax.conv_general_dilated(
            act.astype(jnp.bfloat16), w.astype(jnp.bfloat16),
            window_strides=(1, 1), padding="SAME",
            dimension_numbers=("NHWC", "HWIO", "NHWC"),
            preferred_element_type=jnp.float32)
        mean = jnp.mean(y, axis=(0, 1, 2))
        var = jnp.maximum(jnp.mean(y * y, axis=(0, 1, 2)) - mean * mean, 0.0)
        scale = gamma * jax.lax.rsqrt(var + BN_EPS)
        shift = beta - mean * scale
        y_q = y.astype(jnp.bfloat16).astype(jnp.float32)     # bf16 slab storage
        act = jnp.maximum(y_q * scale + shift, 0.0)
    return jnp.transpose(act, (0, 3, 1, 2))


if __name__ == "__main__":
    N, Cin, Cout, H, W = 2, 4, 8, 16, 16
    key = jax.random.PRNGKey(0)
    key, xkey = jax.random.split(key)
    x = jax.random.normal(xkey, (N, Cin, H, W), jnp.float32)
    params = init_params(key, Cin, Cout)

    out = jax.block_until_ready(jax.jit(downsampling_forward)(x, params))
    assert out.shape == (N, Cout, H // 2, W // 2), out.shape

    ref = jax.block_until_ready(reference_forward(x, params))
    max_err = float(jnp.max(jnp.abs(out - ref)))
    mean_err = float(jnp.mean(jnp.abs(out - ref)))
    assert max_err < 5e-2 and mean_err < 5e-3, (
        f"kernel/reference mismatch: max {max_err}, mean {mean_err}")
    print("KERNEL_OK")
</pallas_src>

<mosaic_0001>
module attributes {stable_mosaic.version = 11 : i64} {
  func.func @maxpool_pad_kernel(%arg0: i32, %arg1: memref<1x8x2x8x8xf32, #tpu.memory_space<vmem>>, %arg2: memref<1x10x10x4xbf16, #tpu.memory_space<vmem>>) attributes {dimension_semantics = [#tpu.dimension_semantics<parallel>], iteration_bounds = array<i64: 2>, scalar_prefetch = 0 : i64, scratch_operands = 0 : i64, tpu.core_type = #tpu.core_type<tc>, window_params = [{transform_indices = @transform_0, window_bounds = array<i64: 1, 8, 2, 8, 8>}, {transform_indices = @transform_1, window_bounds = array<i64: 1, 10, 10, 4>}]} {
    %c0 = arith.constant 0 : index
    %c0_0 = arith.constant 0 : index
    %c0_1 = arith.constant 0 : index
    %c0_2 = arith.constant 0 : index
    %c0_3 = arith.constant 0 : index
    %0 = vector.load %arg1[%c0, %c0_0, %c0_1, %c0_2, %c0_3] : memref<1x8x2x8x8xf32, #tpu.memory_space<vmem>>, vector<1x8x2x8x8xf32>
    %1 = vector.extract_strided_slice %0 {offsets = [0, 0, 0, 0, 0], sizes = [1, 8, 1, 8, 8], strides = [1, 1, 1, 1, 1]} : vector<1x8x2x8x8xf32> to vector<1x8x1x8x8xf32>
    %2 = vector.shape_cast %1 : vector<1x8x1x8x8xf32> to vector<1x8x8x8xf32>
    %3 = vector.extract_strided_slice %0 {offsets = [0, 0, 1, 0, 0], sizes = [1, 8, 1, 8, 8], strides = [1, 1, 1, 1, 1]} : vector<1x8x2x8x8xf32> to vector<1x8x1x8x8xf32>
    %4 = vector.shape_cast %3 : vector<1x8x1x8x8xf32> to vector<1x8x8x8xf32>
    %5 = arith.maximumf %2, %4 : vector<1x8x8x8xf32>
    %6 = vector.extract_strided_slice %5 {offsets = [0, 0, 0, 0], sizes = [1, 8, 8, 4], strides = [1, 1, 1, 1]} : vector<1x8x8x8xf32> to vector<1x8x8x4xf32>
    %7 = vector.extract_strided_slice %5 {offsets = [0, 0, 0, 4], sizes = [1, 8, 8, 4], strides = [1, 1, 1, 1]} : vector<1x8x8x8xf32> to vector<1x8x8x4xf32>
    %8 = arith.maximumf %6, %7 : vector<1x8x8x4xf32>
    %cst = arith.constant 0.000000e+00 : bf16
    %9 = vector.broadcast %cst : bf16 to vector<1x10x4xbf16>
    %c0_4 = arith.constant 0 : index
    %c0_5 = arith.constant 0 : index
    %c0_6 = arith.constant 0 : index
    %c0_7 = arith.constant 0 : index
    %10 = vector.load %arg2[%c0_4, %c0_5, %c0_6, %c0_7] : memref<1x10x10x4xbf16, #tpu.memory_space<vmem>>, vector<1x1x10x4xbf16>
    %11 = vector.shape_cast %10 : vector<1x1x10x4xbf16> to vector<1x10x4xbf16>
    %12 = vector.shape_cast %9 : vector<1x10x4xbf16> to vector<1x1x10x4xbf16>
    tpu.vector_store %arg2[%c0_4, %c0_5, %c0_6, %c0_7], %12 {strides = array<i32>} : memref<1x10x10x4xbf16, #tpu.memory_space<vmem>>, vector<1x1x10x4xbf16>,
    %cst_8 = arith.constant 0.000000e+00 : bf16
    %13 = vector.broadcast %cst_8 : bf16 to vector<1x10x4xbf16>
    %c0_9 = arith.constant 0 : index
    %c9 = arith.constant 9 : index
    %c0_10 = arith.constant 0 : index
    %c0_11 = arith.constant 0 : index
    %14 = vector.load %arg2[%c0_9, %c9, %c0_10, %c0_11] : memref<1x10x10x4xbf16, #tpu.memory_space<vmem>>, vector<1x1x10x4xbf16>
    %15 = vector.shape_cast %14 : vector<1x1x10x4xbf16> to vector<1x10x4xbf16>
    %16 = vector.shape_cast %13 : vector<1x10x4xbf16> to vector<1x1x10x4xbf16>
    tpu.vector_store %arg2[%c0_9, %c9, %c0_10, %c0_11], %16 {strides = array<i32>} : memref<1x10x10x4xbf16, #tpu.memory_space<vmem>>, vector<1x1x10x4xbf16>,
    %cst_12 = arith.constant 0.000000e+00 : bf16
    %17 = vector.broadcast %cst_12 : bf16 to vector<10x1x4xbf16>
    %c0_13 = arith.constant 0 : index
    %c0_14 = arith.constant 0 : index
    %c0_15 = arith.constant 0 : index
    %c0_16 = arith.constant 0 : index
    %18 = vector.load %arg2[%c0_13, %c0_14, %c0_15, %c0_16] : memref<1x10x10x4xbf16, #tpu.memory_space<vmem>>, vector<1x10x1x4xbf16>
    %19 = vector.shape_cast %18 : vector<1x10x1x4xbf16> to vector<10x1x4xbf16>
    %20 = vector.shape_cast %17 : vector<10x1x4xbf16> to vector<1x10x1x4xbf16>
    tpu.vector_store %arg2[%c0_13, %c0_14, %c0_15, %c0_16], %20 {strides = array<i32>} : memref<1x10x10x4xbf16, #tpu.memory_space<vmem>>, vector<1x10x1x4xbf16>,
    %cst_17 = arith.constant 0.000000e+00 : bf16
    %21 = vector.broadcast %cst_17 : bf16 to vector<10x1x4xbf16>
    %c0_18 = arith.constant 0 : index
    %c0_19 = arith.constant 0 : index
    %c9_20 = arith.constant 9 : index
    %c0_21 = arith.constant 0 : index
    %22 = vector.load %arg2[%c0_18, %c0_19, %c9_20, %c0_21] : memref<1x10x10x4xbf16, #tpu.memory_space<vmem>>, vector<1x10x1x4xbf16>
    %23 = vector.shape_cast %22 : vector<1x10x1x4xbf16> to vector<10x1x4xbf16>
    %24 = vector.shape_cast %21 : vector<10x1x4xbf16> to vector<1x10x1x4xbf16>
    tpu.vector_store %arg2[%c0_18, %c0_19, %c9_20, %c0_21], %24 {strides = array<i32>} : memref<1x10x10x4xbf16, #tpu.memory_space<vmem>>, vector<1x10x1x4xbf16>,
    %25 = vector.shape_cast %8 : vector<1x8x8x4xf32> to vector<8x8x4xf32>
    %26 = arith.truncf %25 : vector<8x8x4xf32> to vector<8x8x4xbf16>
    %c0_22 = arith.constant 0 : index
    %c1 = arith.constant 1 : index
    %c1_23 = arith.constant 1 : index
    %c0_24 = arith.constant 0 : index
    %27 = vector.load %arg2[%c0_22, %c1, %c1_23, %c0_24] : memref<1x10x10x4xbf16, #tpu.memory_space<vmem>>, vector<1x8x8x4xbf16>
    %28 = vector.shape_cast %27 : vector<1x8x8x4xbf16> to vector<8x8x4xbf16>
    %29 = vector.shape_cast %26 : vector<8x8x4xbf16> to vector<1x8x8x4xbf16>
    tpu.vector_store %arg2[%c0_22, %c1, %c1_23, %c0_24], %29 {strides = array<i32>} : memref<1x10x10x4xbf16, #tpu.memory_space<vmem>>, vector<1x8x8x4xbf16>,
    return
  }
  func.func @transform_0(%arg0: i32) -> (i32, i32, i32, i32, i32) {
    %c0_i32 = arith.constant 0 : i32
    %c0_i32_0 = arith.constant 0 : i32
    %c0_i32_1 = arith.constant 0 : i32
    %c0_i32_2 = arith.constant 0 : i32
    %c0_i32_3 = arith.constant 0 : i32
    return %arg0, %c0_i32, %c0_i32_0, %c0_i32_1, %c0_i32_2 : i32, i32, i32, i32, i32
  }
  func.func @transform_1(%arg0: i32) -> (i32, i32, i32, i32) {
    %c0_i32 = arith.constant 0 : i32
    %c0_i32_0 = arith.constant 0 : i32
    %c0_i32_1 = arith.constant 0 : i32
    %c0_i32_2 = arith.constant 0 : i32
    return %arg0, %c0_i32, %c0_i32_0, %c0_i32_1 : i32, i32, i32, i32
  }
}

module attributes {stable_mosaic.version = 11 : i64} {
  func.func @conv_fused_kernel(%arg0: i32, %arg1: i32, %arg2: memref<1x10x10x4xbf16, #tpu.memory_space<vmem>>, %arg3: memref<1x4xf32, #tpu.memory_space<vmem>>, %arg4: memref<1x4xf32, #tpu.memory_space<vmem>>, %arg5: memref<36x8xbf16, #tpu.memory_space<vmem>>, %arg6: memref<1x10x10x8xbf16, #tpu.memory_space<vmem>>, %arg7: memref<1x1x8xf32, #tpu.memory_space<vmem>>, %arg8: memref<1x1x8xf32, #tpu.memory_space<vmem>>, %arg9: memref<64x36xbf16, #tpu.memory_space<vmem>>) attributes {dimension_semantics = [#tpu.dimension_semantics<parallel>, #tpu.dimension_semantics<arbitrary>], iteration_bounds = array<i64: 2, 1>, scalar_prefetch = 0 : i64, scratch_operands = 1 : i64, tpu.core_type = #tpu.core_type<tc>, window_params = [{transform_indices = @transform_0, window_bounds = array<i64: 1, 10, 10, 4>}, {pipeline_mode = #tpu.pipeline_mode<synchronous>, transform_indices = @transform_1, window_bounds = array<i64: 1, 4>}, {pipeline_mode = #tpu.pipeline_mode<synchronous>, transform_indices = @transform_2, window_bounds = array<i64: 1, 4>}, {pipeline_mode = #tpu.pipeline_mode<synchronous>, transform_indices = @transform_3, window_bounds = array<i64: 36, 8>}, {transform_indices = @transform_4, window_bounds = array<i64: 1, 10, 10, 8>}, {transform_indices = @transform_5, window_bounds = array<i64: 1, 1, 8>}, {transform_indices = @transform_6, window_bounds = array<i64: 1, 1, 8>}]} {
    %c0_i32 = arith.constant 0 : i32
    %0 = arith.cmpi eq, %arg1, %c0_i32 : i32
    %1 = arith.extui %0 : i1 to i32
    %c0_i32_0 = arith.constant 0 : i32
    %2 = arith.cmpi ne, %1, %c0_i32_0 : i32
    scf.if %2 {
      %cst_33 = arith.constant 0.000000e+00 : f32
      %66 = vector.broadcast %cst_33 : f32 to vector<1x1x8xf32>
      %c0_34 = arith.constant 0 : index
      %c0_35 = arith.constant 0 : index
      %c0_36 = arith.constant 0 : index
      %67 = vector.load %arg7[%c0_34, %c0_35, %c0_36] : memref<1x1x8xf32, #tpu.memory_space<vmem>>, vector<1x1x8xf32>
      tpu.vector_store %arg7[%c0_34, %c0_35, %c0_36], %66 {strides = array<i32>} : memref<1x1x8xf32, #tpu.memory_space<vmem>>, vector<1x1x8xf32>,
      %cst_37 = arith.constant 0.000000e+00 : f32
      %68 = vector.broadcast %cst_37 : f32 to vector<1x1x8xf32>
      %c0_38 = arith.constant 0 : index
      %c0_39 = arith.constant 0 : index
      %c0_40 = arith.constant 0 : index
      %69 = vector.load %arg8[%c0_38, %c0_39, %c0_40] : memref<1x1x8xf32, #tpu.memory_space<vmem>>, vector<1x1x8xf32>
      tpu.vector_store %arg8[%c0_38, %c0_39, %c0_40], %68 {strides = array<i32>} : memref<1x1x8xf32, #tpu.memory_space<vmem>>, vector<1x1x8xf32>,
      %cst_41 = arith.constant 0.000000e+00 : bf16
      %70 = vector.broadcast %cst_41 : bf16 to vector<1x10x8xbf16>
      %c0_42 = arith.constant 0 : index
      %c0_43 = arith.constant 0 : index
      %c0_44 = arith.constant 0 : index
      %c0_45 = arith.constant 0 : index
      %71 = vector.load %arg6[%c0_42, %c0_43, %c0_44, %c0_45] : memref<1x10x10x8xbf16, #tpu.memory_space<vmem>>, vector<1x1x10x8xbf16>
      %72 = vector.shape_cast %71 : vector<1x1x10x8xbf16> to vector<1x10x8xbf16>
      %73 = vector.shape_cast %70 : vector<1x10x8xbf16> to vector<1x1x10x8xbf16>
      tpu.vector_store %arg6[%c0_42, %c0_43, %c0_44, %c0_45], %73 {strides = array<i32>} : memref<1x10x10x8xbf16, #tpu.memory_space<vmem>>, vector<1x1x10x8xbf16>,
      %cst_46 = arith.constant 0.000000e+00 : bf16
      %74 = vector.broadcast %cst_46 : bf16 to vector<1x10x8xbf16>
      %c0_47 = arith.constant 0 : index
      %c9 = arith.constant 9 : index
      %c0_48 = arith.constant 0 : index
      %c0_49 = arith.constant 0 : index
      %75 = vector.load %arg6[%c0_47, %c9, %c0_48, %c0_49] : memref<1x10x10x8xbf16, #tpu.memory_space<vmem>>, vector<1x1x10x8xbf16>
      %76 = vector.shape_cast %75 : vector<1x1x10x8xbf16> to vector<1x10x8xbf16>
      %77 = vector.shape_cast %74 : vector<1x10x8xbf16> to vector<1x1x10x8xbf16>
      tpu.vector_store %arg6[%c0_47, %c9, %c0_48, %c0_49], %77 {strides = array<i32>} : memref<1x10x10x8xbf16, #tpu.memory_space<vmem>>, vector<1x1x10x8xbf16>,
      %cst_50 = arith.constant 0.000000e+00 : bf16
      %78 = vector.broadcast %cst_50 : bf16 to vector<10x1x8xbf16>
      %c0_51 = arith.constant 0 : index
      %c0_52 = arith.constant 0 : index
      %c0_53 = arith.constant 0 : index
      %c0_54 = arith.constant 0 : index
      %79 = vector.load %arg6[%c0_51, %c0_52, %c0_53, %c0_54] : memref<1x10x10x8xbf16, #tpu.memory_space<vmem>>, vector<1x10x1x8xbf16>
      %80 = vector.shape_cast %79 : vector<1x10x1x8xbf16> to vector<10x1x8xbf16>
      %81 = vector.shape_cast %78 : vector<10x1x8xbf16> to vector<1x10x1x8xbf16>
      tpu.vector_store %arg6[%c0_51, %c0_52, %c0_53, %c0_54], %81 {strides = array<i32>} : memref<1x10x10x8xbf16, #tpu.memory_space<vmem>>, vector<1x10x1x8xbf16>,
      %cst_55 = arith.constant 0.000000e+00 : bf16
      %82 = vector.broadcast %cst_55 : bf16 to vector<10x1x8xbf16>
      %c0_56 = arith.constant 0 : index
      %c0_57 = arith.constant 0 : index
      %c9_58 = arith.constant 9 : index
      %c0_59 = arith.constant 0 : index
      %83 = vector.load %arg6[%c0_56, %c0_57, %c9_58, %c0_59] : memref<1x10x10x8xbf16, #tpu.memory_space<vmem>>, vector<1x10x1x8xbf16>
      %84 = vector.shape_cast %83 : vector<1x10x1x8xbf16> to vector<10x1x8xbf16>
      %85 = vector.shape_cast %82 : vector<10x1x8xbf16> to vector<1x10x1x8xbf16>
      tpu.vector_store %arg6[%c0_56, %c0_57, %c9_58, %c0_59], %85 {strides = array<i32>} : memref<1x10x10x8xbf16, #tpu.memory_space<vmem>>, vector<1x10x1x8xbf16>,
    } else {
    }
    %c8_i32 = arith.constant 8 : i32
    %3 = arith.muli %arg1, %c8_i32 : i32
    %4 = tpu.assume_multiple %3, 8 : i32
    %c0 = arith.constant 0 : index
    %5 = arith.index_cast %4 : i32 to index
    %c0_1 = arith.constant 0 : index
    %c0_2 = arith.constant 0 : index
    %6 = vector.load %arg2[%c0, %5, %c0_1, %c0_2] : memref<1x10x10x4xbf16, #tpu.memory_space<vmem>>, vector<1x10x10x4xbf16>
    %7 = vector.shape_cast %6 : vector<1x10x10x4xbf16> to vector<10x10x4xbf16>
    %8 = arith.extf %7 : vector<10x10x4xbf16> to vector<10x10x4xf32>
    %9 = vector.extract_strided_slice %8 {offsets = [0, 0, 0], sizes = [8, 8, 4], strides = [1, 1, 1]} : vector<10x10x4xf32> to vector<8x8x4xf32>
    %10 = vector.shape_cast %9 : vector<8x8x4xf32> to vector<64x4xf32>
    %11 = arith.truncf %10 : vector<64x4xf32> to vector<64x4xbf16>
    %c0_3 = arith.constant 0 : index
    %c0_4 = arith.constant 0 : index
    %12 = vector.load %arg9[%c0_3, %c0_4] : memref<64x36xbf16, #tpu.memory_space<vmem>>, vector<64x4xbf16>
    tpu.vector_store %arg9[%c0_3, %c0_4], %11 {strides = array<i32>} : memref<64x36xbf16, #tpu.memory_space<vmem>>, vector<64x4xbf16>,
    %13 = vector.extract_strided_slice %8 {offsets = [0, 1, 0], sizes = [8, 8, 4], strides = [1, 1, 1]} : vector<10x10x4xf32> to vector<8x8x4xf32>
    %14 = vector.shape_cast %13 : vector<8x8x4xf32> to vector<64x4xf32>
    %15 = arith.truncf %14 : vector<64x4xf32> to vector<64x4xbf16>
    %c0_5 = arith.constant 0 : index
    %c4 = arith.constant 4 : index
    %16 = vector.load %arg9[%c0_5, %c4] : memref<64x36xbf16, #tpu.memory_space<vmem>>, vector<64x4xbf16>
    tpu.vector_store %arg9[%c0_5, %c4], %15 {strides = array<i32>} : memref<64x36xbf16, #tpu.memory_space<vmem>>, vector<64x4xbf16>,
    %17 = vector.extract_strided_slice %8 {offsets = [0, 2, 0], sizes = [8, 8, 4], strides = [1, 1, 1]} : vector<10x10x4xf32> to vector<8x8x4xf32>
    %18 = vector.shape_cast %17 : vector<8x8x4xf32> to vector<64x4xf32>
    %19 = arith.truncf %18 : vector<64x4xf32> to vector<64x4xbf16>
    %c0_6 = arith.constant 0 : index
    %c8 = arith.constant 8 : index
    %20 = vector.load %arg9[%c0_6, %c8] : memref<64x36xbf16, #tpu.memory_space<vmem>>, vector<64x4xbf16>
    tpu.vector_store %arg9[%c0_6, %c8], %19 {strides = array<i32>} : memref<64x36xbf16, #tpu.memory_space<vmem>>, vector<64x4xbf16>,
    %21 = vector.extract_strided_slice %8 {offsets = [1, 0, 0], sizes = [8, 8, 4], strides = [1, 1, 1]} : vector<10x10x4xf32> to vector<8x8x4xf32>
    %22 = vector.shape_cast %21 : vector<8x8x4xf32> to vector<64x4xf32>
    %23 = arith.truncf %22 : vector<64x4xf32> to vector<64x4xbf16>
    %c0_7 = arith.constant 0 : index
    %c12 = arith.constant 12 : index
    %24 = vector.load %arg9[%c0_7, %c12] : memref<64x36xbf16, #tpu.memory_space<vmem>>, vector<64x4xbf16>
    tpu.vector_store %arg9[%c0_7, %c12], %23 {strides = array<i32>} : memref<64x36xbf16, #tpu.memory_space<vmem>>, vector<64x4xbf16>,
    %25 = vector.extract_strided_slice %8 {offsets = [1, 1, 0], sizes = [8, 8, 4], strides = [1, 1, 1]} : vector<10x10x4xf32> to vector<8x8x4xf32>
    %26 = vector.shape_cast %25 : vector<8x8x4xf32> to vector<64x4xf32>
    %27 = arith.truncf %26 : vector<64x4xf32> to vector<64x4xbf16>
    %c0_8 = arith.constant 0 : index
    %c16 = arith.constant 16 : index
    %28 = vector.load %arg9[%c0_8, %c16] : memref<64x36xbf16, #tpu.memory_space<vmem>>, vector<64x4xbf16>
    tpu.vector_store %arg9[%c0_8, %c16], %27 {strides = array<i32>} : memref<64x36xbf16, #tpu.memory_space<vmem>>, vector<64x4xbf16>,
    %29 = vector.extract_strided_slice %8 {offsets = [1, 2, 0], sizes = [8, 8, 4], strides = [1, 1, 1]} : vector<10x10x4xf32> to vector<8x8x4xf32>
    %30 = vector.shape_cast %29 : vector<8x8x4xf32> to vector<64x4xf32>
    %31 = arith.truncf %30 : vector<64x4xf32> to vector<64x4xbf16>
    %c0_9 = arith.constant 0 : index
    %c20 = arith.constant 20 : index
    %32 = vector.load %arg9[%c0_9, %c20] : memref<64x36xbf16, #tpu.memory_space<vmem>>, vector<64x4xbf16>
    tpu.vector_store %arg9[%c0_9, %c20], %31 {strides = array<i32>} : memref<64x36xbf16, #tpu.memory_space<vmem>>, vector<64x4xbf16>,
    %33 = vector.extract_strided_slice %8 {offsets = [2, 0, 0], sizes = [8, 8, 4], strides = [1, 1, 1]} : vector<10x10x4xf32> to vector<8x8x4xf32>
    %34 = vector.shape_cast %33 : vector<8x8x4xf32> to vector<64x4xf32>
    %35 = arith.truncf %34 : vector<64x4xf32> to vector<64x4xbf16>
    %c0_10 = arith.constant 0 : index
    %c24 = arith.constant 24 : index
    %36 = vector.load %arg9[%c0_10, %c24] : memref<64x36xbf16, #tpu.memory_space<vmem>>, vector<64x4xbf16>
    tpu.vector_store %arg9[%c0_10, %c24], %35 {strides = array<i32>} : memref<64x36xbf16, #tpu.memory_space<vmem>>, vector<64x4xbf16>,
    %37 = vector.extract_strided_slice %8 {offsets = [2, 1, 0], sizes = [8, 8, 4], strides = [1, 1, 1]} : vector<10x10x4xf32> to vector<8x8x4xf32>
    %38 = vector.shape_cast %37 : vector<8x8x4xf32> to vector<64x4xf32>
    %39 = arith.truncf %38 : vector<64x4xf32> to vector<64x4xbf16>
    %c0_11 = arith.constant 0 : index
    %c28 = arith.constant 28 : index
    %40 = vector.load %arg9[%c0_11, %c28] : memref<64x36xbf16, #tpu.memory_space<vmem>>, vector<64x4xbf16>
    tpu.vector_store %arg9[%c0_11, %c28], %39 {strides = array<i32>} : memref<64x36xbf16, #tpu.memory_space<vmem>>, vector<64x4xbf16>,
    %41 = vector.extract_strided_slice %8 {offsets = [2, 2, 0], sizes = [8, 8, 4], strides = [1, 1, 1]} : vector<10x10x4xf32> to vector<8x8x4xf32>
    %42 = vector.shape_cast %41 : vector<8x8x4xf32> to vector<64x4xf32>
    %43 = arith.truncf %42 : vector<64x4xf32> to vector<64x4xbf16>
    %c0_12 = arith.constant 0 : index
    %c32 = arith.constant 32 : index
    %44 = vector.load %arg9[%c0_12, %c32] : memref<64x36xbf16, #tpu.memory_space<vmem>>, vector<64x4xbf16>
    tpu.vector_store %arg9[%c0_12, %c32], %43 {strides = array<i32>} : memref<64x36xbf16, #tpu.memory_space<vmem>>, vector<64x4xbf16>,
    %c0_13 = arith.constant 0 : index
    %c0_14 = arith.constant 0 : index
    %45 = vector.load %arg9[%c0_13, %c0_14] : memref<64x36xbf16, #tpu.memory_space<vmem>>, vector<64x36xbf16>
    %c0_15 = arith.constant 0 : index
    %c0_16 = arith.constant 0 : index
    %46 = vector.load %arg5[%c0_15, %c0_16] : memref<36x8xbf16, #tpu.memory_space<vmem>>, vector<36x8xbf16>
    %cst = arith.constant dense<0.000000e+00> : vector<64x8xf32>
    %47 = tpu.matmul %45, %46, %cst {dimension_numbers = #tpu.dot_dimension_numbers<[1], [0], [0], [1], [0, 0, 1, 1], [], []>} : vector<64x36xbf16>, vector<36x8xbf16>, vector<64x8xf32> -> vector<64x8xf32>
    %c0_17 = arith.constant 0 : index
    %c0_18 = arith.constant 0 : index
    %c0_19 = arith.constant 0 : index
    %48 = vector.load %arg7[%c0_17, %c0_18, %c0_19] : memref<1x1x8xf32, #tpu.memory_space<vmem>>, vector<1x1x8xf32>
    %cst_20 = arith.constant dense<0.000000e+00> : vector<8xf32>
    %49 = vector.multi_reduction <add>, %47, %cst_20 [0] : vector<64x8xf32> to vector<8xf32>
    %50 = vector.shape_cast %49 : vector<8xf32> to vector<1x1x8xf32>
    %51 = arith.addf %48, %50 : vector<1x1x8xf32>
    %c0_21 = arith.constant 0 : index
    %c0_22 = arith.constant 0 : index
    %c0_23 = arith.constant 0 : index
    %52 = vector.load %arg7[%c0_21, %c0_22, %c0_23] : memref<1x1x8xf32, #tpu.memory_space<vmem>>, vector<1x1x8xf32>
    tpu.vector_store %arg7[%c0_21, %c0_22, %c0_23], %51 {strides = array<i32>} : memref<1x1x8xf32, #tpu.memory_space<vmem>>, vector<1x1x8xf32>,
    %c0_24 = arith.constant 0 : index
    %c0_25 = arith.constant 0 : index
    %c0_26 = arith.constant 0 : index
    %53 = vector.load %arg8[%c0_24, %c0_25, %c0_26] : memref<1x1x8xf32, #tpu.memory_space<vmem>>, vector<1x1x8xf32>
    %54 = arith.mulf %47, %47 : vector<64x8xf32>
    %cst_27 = arith.constant dense<0.000000e+00> : vector<8xf32>
    %55 = vector.multi_reduction <add>, %54, %cst_27 [0] : vector<64x8xf32> to vector<8xf32>
    %56 = vector.shape_cast %55 : vector<8xf32> to vector<1x1x8xf32>
    %57 = arith.addf %53, %56 : vector<1x1x8xf32>
    %c0_28 = arith.constant 0 : index
    %c0_29 = arith.constant 0 : index
    %c0_30 = arith.constant 0 : index
    %58 = vector.load %arg8[%c0_28, %c0_29, %c0_30] : memref<1x1x8xf32, #tpu.memory_space<vmem>>, vector<1x1x8xf32>
    tpu.vector_store %arg8[%c0_28, %c0_29, %c0_30], %57 {strides = array<i32>} : memref<1x1x8xf32, #tpu.memory_space<vmem>>, vector<1x1x8xf32>,
    %59 = vector.shape_cast %47 : vector<64x8xf32> to vector<8x8x8xf32>
    %60 = arith.truncf %59 : vector<8x8x8xf32> to vector<8x8x8xbf16>
    %c1_i32 = arith.constant 1 : i32
    %61 = arith.addi %4, %c1_i32 : i32
    %c0_31 = arith.constant 0 : index
    %62 = arith.index_cast %61 : i32 to index
    %c1 = arith.constant 1 : index
    %c0_32 = arith.constant 0 : index
    %63 = vector.load %arg6[%c0_31, %62, %c1, %c0_32] : memref<1x10x10x8xbf16, #tpu.memory_space<vmem>>, vector<1x8x8x8xbf16>
    %64 = vector.shape_cast %63 : vector<1x8x8x8xbf16> to vector<8x8x8xbf16>
    %65 = vector.shape_cast %60 : vector<8x8x8xbf16> to vector<1x8x8x8xbf16>
    tpu.vector_store %arg6[%c0_31, %62, %c1, %c0_32], %65 {strides = array<i32>} : memref<1x10x10x8xbf16, #tpu.memory_space<vmem>>, vector<1x8x8x8xbf16>,
    return
  }
  func.func @transform_0(%arg0: i32, %arg1: i32) -> (i32, i32, i32, i32) {
    %c0_i32 = arith.constant 0 : i32
    %c0_i32_0 = arith.constant 0 : i32
    %c0_i32_1 = arith.constant 0 : i32
    %c0_i32_2 = arith.constant 0 : i32
    return %arg0, %c0_i32, %c0_i32_0, %c0_i32_1 : i32, i32, i32, i32
  }
  func.func @transform_1(%arg0: i32, %arg1: i32) -> (i32, i32) {
    %c0_i32 = arith.constant 0 : i32
    %c0_i32_0 = arith.constant 0 : i32
    %c0_i32_1 = arith.constant 0 : i32
    return %c0_i32, %c0_i32_0 : i32, i32
  }
  func.func @transform_2(%arg0: i32, %arg1: i32) -> (i32, i32) {
    %c0_i32 = arith.constant 0 : i32
    %c0_i32_0 = arith.constant 0 : i32
    %c0_i32_1 = arith.constant 0 : i32
    return %c0_i32, %c0_i32_0 : i32, i32
  }
  func.func @transform_3(%arg0: i32, %arg1: i32) -> (i32, i32) {
    %c0_i32 = arith.constant 0 : i32
    %c0_i32_0 = arith.constant 0 : i32
    %c0_i32_1 = arith.constant 0 : i32
    return %c0_i32, %c0_i32_0 : i32, i32
  }
  func.func @transform_4(%arg0: i32, %arg1: i32) -> (i32, i32, i32, i32) {
    %c0_i32 = arith.constant 0 : i32
    %c0_i32_0 = arith.constant 0 : i32
    %c0_i32_1 = arith.constant 0 : i32
    %c0_i32_2 = arith.constant 0 : i32
    return %arg0, %c0_i32, %c0_i32_0, %c0_i32_1 : i32, i32, i32, i32
  }
  func.func @transform_5(%arg0: i32, %arg1: i32) -> (i32, i32, i32) {
    %c0_i32 = arith.constant 0 : i32
    %c0_i32_0 = arith.constant 0 : i32
    %c0_i32_1 = arith.constant 0 : i32
    return %arg0, %c0_i32, %c0_i32_0 : i32, i32, i32
  }
  func.func @transform_6(%arg0: i32, %arg1: i32) -> (i32, i32, i32) {
    %c0_i32 = arith.constant 0 : i32
    %c0_i32_0 = arith.constant 0 : i32
    %c0_i32_1 = arith.constant 0 : i32
    return %arg0, %c0_i32, %c0_i32_0 : i32, i32, i32
  }
}

module attributes {stable_mosaic.version = 11 : i64} {
  func.func @conv_fused_kernel(%arg0: i32, %arg1: i32, %arg2: memref<1x10x10x8xbf16, #tpu.memory_space<vmem>>, %arg3: memref<1x8xf32, #tpu.memory_space<vmem>>, %arg4: memref<1x8xf32, #tpu.memory_space<vmem>>, %arg5: memref<72x8xbf16, #tpu.memory_space<vmem>>, %arg6: memref<1x8x8x8xbf16, #tpu.memory_space<vmem>>, %arg7: memref<1x1x8xf32, #tpu.memory_space<vmem>>, %arg8: memref<1x1x8xf32, #tpu.memory_space<vmem>>, %arg9: memref<64x72xbf16, #tpu.memory_space<vmem>>) attributes {dimension_semantics = [#tpu.dimension_semantics<parallel>, #tpu.dimension_semantics<arbitrary>], iteration_bounds = array<i64: 2, 1>, scalar_prefetch = 0 : i64, scratch_operands = 1 : i64, tpu.core_type = #tpu.core_type<tc>, window_params = [{transform_indices = @transform_0, window_bounds = array<i64: 1, 10, 10, 8>}, {pipeline_mode = #tpu.pipeline_mode<synchronous>, transform_indices = @transform_1, window_bounds = array<i64: 1, 8>}, {pipeline_mode = #tpu.pipeline_mode<synchronous>, transform_indices = @transform_2, window_bounds = array<i64: 1, 8>}, {pipeline_mode = #tpu.pipeline_mode<synchronous>, transform_indices = @transform_3, window_bounds = array<i64: 72, 8>}, {transform_indices = @transform_4, window_bounds = array<i64: 1, 8, 8, 8>}, {transform_indices = @transform_5, window_bounds = array<i64: 1, 1, 8>}, {transform_indices = @transform_6, window_bounds = array<i64: 1, 1, 8>}]} {
    %c0_i32 = arith.constant 0 : i32
    %0 = arith.cmpi eq, %arg1, %c0_i32 : i32
    %1 = arith.extui %0 : i1 to i32
    %c0_i32_0 = arith.constant 0 : i32
    %2 = arith.cmpi ne, %1, %c0_i32_0 : i32
    scf.if %2 {
      %cst_44 = arith.constant 0.000000e+00 : f32
      %91 = vector.broadcast %cst_44 : f32 to vector<1x1x8xf32>
      %c0_45 = arith.constant 0 : index
      %c0_46 = arith.constant 0 : index
      %c0_47 = arith.constant 0 : index
      %92 = vector.load %arg7[%c0_45, %c0_46, %c0_47] : memref<1x1x8xf32, #tpu.memory_space<vmem>>, vector<1x1x8xf32>
      tpu.vector_store %arg7[%c0_45, %c0_46, %c0_47], %91 {strides = array<i32>} : memref<1x1x8xf32, #tpu.memory_space<vmem>>, vector<1x1x8xf32>,
      %cst_48 = arith.constant 0.000000e+00 : f32
      %93 = vector.broadcast %cst_48 : f32 to vector<1x1x8xf32>
      %c0_49 = arith.constant 0 : index
      %c0_50 = arith.constant 0 : index
      %c0_51 = arith.constant 0 : index
      %94 = vector.load %arg8[%c0_49, %c0_50, %c0_51] : memref<1x1x8xf32, #tpu.memory_space<vmem>>, vector<1x1x8xf32>
      tpu.vector_store %arg8[%c0_49, %c0_50, %c0_51], %93 {strides = array<i32>} : memref<1x1x8xf32, #tpu.memory_space<vmem>>, vector<1x1x8xf32>,
    } else {
    }
    %c8_i32 = arith.constant 8 : i32
    %3 = arith.muli %arg1, %c8_i32 : i32
    %4 = tpu.assume_multiple %3, 8 : i32
    %c0 = arith.constant 0 : index
    %5 = arith.index_cast %4 : i32 to index
    %c0_1 = arith.constant 0 : index
    %c0_2 = arith.constant 0 : index
    %6 = vector.load %arg2[%c0, %5, %c0_1, %c0_2] : memref<1x10x10x8xbf16, #tpu.memory_space<vmem>>, vector<1x10x10x8xbf16>
    %7 = vector.shape_cast %6 : vector<1x10x10x8xbf16> to vector<10x10x8xbf16>
    %8 = arith.extf %7 : vector<10x10x8xbf16> to vector<10x10x8xf32>
    %c0_3 = arith.constant 0 : index
    %c0_4 = arith.constant 0 : index
    %9 = vector.load %arg3[%c0_3, %c0_4] : memref<1x8xf32, #tpu.memory_space<vmem>>, vector<1x8xf32>
    %10 = vector.shape_cast %9 : vector<1x8xf32> to vector<1x1x8xf32>
    %11 = vector.broadcast %10 : vector<1x1x8xf32> to vector<10x10x8xf32>
    %12 = arith.mulf %8, %11 : vector<10x10x8xf32>
    %c0_5 = arith.constant 0 : index
    %c0_6 = arith.constant 0 : index
    %13 = vector.load %arg4[%c0_5, %c0_6] : memref<1x8xf32, #tpu.memory_space<vmem>>, vector<1x8xf32>
    %14 = vector.shape_cast %13 : vector<1x8xf32> to vector<1x1x8xf32>
    %15 = vector.broadcast %14 : vector<1x1x8xf32> to vector<10x10x8xf32>
    %16 = arith.addf %12, %15 : vector<10x10x8xf32>
    %cst = arith.constant 0.000000e+00 : f32
    %17 = vector.broadcast %cst : f32 to vector<10x10x8xf32>
    %18 = arith.maximumf %16, %17 : vector<10x10x8xf32>
    %19 = tpu.iota {dimensions = array<i32: 0>} : vector<10x10x1xi32>
    %20 = vector.broadcast %4 : i32 to vector<10x10x1xi32>
    %21 = arith.addi %19, %20 : vector<10x10x1xi32>
    %22 = tpu.iota {dimensions = array<i32: 1>} : vector<10x10x1xi32>
    %c1_i32 = arith.constant 1 : i32
    %23 = vector.broadcast %c1_i32 : i32 to vector<10x10x1xi32>
    %24 = arith.cmpi sge, %21, %23 : vector<10x10x1xi32>
    %c8_i32_7 = arith.constant 8 : i32
    %25 = vector.broadcast %c8_i32_7 : i32 to vector<10x10x1xi32>
    %26 = arith.cmpi sle, %21, %25 : vector<10x10x1xi32>
    %27 = arith.andi %24, %26 : vector<10x10x1xi1>
    %c1_i32_8 = arith.constant 1 : i32
    %28 = vector.broadcast %c1_i32_8 : i32 to vector<10x10x1xi32>
    %29 = arith.cmpi sge, %22, %28 : vector<10x10x1xi32>
    %30 = arith.andi %27, %29 : vector<10x10x1xi1>
    %c8_i32_9 = arith.constant 8 : i32
    %31 = vector.broadcast %c8_i32_9 : i32 to vector<10x10x1xi32>
    %32 = arith.cmpi sle, %22, %31 : vector<10x10x1xi32>
    %33 = arith.andi %30, %32 : vector<10x10x1xi1>
    %cst_10 = arith.constant 0.000000e+00 : f32
    %34 = vector.shape_cast %33 : vector<10x10x1xi1> to vector<10x10x1xi1>
    %35 = vector.broadcast %34 : vector<10x10x1xi1> to vector<10x10x8xi1>
    %36 = vector.broadcast %cst_10 : f32 to vector<10x10x8xf32>
    %37 = arith.select %35, %18, %36 : vector<10x10x8xi1>, vector<10x10x8xf32>
    %38 = vector.extract_strided_slice %37 {offsets = [0, 0, 0], sizes = [8, 8, 8], strides = [1, 1, 1]} : vector<10x10x8xf32> to vector<8x8x8xf32>
    %39 = vector.shape_cast %38 : vector<8x8x8xf32> to vector<64x8xf32>
    %40 = arith.truncf %39 : vector<64x8xf32> to vector<64x8xbf16>
    %c0_11 = arith.constant 0 : index
    %c0_12 = arith.constant 0 : index
    %41 = vector.load %arg9[%c0_11, %c0_12] : memref<64x72xbf16, #tpu.memory_space<vmem>>, vector<64x8xbf16>
    tpu.vector_store %arg9[%c0_11, %c0_12], %40 {strides = array<i32>} : memref<64x72xbf16, #tpu.memory_space<vmem>>, vector<64x8xbf16>,
    %42 = vector.extract_strided_slice %37 {offsets = [0, 1, 0], sizes = [8, 8, 8], strides = [1, 1, 1]} : vector<10x10x8xf32> to vector<8x8x8xf32>
    %43 = vector.shape_cast %42 : vector<8x8x8xf32> to vector<64x8xf32>
    %44 = arith.truncf %43 : vector<64x8xf32> to vector<64x8xbf16>
    %c0_13 = arith.constant 0 : index
    %c8 = arith.constant 8 : index
    %45 = vector.load %arg9[%c0_13, %c8] : memref<64x72xbf16, #tpu.memory_space<vmem>>, vector<64x8xbf16>
    tpu.vector_store %arg9[%c0_13, %c8], %44 {strides = array<i32>} : memref<64x72xbf16, #tpu.memory_space<vmem>>, vector<64x8xbf16>,
    %46 = vector.extract_strided_slice %37 {offsets = [0, 2, 0], sizes = [8, 8, 8], strides = [1, 1, 1]} : vector<10x10x8xf32> to vector<8x8x8xf32>
    %47 = vector.shape_cast %46 : vector<8x8x8xf32> to vector<64x8xf32>
    %48 = arith.truncf %47 : vector<64x8xf32> to vector<64x8xbf16>
    %c0_14 = arith.constant 0 : index
    %c16 = arith.constant 16 : index
    %49 = vector.load %arg9[%c0_14, %c16] : memref<64x72xbf16, #tpu.memory_space<vmem>>, vector<64x8xbf16>
    tpu.vector_store %arg9[%c0_14, %c16], %48 {strides = array<i32>} : memref<64x72xbf16, #tpu.memory_space<vmem>>, vector<64x8xbf16>,
    %50 = vector.extract_strided_slice %37 {offsets = [1, 0, 0], sizes = [8, 8, 8], strides = [1, 1, 1]} : vector<10x10x8xf32> to vector<8x8x8xf32>
    %51 = vector.shape_cast %50 : vector<8x8x8xf32> to vector<64x8xf32>
    %52 = arith.truncf %51 : vector<64x8xf32> to vector<64x8xbf16>
    %c0_15 = arith.constant 0 : index
    %c24 = arith.constant 24 : index
    %53 = vector.load %arg9[%c0_15, %c24] : memref<64x72xbf16, #tpu.memory_space<vmem>>, vector<64x8xbf16>
    tpu.vector_store %arg9[%c0_15, %c24], %52 {strides = array<i32>} : memref<64x72xbf16, #tpu.memory_space<vmem>>, vector<64x8xbf16>,
    %54 = vector.extract_strided_slice %37 {offsets = [1, 1, 0], sizes = [8, 8, 8], strides = [1, 1, 1]} : vector<10x10x8xf32> to vector<8x8x8xf32>
    %55 = vector.shape_cast %54 : vector<8x8x8xf32> to vector<64x8xf32>
    %56 = arith.truncf %55 : vector<64x8xf32> to vector<64x8xbf16>
    %c0_16 = arith.constant 0 : index
    %c32 = arith.constant 32 : index
    %57 = vector.load %arg9[%c0_16, %c32] : memref<64x72xbf16, #tpu.memory_space<vmem>>, vector<64x8xbf16>
    tpu.vector_store %arg9[%c0_16, %c32], %56 {strides = array<i32>} : memref<64x72xbf16, #tpu.memory_space<vmem>>, vector<64x8xbf16>,
    %58 = vector.extract_strided_slice %37 {offsets = [1, 2, 0], sizes = [8, 8, 8], strides = [1, 1, 1]} : vector<10x10x8xf32> to vector<8x8x8xf32>
    %59 = vector.shape_cast %58 : vector<8x8x8xf32> to vector<64x8xf32>
    %60 = arith.truncf %59 : vector<64x8xf32> to vector<64x8xbf16>
    %c0_17 = arith.constant 0 : index
    %c40 = arith.constant 40 : index
    %61 = vector.load %arg9[%c0_17, %c40] : memref<64x72xbf16, #tpu.memory_space<vmem>>, vector<64x8xbf16>
    tpu.vector_store %arg9[%c0_17, %c40], %60 {strides = array<i32>} : memref<64x72xbf16, #tpu.memory_space<vmem>>, vector<64x8xbf16>,
    %62 = vector.extract_strided_slice %37 {offsets = [2, 0, 0], sizes = [8, 8, 8], strides = [1, 1, 1]} : vector<10x10x8xf32> to vector<8x8x8xf32>
    %63 = vector.shape_cast %62 : vector<8x8x8xf32> to vector<64x8xf32>
    %64 = arith.truncf %63 : vector<64x8xf32> to vector<64x8xbf16>
    %c0_18 = arith.constant 0 : index
    %c48 = arith.constant 48 : index
    %65 = vector.load %arg9[%c0_18, %c48] : memref<64x72xbf16, #tpu.memory_space<vmem>>, vector<64x8xbf16>
    tpu.vector_store %arg9[%c0_18, %c48], %64 {strides = array<i32>} : memref<64x72xbf16, #tpu.memory_space<vmem>>, vector<64x8xbf16>,
    %66 = vector.extract_strided_slice %37 {offsets = [2, 1, 0], sizes = [8, 8, 8], strides = [1, 1, 1]} : vector<10x10x8xf32> to vector<8x8x8xf32>
    %67 = vector.shape_cast %66 : vector<8x8x8xf32> to vector<64x8xf32>
    %68 = arith.truncf %67 : vector<64x8xf32> to vector<64x8xbf16>
    %c0_19 = arith.constant 0 : index
    %c56 = arith.constant 56 : index
    %69 = vector.load %arg9[%c0_19, %c56] : memref<64x72xbf16, #tpu.memory_space<vmem>>, vector<64x8xbf16>
    tpu.vector_store %arg9[%c0_19, %c56], %68 {strides = array<i32>} : memref<64x72xbf16, #tpu.memory_space<vmem>>, vector<64x8xbf16>,
    %70 = vector.extract_strided_slice %37 {offsets = [2, 2, 0], sizes = [8, 8, 8], strides = [1, 1, 1]} : vector<10x10x8xf32> to vector<8x8x8xf32>
    %71 = vector.shape_cast %70 : vector<8x8x8xf32> to vector<64x8xf32>
    %72 = arith.truncf %71 : vector<64x8xf32> to vector<64x8xbf16>
    %c0_20 = arith.constant 0 : index
    %c64 = arith.constant 64 : index
    %73 = vector.load %arg9[%c0_20, %c64] : memref<64x72xbf16, #tpu.memory_space<vmem>>, vector<64x8xbf16>
    tpu.vector_store %arg9[%c0_20, %c64], %72 {strides = array<i32>} : memref<64x72xbf16, #tpu.memory_space<vmem>>, vector<64x8xbf16>,
    %c0_21 = arith.constant 0 : index
    %c0_22 = arith.constant 0 : index
    %74 = vector.load %arg9[%c0_21, %c0_22] : memref<64x72xbf16, #tpu.memory_space<vmem>>, vector<64x72xbf16>
    %c0_23 = arith.constant 0 : index
    %c0_24 = arith.constant 0 : index
    %75 = vector.load %arg5[%c0_23, %c0_24] : memref<72x8xbf16, #tpu.memory_space<vmem>>, vector<72x8xbf16>
    %cst_25 = arith.constant dense<0.000000e+00> : vector<64x8xf32>
    %76 = tpu.matmul %74, %75, %cst_25 {dimension_numbers = #tpu.dot_dimension_numbers<[1], [0], [0], [1], [0, 0, 1, 1], [], []>} : vector<64x72xbf16>, vector<72x8xbf16>, vector<64x8xf32> -> vector<64x8xf32>
    %c0_26 = arith.constant 0 : index
    %c0_27 = arith.constant 0 : index
    %c0_28 = arith.constant 0 : index
    %77 = vector.load %arg7[%c0_26, %c0_27, %c0_28] : memref<1x1x8xf32, #tpu.memory_space<vmem>>, vector<1x1x8xf32>
    %cst_29 = arith.constant dense<0.000000e+00> : vector<8xf32>
    %78 = vector.multi_reduction <add>, %76, %cst_29 [0] : vector<64x8xf32> to vector<8xf32>
    %79 = vector.shape_cast %78 : vector<8xf32> to vector<1x1x8xf32>
    %80 = arith.addf %77, %79 : vector<1x1x8xf32>
    %c0_30 = arith.constant 0 : index
    %c0_31 = arith.constant 0 : index
    %c0_32 = arith.constant 0 : index
    %81 = vector.load %arg7[%c0_30, %c0_31, %c0_32] : memref<1x1x8xf32, #tpu.memory_space<vmem>>, vector<1x1x8xf32>
    tpu.vector_store %arg7[%c0_30, %c0_31, %c0_32], %80 {strides = array<i32>} : memref<1x1x8xf32, #tpu.memory_space<vmem>>, vector<1x1x8xf32>,
    %c0_33 = arith.constant 0 : index
    %c0_34 = arith.constant 0 : index
    %c0_35 = arith.constant 0 : index
    %82 = vector.load %arg8[%c0_33, %c0_34, %c0_35] : memref<1x1x8xf32, #tpu.memory_space<vmem>>, vector<1x1x8xf32>
    %83 = arith.mulf %76, %76 : vector<64x8xf32>
    %cst_36 = arith.constant dense<0.000000e+00> : vector<8xf32>
    %84 = vector.multi_reduction <add>, %83, %cst_36 [0] : vector<64x8xf32> to vector<8xf32>
    %85 = vector.shape_cast %84 : vector<8xf32> to vector<1x1x8xf32>
    %86 = arith.addf %82, %85 : vector<1x1x8xf32>
    %c0_37 = arith.constant 0 : index
    %c0_38 = arith.constant 0 : index
    %c0_39 = arith.constant 0 : index
    %87 = vector.load %arg8[%c0_37, %c0_38, %c0_39] : memref<1x1x8xf32, #tpu.memory_space<vmem>>, vector<1x1x8xf32>
    tpu.vector_store %arg8[%c0_37, %c0_38, %c0_39], %86 {strides = array<i32>} : memref<1x1x8xf32, #tpu.memory_space<vmem>>, vector<1x1x8xf32>,
    %88 = vector.shape_cast %76 : vector<64x8xf32> to vector<1x8x8x8xf32>
    %89 = arith.truncf %88 : vector<1x8x8x8xf32> to vector<1x8x8x8xbf16>
    %c0_40 = arith.constant 0 : index
    %c0_41 = arith.constant 0 : index
    %c0_42 = arith.constant 0 : index
    %c0_43 = arith.constant 0 : index
    %90 = vector.load %arg6[%c0_40, %c0_41, %c0_42, %c0_43] : memref<1x8x8x8xbf16, #tpu.memory_space<vmem>>, vector<1x8x8x8xbf16>
    tpu.vector_store %arg6[%c0_40, %c0_41, %c0_42, %c0_43], %89 {strides = array<i32>} : memref<1x8x8x8xbf16, #tpu.memory_space<vmem>>, vector<1x8x8x8xbf16>,
    return
  }
  func.func @transform_0(%arg0: i32, %arg1: i32) -> (i32, i32, i32, i32) {
    %c0_i32 = arith.constant 0 : i32
    %c0_i32_0 = arith.constant 0 : i32
    %c0_i32_1 = arith.constant 0 : i32
    %c0_i32_2 = arith.constant 0 : i32
    return %arg0, %c0_i32, %c0_i32_0, %c0_i32_1 : i32, i32, i32, i32
  }
  func.func @transform_1(%arg0: i32, %arg1: i32) -> (i32, i32) {
    %c0_i32 = arith.constant 0 : i32
    %c0_i32_0 = arith.constant 0 : i32
    %c0_i32_1 = arith.constant 0 : i32
    return %c0_i32, %c0_i32_0 : i32, i32
  }
  func.func @transform_2(%arg0: i32, %arg1: i32) -> (i32, i32) {
    %c0_i32 = arith.constant 0 : i32
    %c0_i32_0 = arith.constant 0 : i32
    %c0_i32_1 = arith.constant 0 : i32
    return %c0_i32, %c0_i32_0 : i32, i32
  }
  func.func @transform_3(%arg0: i32, %arg1: i32) -> (i32, i32) {
    %c0_i32 = arith.constant 0 : i32
    %c0_i32_0 = arith.constant 0 : i32
    %c0_i32_1 = arith.constant 0 : i32
    return %c0_i32, %c0_i32_0 : i32, i32
  }
  func.func @transform_4(%arg0: i32, %arg1: i32) -> (i32, i32, i32, i32) {
    %c0_i32 = arith.constant 0 : i32
    %c0_i32_0 = arith.constant 0 : i32
    %c0_i32_1 = arith.constant 0 : i32
    return %arg0, %arg1, %c0_i32, %c0_i32_0 : i32, i32, i32, i32
  }
  func.func @transform_5(%arg0: i32, %arg1: i32) -> (i32, i32, i32) {
    %c0_i32 = arith.constant 0 : i32
    %c0_i32_0 = arith.constant 0 : i32
    %c0_i32_1 = arith.constant 0 : i32
    return %arg0, %c0_i32, %c0_i32_0 : i32, i32, i32
  }
  func.func @transform_6(%arg0: i32, %arg1: i32) -> (i32, i32, i32) {
    %c0_i32 = arith.constant 0 : i32
    %c0_i32_0 = arith.constant 0 : i32
    %c0_i32_1 = arith.constant 0 : i32
    return %arg0, %c0_i32, %c0_i32_0 : i32, i32, i32
  }
}

module attributes {stable_mosaic.version = 11 : i64} {
  func.func @conv_fused_kernel(%arg0: i32, %arg1: i32, %arg2: memref<1x10x10x8xbf16, #tpu.memory_space<vmem>>, %arg3: memref<1x8xf32, #tpu.memory_space<vmem>>, %arg4: memref<1x8xf32, #tpu.memory_space<vmem>>, %arg5: memref<72x8xbf16, #tpu.memory_space<vmem>>, %arg6: memref<1x10x10x8xbf16, #tpu.memory_space<vmem>>, %arg7: memref<1x1x8xf32, #tpu.memory_space<vmem>>, %arg8: memref<1x1x8xf32, #tpu.memory_space<vmem>>, %arg9: memref<64x72xbf16, #tpu.memory_space<vmem>>) attributes {dimension_semantics = [#tpu.dimension_semantics<parallel>, #tpu.dimension_semantics<arbitrary>], iteration_bounds = array<i64: 2, 1>, scalar_prefetch = 0 : i64, scratch_operands = 1 : i64, tpu.core_type = #tpu.core_type<tc>, window_params = [{transform_indices = @transform_0, window_bounds = array<i64: 1, 10, 10, 8>}, {pipeline_mode = #tpu.pipeline_mode<synchronous>, transform_indices = @transform_1, window_bounds = array<i64: 1, 8>}, {pipeline_mode = #tpu.pipeline_mode<synchronous>, transform_indices = @transform_2, window_bounds = array<i64: 1, 8>}, {pipeline_mode = #tpu.pipeline_mode<synchronous>, transform_indices = @transform_3, window_bounds = array<i64: 72, 8>}, {transform_indices = @transform_4, window_bounds = array<i64: 1, 10, 10, 8>}, {transform_indices = @transform_5, window_bounds = array<i64: 1, 1, 8>}, {transform_indices = @transform_6, window_bounds = array<i64: 1, 1, 8>}]} {
    %c0_i32 = arith.constant 0 : i32
    %0 = arith.cmpi eq, %arg1, %c0_i32 : i32
    %1 = arith.extui %0 : i1 to i32
    %c0_i32_0 = arith.constant 0 : i32
    %2 = arith.cmpi ne, %1, %c0_i32_0 : i32
    scf.if %2 {
      %cst_43 = arith.constant 0.000000e+00 : f32
      %95 = vector.broadcast %cst_43 : f32 to vector<1x1x8xf32>
      %c0_44 = arith.constant 0 : index
      %c0_45 = arith.constant 0 : index
      %c0_46 = arith.constant 0 : index
      %96 = vector.load %arg7[%c0_44, %c0_45, %c0_46] : memref<1x1x8xf32, #tpu.memory_space<vmem>>, vector<1x1x8xf32>
      tpu.vector_store %arg7[%c0_44, %c0_45, %c0_46], %95 {strides = array<i32>} : memref<1x1x8xf32, #tpu.memory_space<vmem>>, vector<1x1x8xf32>,
      %cst_47 = arith.constant 0.000000e+00 : f32
      %97 = vector.broadcast %cst_47 : f32 to vector<1x1x8xf32>
      %c0_48 = arith.constant 0 : index
      %c0_49 = arith.constant 0 : index
      %c0_50 = arith.constant 0 : index
      %98 = vector.load %arg8[%c0_48, %c0_49, %c0_50] : memref<1x1x8xf32, #tpu.memory_space<vmem>>, vector<1x1x8xf32>
      tpu.vector_store %arg8[%c0_48, %c0_49, %c0_50], %97 {strides = array<i32>} : memref<1x1x8xf32, #tpu.memory_space<vmem>>, vector<1x1x8xf32>,
      %cst_51 = arith.constant 0.000000e+00 : bf16
      %99 = vector.broadcast %cst_51 : bf16 to vector<1x10x8xbf16>
      %c0_52 = arith.constant 0 : index
      %c0_53 = arith.constant 0 : index
      %c0_54 = arith.constant 0 : index
      %c0_55 = arith.constant 0 : index
      %100 = vector.load %arg6[%c0_52, %c0_53, %c0_54, %c0_55] : memref<1x10x10x8xbf16, #tpu.memory_space<vmem>>, vector<1x1x10x8xbf16>
      %101 = vector.shape_cast %100 : vector<1x1x10x8xbf16> to vector<1x10x8xbf16>
      %102 = vector.shape_cast %99 : vector<1x10x8xbf16> to vector<1x1x10x8xbf16>
      tpu.vector_store %arg6[%c0_52, %c0_53, %c0_54, %c0_55], %102 {strides = array<i32>} : memref<1x10x10x8xbf16, #tpu.memory_space<vmem>>, vector<1x1x10x8xbf16>,
      %cst_56 = arith.constant 0.000000e+00 : bf16
      %103 = vector.broadcast %cst_56 : bf16 to vector<1x10x8xbf16>
      %c0_57 = arith.constant 0 : index
      %c9 = arith.constant 9 : index
      %c0_58 = arith.constant 0 : index
      %c0_59 = arith.constant 0 : index
      %104 = vector.load %arg6[%c0_57, %c9, %c0_58, %c0_59] : memref<1x10x10x8xbf16, #tpu.memory_space<vmem>>, vector<1x1x10x8xbf16>
      %105 = vector.shape_cast %104 : vector<1x1x10x8xbf16> to vector<1x10x8xbf16>
      %106 = vector.shape_cast %103 : vector<1x10x8xbf16> to vector<1x1x10x8xbf16>
      tpu.vector_store %arg6[%c0_57, %c9, %c0_58, %c0_59], %106 {strides = array<i32>} : memref<1x10x10x8xbf16, #tpu.memory_space<vmem>>, vector<1x1x10x8xbf16>,
      %cst_60 = arith.constant 0.000000e+00 : bf16
      %107 = vector.broadcast %cst_60 : bf16 to vector<10x1x8xbf16>
      %c0_61 = arith.constant 0 : index
      %c0_62 = arith.constant 0 : index
      %c0_63 = arith.constant 0 : index
      %c0_64 = arith.constant 0 : index
      %108 = vector.load %arg6[%c0_61, %c0_62, %c0_63, %c0_64] : memref<1x10x10x8xbf16, #tpu.memory_space<vmem>>, vector<1x10x1x8xbf16>
      %109 = vector.shape_cast %108 : vector<1x10x1x8xbf16> to vector<10x1x8xbf16>
      %110 = vector.shape_cast %107 : vector<10x1x8xbf16> to vector<1x10x1x8xbf16>
      tpu.vector_store %arg6[%c0_61, %c0_62, %c0_63, %c0_64], %110 {strides = array<i32>} : memref<1x10x10x8xbf16, #tpu.memory_space<vmem>>, vector<1x10x1x8xbf16>,
      %cst_65 = arith.constant 0.000000e+00 : bf16
      %111 = vector.broadcast %cst_65 : bf16 to vector<10x1x8xbf16>
      %c0_66 = arith.constant 0 : index
      %c0_67 = arith.constant 0 : index
      %c9_68 = arith.constant 9 : index
      %c0_69 = arith.constant 0 : index
      %112 = vector.load %arg6[%c0_66, %c0_67, %c9_68, %c0_69] : memref<1x10x10x8xbf16, #tpu.memory_space<vmem>>, vector<1x10x1x8xbf16>
      %113 = vector.shape_cast %112 : vector<1x10x1x8xbf16> to vector<10x1x8xbf16>
      %114 = vector.shape_cast %111 : vector<10x1x8xbf16> to vector<1x10x1x8xbf16>
      tpu.vector_store %arg6[%c0_66, %c0_67, %c9_68, %c0_69], %114 {strides = array<i32>} : memref<1x10x10x8xbf16, #tpu.memory_space<vmem>>, vector<1x10x1x8xbf16>,
    } else {
    }
    %c8_i32 = arith.constant 8 : i32
    %3 = arith.muli %arg1, %c8_i32 : i32
    %4 = tpu.assume_multiple %3, 8 : i32
    %c0 = arith.constant 0 : index
    %5 = arith.index_cast %4 : i32 to index
    %c0_1 = arith.constant 0 : index
    %c0_2 = arith.constant 0 : index
    %6 = vector.load %arg2[%c0, %5, %c0_1, %c0_2] : memref<1x10x10x8xbf16, #tpu.memory_space<vmem>>, vector<1x10x10x8xbf16>
    %7 = vector.shape_cast %6 : vector<1x10x10x8xbf16> to vector<10x10x8xbf16>
    %8 = arith.extf %7 : vector<10x10x8xbf16> to vector<10x10x8xf32>
    %c0_3 = arith.constant 0 : index
    %c0_4 = arith.constant 0 : index
    %9 = vector.load %arg3[%c0_3, %c0_4] : memref<1x8xf32, #tpu.memory_space<vmem>>, vector<1x8xf32>
    %10 = vector.shape_cast %9 : vector<1x8xf32> to vector<1x1x8xf32>
    %11 = vector.broadcast %10 : vector<1x1x8xf32> to vector<10x10x8xf32>
    %12 = arith.mulf %8, %11 : vector<10x10x8xf32>
    %c0_5 = arith.constant 0 : index
    %c0_6 = arith.constant 0 : index
    %13 = vector.load %arg4[%c0_5, %c0_6] : memref<1x8xf32, #tpu.memory_space<vmem>>, vector<1x8xf32>
    %14 = vector.shape_cast %13 : vector<1x8xf32> to vector<1x1x8xf32>
    %15 = vector.broadcast %14 : vector<1x1x8xf32> to vector<10x10x8xf32>
    %16 = arith.addf %12, %15 : vector<10x10x8xf32>
    %cst = arith.constant 0.000000e+00 : f32
    %17 = vector.broadcast %cst : f32 to vector<10x10x8xf32>
    %18 = arith.maximumf %16, %17 : vector<10x10x8xf32>
    %19 = tpu.iota {dimensions = array<i32: 0>} : vector<10x10x1xi32>
    %20 = vector.broadcast %4 : i32 to vector<10x10x1xi32>
    %21 = arith.addi %19, %20 : vector<10x10x1xi32>
    %22 = tpu.iota {dimensions = array<i32: 1>} : vector<10x10x1xi32>
    %c1_i32 = arith.constant 1 : i32
    %23 = vector.broadcast %c1_i32 : i32 to vector<10x10x1xi32>
    %24 = arith.cmpi sge, %21, %23 : vector<10x10x1xi32>
    %c8_i32_7 = arith.constant 8 : i32
    %25 = vector.broadcast %c8_i32_7 : i32 to vector<10x10x1xi32>
    %26 = arith.cmpi sle, %21, %25 : vector<10x10x1xi32>
    %27 = arith.andi %24, %26 : vector<10x10x1xi1>
    %c1_i32_8 = arith.constant 1 : i32
    %28 = vector.broadcast %c1_i32_8 : i32 to vector<10x10x1xi32>
    %29 = arith.cmpi sge, %22, %28 : vector<10x10x1xi32>
    %30 = arith.andi %27, %29 : vector<10x10x1xi1>
    %c8_i32_9 = arith.constant 8 : i32
    %31 = vector.broadcast %c8_i32_9 : i32 to vector<10x10x1xi32>
    %32 = arith.cmpi sle, %22, %31 : vector<10x10x1xi32>
    %33 = arith.andi %30, %32 : vector<10x10x1xi1>
    %cst_10 = arith.constant 0.000000e+00 : f32
    %34 = vector.shape_cast %33 : vector<10x10x1xi1> to vector<10x10x1xi1>
    %35 = vector.broadcast %34 : vector<10x10x1xi1> to vector<10x10x8xi1>
    %36 = vector.broadcast %cst_10 : f32 to vector<10x10x8xf32>
    %37 = arith.select %35, %18, %36 : vector<10x10x8xi1>, vector<10x10x8xf32>
    %38 = vector.extract_strided_slice %37 {offsets = [0, 0, 0], sizes = [8, 8, 8], strides = [1, 1, 1]} : vector<10x10x8xf32> to vector<8x8x8xf32>
    %39 = vector.shape_cast %38 : vector<8x8x8xf32> to vector<64x8xf32>
    %40 = arith.truncf %39 : vector<64x8xf32> to vector<64x8xbf16>
    %c0_11 = arith.constant 0 : index
    %c0_12 = arith.constant 0 : index
    %41 = vector.load %arg9[%c0_11, %c0_12] : memref<64x72xbf16, #tpu.memory_space<vmem>>, vector<64x8xbf16>
    tpu.vector_store %arg9[%c0_11, %c0_12], %40 {strides = array<i32>} : memref<64x72xbf16, #tpu.memory_space<vmem>>, vector<64x8xbf16>,
    %42 = vector.extract_strided_slice %37 {offsets = [0, 1, 0], sizes = [8, 8, 8], strides = [1, 1, 1]} : vector<10x10x8xf32> to vector<8x8x8xf32>
    %43 = vector.shape_cast %42 : vector<8x8x8xf32> to vector<64x8xf32>
    %44 = arith.truncf %43 : vector<64x8xf32> to vector<64x8xbf16>
    %c0_13 = arith.constant 0 : index
    %c8 = arith.constant 8 : index
    %45 = vector.load %arg9[%c0_13, %c8] : memref<64x72xbf16, #tpu.memory_space<vmem>>, vector<64x8xbf16>
    tpu.vector_store %arg9[%c0_13, %c8], %44 {strides = array<i32>} : memref<64x72xbf16, #tpu.memory_space<vmem>>, vector<64x8xbf16>,
    %46 = vector.extract_strided_slice %37 {offsets = [0, 2, 0], sizes = [8, 8, 8], strides = [1, 1, 1]} : vector<10x10x8xf32> to vector<8x8x8xf32>
    %47 = vector.shape_cast %46 : vector<8x8x8xf32> to vector<64x8xf32>
    %48 = arith.truncf %47 : vector<64x8xf32> to vector<64x8xbf16>
    %c0_14 = arith.constant 0 : index
    %c16 = arith.constant 16 : index
    %49 = vector.load %arg9[%c0_14, %c16] : memref<64x72xbf16, #tpu.memory_space<vmem>>, vector<64x8xbf16>
    tpu.vector_store %arg9[%c0_14, %c16], %48 {strides = array<i32>} : memref<64x72xbf16, #tpu.memory_space<vmem>>, vector<64x8xbf16>,
    %50 = vector.extract_strided_slice %37 {offsets = [1, 0, 0], sizes = [8, 8, 8], strides = [1, 1, 1]} : vector<10x10x8xf32> to vector<8x8x8xf32>
    %51 = vector.shape_cast %50 : vector<8x8x8xf32> to vector<64x8xf32>
    %52 = arith.truncf %51 : vector<64x8xf32> to vector<64x8xbf16>
    %c0_15 = arith.constant 0 : index
    %c24 = arith.constant 24 : index
    %53 = vector.load %arg9[%c0_15, %c24] : memref<64x72xbf16, #tpu.memory_space<vmem>>, vector<64x8xbf16>
    tpu.vector_store %arg9[%c0_15, %c24], %52 {strides = array<i32>} : memref<64x72xbf16, #tpu.memory_space<vmem>>, vector<64x8xbf16>,
    %54 = vector.extract_strided_slice %37 {offsets = [1, 1, 0], sizes = [8, 8, 8], strides = [1, 1, 1]} : vector<10x10x8xf32> to vector<8x8x8xf32>
    %55 = vector.shape_cast %54 : vector<8x8x8xf32> to vector<64x8xf32>
    %56 = arith.truncf %55 : vector<64x8xf32> to vector<64x8xbf16>
    %c0_16 = arith.constant 0 : index
    %c32 = arith.constant 32 : index
    %57 = vector.load %arg9[%c0_16, %c32] : memref<64x72xbf16, #tpu.memory_space<vmem>>, vector<64x8xbf16>
    tpu.vector_store %arg9[%c0_16, %c32], %56 {strides = array<i32>} : memref<64x72xbf16, #tpu.memory_space<vmem>>, vector<64x8xbf16>,
    %58 = vector.extract_strided_slice %37 {offsets = [1, 2, 0], sizes = [8, 8, 8], strides = [1, 1, 1]} : vector<10x10x8xf32> to vector<8x8x8xf32>
    %59 = vector.shape_cast %58 : vector<8x8x8xf32> to vector<64x8xf32>
    %60 = arith.truncf %59 : vector<64x8xf32> to vector<64x8xbf16>
    %c0_17 = arith.constant 0 : index
    %c40 = arith.constant 40 : index
    %61 = vector.load %arg9[%c0_17, %c40] : memref<64x72xbf16, #tpu.memory_space<vmem>>, vector<64x8xbf16>
    tpu.vector_store %arg9[%c0_17, %c40], %60 {strides = array<i32>} : memref<64x72xbf16, #tpu.memory_space<vmem>>, vector<64x8xbf16>,
    %62 = vector.extract_strided_slice %37 {offsets = [2, 0, 0], sizes = [8, 8, 8], strides = [1, 1, 1]} : vector<10x10x8xf32> to vector<8x8x8xf32>
    %63 = vector.shape_cast %62 : vector<8x8x8xf32> to vector<64x8xf32>
    %64 = arith.truncf %63 : vector<64x8xf32> to vector<64x8xbf16>
    %c0_18 = arith.constant 0 : index
    %c48 = arith.constant 48 : index
    %65 = vector.load %arg9[%c0_18, %c48] : memref<64x72xbf16, #tpu.memory_space<vmem>>, vector<64x8xbf16>
    tpu.vector_store %arg9[%c0_18, %c48], %64 {strides = array<i32>} : memref<64x72xbf16, #tpu.memory_space<vmem>>, vector<64x8xbf16>,
    %66 = vector.extract_strided_slice %37 {offsets = [2, 1, 0], sizes = [8, 8, 8], strides = [1, 1, 1]} : vector<10x10x8xf32> to vector<8x8x8xf32>
    %67 = vector.shape_cast %66 : vector<8x8x8xf32> to vector<64x8xf32>
    %68 = arith.truncf %67 : vector<64x8xf32> to vector<64x8xbf16>
    %c0_19 = arith.constant 0 : index
    %c56 = arith.constant 56 : index
    %69 = vector.load %arg9[%c0_19, %c56] : memref<64x72xbf16, #tpu.memory_space<vmem>>, vector<64x8xbf16>
    tpu.vector_store %arg9[%c0_19, %c56], %68 {strides = array<i32>} : memref<64x72xbf16, #tpu.memory_space<vmem>>, vector<64x8xbf16>,
    %70 = vector.extract_strided_slice %37 {offsets = [2, 2, 0], sizes = [8, 8, 8], strides = [1, 1, 1]} : vector<10x10x8xf32> to vector<8x8x8xf32>
    %71 = vector.shape_cast %70 : vector<8x8x8xf32> to vector<64x8xf32>
    %72 = arith.truncf %71 : vector<64x8xf32> to vector<64x8xbf16>
    %c0_20 = arith.constant 0 : index
    %c64 = arith.constant 64 : index
    %73 = vector.load %arg9[%c0_20, %c64] : memref<64x72xbf16, #tpu.memory_space<vmem>>, vector<64x8xbf16>
    tpu.vector_store %arg9[%c0_20, %c64], %72 {strides = array<i32>} : memref<64x72xbf16, #tpu.memory_space<vmem>>, vector<64x8xbf16>,
    %c0_21 = arith.constant 0 : index
    %c0_22 = arith.constant 0 : index
    %74 = vector.load %arg9[%c0_21, %c0_22] : memref<64x72xbf16, #tpu.memory_space<vmem>>, vector<64x72xbf16>
    %c0_23 = arith.constant 0 : index
    %c0_24 = arith.constant 0 : index
    %75 = vector.load %arg5[%c0_23, %c0_24] : memref<72x8xbf16, #tpu.memory_space<vmem>>, vector<72x8xbf16>
    %cst_25 = arith.constant dense<0.000000e+00> : vector<64x8xf32>
    %76 = tpu.matmul %74, %75, %cst_25 {dimension_numbers = #tpu.dot_dimension_numbers<[1], [0], [0], [1], [0, 0, 1, 1], [], []>} : vector<64x72xbf16>, vector<72x8xbf16>, vector<64x8xf32> -> vector<64x8xf32>
    %c0_26 = arith.constant 0 : index
    %c0_27 = arith.constant 0 : index
    %c0_28 = arith.constant 0 : index
    %77 = vector.load %arg7[%c0_26, %c0_27, %c0_28] : memref<1x1x8xf32, #tpu.memory_space<vmem>>, vector<1x1x8xf32>
    %cst_29 = arith.constant dense<0.000000e+00> : vector<8xf32>
    %78 = vector.multi_reduction <add>, %76, %cst_29 [0] : vector<64x8xf32> to vector<8xf32>
    %79 = vector.shape_cast %78 : vector<8xf32> to vector<1x1x8xf32>
    %80 = arith.addf %77, %79 : vector<1x1x8xf32>
    %c0_30 = arith.constant 0 : index
    %c0_31 = arith.constant 0 : index
    %c0_32 = arith.constant 0 : index
    %81 = vector.load %arg7[%c0_30, %c0_31, %c0_32] : memref<1x1x8xf32, #tpu.memory_space<vmem>>, vector<1x1x8xf32>
    tpu.vector_store %arg7[%c0_30, %c0_31, %c0_32], %80 {strides = array<i32>} : memref<1x1x8xf32, #tpu.memory_space<vmem>>, vector<1x1x8xf32>,
    %c0_33 = arith.constant 0 : index
    %c0_34 = arith.constant 0 : index
    %c0_35 = arith.constant 0 : index
    %82 = vector.load %arg8[%c0_33, %c0_34, %c0_35] : memref<1x1x8xf32, #tpu.memory_space<vmem>>, vector<1x1x8xf32>
    %83 = arith.mulf %76, %76 : vector<64x8xf32>
    %cst_36 = arith.constant dense<0.000000e+00> : vector<8xf32>
    %84 = vector.multi_reduction <add>, %83, %cst_36 [0] : vector<64x8xf32> to vector<8xf32>
    %85 = vector.shape_cast %84 : vector<8xf32> to vector<1x1x8xf32>
    %86 = arith.addf %82, %85 : vector<1x1x8xf32>
    %c0_37 = arith.constant 0 : index
    %c0_38 = arith.constant 0 : index
    %c0_39 = arith.constant 0 : index
    %87 = vector.load %arg8[%c0_37, %c0_38, %c0_39] : memref<1x1x8xf32, #tpu.memory_space<vmem>>, vector<1x1x8xf32>
    tpu.vector_store %arg8[%c0_37, %c0_38, %c0_39], %86 {strides = array<i32>} : memref<1x1x8xf32, #tpu.memory_space<vmem>>, vector<1x1x8xf32>,
    %88 = vector.shape_cast %76 : vector<64x8xf32> to vector<8x8x8xf32>
    %89 = arith.truncf %88 : vector<8x8x8xf32> to vector<8x8x8xbf16>
    %c1_i32_40 = arith.constant 1 : i32
    %90 = arith.addi %4, %c1_i32_40 : i32
    %c0_41 = arith.constant 0 : index
    %91 = arith.index_cast %90 : i32 to index
    %c1 = arith.constant 1 : index
    %c0_42 = arith.constant 0 : index
    %92 = vector.load %arg6[%c0_41, %91, %c1, %c0_42] : memref<1x10x10x8xbf16, #tpu.memory_space<vmem>>, vector<1x8x8x8xbf16>
    %93 = vector.shape_cast %92 : vector<1x8x8x8xbf16> to vector<8x8x8xbf16>
    %94 = vector.shape_cast %89 : vector<8x8x8xbf16> to vector<1x8x8x8xbf16>
    tpu.vector_store %arg6[%c0_41, %91, %c1, %c0_42], %94 {strides = array<i32>} : memref<1x10x10x8xbf16, #tpu.memory_space<vmem>>, vector<1x8x8x8xbf16>,
    return
  }
  func.func @transform_0(%arg0: i32, %arg1: i32) -> (i32, i32, i32, i32) {
    %c0_i32 = arith.constant 0 : i32
    %c0_i32_0 = arith.constant 0 : i32
    %c0_i32_1 = arith.constant 0 : i32
    %c0_i32_2 = arith.constant 0 : i32
    return %arg0, %c0_i32, %c0_i32_0, %c0_i32_1 : i32, i32, i32, i32
  }
  func.func @transform_1(%arg0: i32, %arg1: i32) -> (i32, i32) {
    %c0_i32 = arith.constant 0 : i32
    %c0_i32_0 = arith.constant 0 : i32
    %c0_i32_1 = arith.constant 0 : i32
    return %c0_i32, %c0_i32_0 : i32, i32
  }
  func.func @transform_2(%arg0: i32, %arg1: i32) -> (i32, i32) {
    %c0_i32 = arith.constant 0 : i32
    %c0_i32_0 = arith.constant 0 : i32
    %c0_i32_1 = arith.constant 0 : i32
    return %c0_i32, %c0_i32_0 : i32, i32
  }
  func.func @transform_3(%arg0: i32, %arg1: i32) -> (i32, i32) {
    %c0_i32 = arith.constant 0 : i32
    %c0_i32_0 = arith.constant 0 : i32
    %c0_i32_1 = arith.constant 0 : i32
    return %c0_i32, %c0_i32_0 : i32, i32
  }
  func.func @transform_4(%arg0: i32, %arg1: i32) -> (i32, i32, i32, i32) {
    %c0_i32 = arith.constant 0 : i32
    %c0_i32_0 = arith.constant 0 : i32
    %c0_i32_1 = arith.constant 0 : i32
    %c0_i32_2 = arith.constant 0 : i32
    return %arg0, %c0_i32, %c0_i32_0, %c0_i32_1 : i32, i32, i32, i32
  }
  func.func @transform_5(%arg0: i32, %arg1: i32) -> (i32, i32, i32) {
    %c0_i32 = arith.constant 0 : i32
    %c0_i32_0 = arith.constant 0 : i32
    %c0_i32_1 = arith.constant 0 : i32
    return %arg0, %c0_i32, %c0_i32_0 : i32, i32, i32
  }
  func.func @transform_6(%arg0: i32, %arg1: i32) -> (i32, i32, i32) {
    %c0_i32 = arith.constant 0 : i32
    %c0_i32_0 = arith.constant 0 : i32
    %c0_i32_1 = arith.constant 0 : i32
    return %arg0, %c0_i32, %c0_i32_0 : i32, i32, i32
  }
}

module attributes {stable_mosaic.version = 11 : i64} {
  func.func @bn_relu_kernel(%arg0: i32, %arg1: i32, %arg2: memref<1x8x8x8xbf16, #tpu.memory_space<vmem>>, %arg3: memref<1x8xf32, #tpu.memory_space<vmem>>, %arg4: memref<1x8xf32, #tpu.memory_space<vmem>>, %arg5: memref<1x8x8x8xf32, #tpu.memory_space<vmem>>) attributes {dimension_semantics = [#tpu.dimension_semantics<parallel>, #tpu.dimension_semantics<parallel>], iteration_bounds = array<i64: 2, 1>, scalar_prefetch = 0 : i64, scratch_operands = 0 : i64, tpu.core_type = #tpu.core_type<tc>, window_params = [{transform_indices = @transform_0, window_bounds = array<i64: 1, 8, 8, 8>}, {pipeline_mode = #tpu.pipeline_mode<synchronous>, transform_indices = @transform_1, window_bounds = array<i64: 1, 8>}, {pipeline_mode = #tpu.pipeline_mode<synchronous>, transform_indices = @transform_2, window_bounds = array<i64: 1, 8>}, {transform_indices = @transform_3, window_bounds = array<i64: 1, 8, 8, 8>}]} {
    %c0 = arith.constant 0 : index
    %c0_0 = arith.constant 0 : index
    %c0_1 = arith.constant 0 : index
    %c0_2 = arith.constant 0 : index
    %0 = vector.load %arg2[%c0, %c0_0, %c0_1, %c0_2] : memref<1x8x8x8xbf16, #tpu.memory_space<vmem>>, vector<1x8x8x8xbf16>
    %1 = arith.extf %0 : vector<1x8x8x8xbf16> to vector<1x8x8x8xf32>
    %c0_3 = arith.constant 0 : index
    %c0_4 = arith.constant 0 : index
    %2 = vector.load %arg3[%c0_3, %c0_4] : memref<1x8xf32, #tpu.memory_space<vmem>>, vector<1x8xf32>
    %3 = vector.shape_cast %2 : vector<1x8xf32> to vector<1x1x1x8xf32>
    %4 = vector.broadcast %3 : vector<1x1x1x8xf32> to vector<1x8x8x8xf32>
    %5 = arith.mulf %1, %4 : vector<1x8x8x8xf32>
    %c0_5 = arith.constant 0 : index
    %c0_6 = arith.constant 0 : index
    %6 = vector.load %arg4[%c0_5, %c0_6] : memref<1x8xf32, #tpu.memory_space<vmem>>, vector<1x8xf32>
    %7 = vector.shape_cast %6 : vector<1x8xf32> to vector<1x1x1x8xf32>
    %8 = vector.broadcast %7 : vector<1x1x1x8xf32> to vector<1x8x8x8xf32>
    %9 = arith.addf %5, %8 : vector<1x8x8x8xf32>
    %cst = arith.constant 0.000000e+00 : f32
    %10 = vector.broadcast %cst : f32 to vector<1x8x8x8xf32>
    %11 = arith.maximumf %9, %10 : vector<1x8x8x8xf32>
    %c0_7 = arith.constant 0 : index
    %c0_8 = arith.constant 0 : index
    %c0_9 = arith.constant 0 : index
    %c0_10 = arith.constant 0 : index
    %12 = vector.load %arg5[%c0_7, %c0_8, %c0_9, %c0_10] : memref<1x8x8x8xf32, #tpu.memory_space<vmem>>, vector<1x8x8x8xf32>
    tpu.vector_store %arg5[%c0_7, %c0_8, %c0_9, %c0_10], %11 {strides = array<i32>} : memref<1x8x8x8xf32, #tpu.memory_space<vmem>>, vector<1x8x8x8xf32>,
    return
  }
  func.func @transform_0(%arg0: i32, %arg1: i32) -> (i32, i32, i32, i32) {
    %c0_i32 = arith.constant 0 : i32
    %c0_i32_0 = arith.constant 0 : i32
    %c0_i32_1 = arith.constant 0 : i32
    return %arg0, %arg1, %c0_i32, %c0_i32_0 : i32, i32, i32, i32
  }
  func.func @transform_1(%arg0: i32, %arg1: i32) -> (i32, i32) {
    %c0_i32 = arith.constant 0 : i32
    %c0_i32_0 = arith.constant 0 : i32
    %c0_i32_1 = arith.constant 0 : i32
    return %c0_i32, %c0_i32_0 : i32, i32
  }
  func.func @transform_2(%arg0: i32, %arg1: i32) -> (i32, i32) {
    %c0_i32 = arith.constant 0 : i32
    %c0_i32_0 = arith.constant 0 : i32
    %c0_i32_1 = arith.constant 0 : i32
    return %c0_i32, %c0_i32_0 : i32, i32
  }
  func.func @transform_3(%arg0: i32, %arg1: i32) -> (i32, i32, i32, i32) {
    %c0_i32 = arith.constant 0 : i32
    %c0_i32_0 = arith.constant 0 : i32
    %c0_i32_1 = arith.constant 0 : i32
    return %arg0, %arg1, %c0_i32, %c0_i32_0 : i32, i32, i32, i32
  }
}

</mosaic_0001>

<llo_original>
// kernel: downsampling_forward.5
$region0: #{downsampling_forward.5}
  #allocation0 [shape = 'u32[]', space=smem, size = 0x4, offset = 0x4, fixed_abs, tag = 'smem constant byte address 0x4 - core index']
  #allocation1 [shape = 'u32[72,128]{1,0:T(1,128)}', space=vmem, size = 0x9000, scoped, tag = 'internal scratch']
  %s0 = inlined_call_operand.vmem [shape: f32[2,8,2,8,8], index: 0, kind: input, shape index: {}]
  %s1 = inlined_call_operand.vmem [shape: bf16[2,10,10,4], index: 1, kind: output, shape index: {}]
  %s2 = sld [smem:[#allocation0]]
  $region37: #{downsampling_forward.5} parent=0
    _
  %s4 = ssub.s32 1, %s2
  %s5 = scalar_select 0, %s4, %s2
  loop: start=0, step=1, limit=4
  $region2: #{downsampling_forward.5} parent=0 // loop_pre_header
    _
  $region3: #{downsampling_forward.5} parent=0 // loop_header
    %s7 = sphi 0, %s11
    %p8 = scmp.ge.s32.totalorder %s7, 4
    %s17 = sphi 0, %s19
    %s20 = sphi 0, %s17
    %s21 = sphi 0, %s20
    %s37 = sphi 0, %s21
    %s43 = sphi 0, %s45
    %s46 = sphi 0, %s43
    %s47 = sphi 0, %s46
    %s63 = sphi 0, %s47
  $region4: #{downsampling_forward.5} parent=0 // loop_header_branch
    %10 = sbr.rel (%p8) target = $region8
  $region5: #{downsampling_forward.5} parent=0 // loop_body
    %s12 = ssub.s32 %s7, 1
    %s13 = ssub.s32 %s7, 2
    %s14 = sadd.s32 %s7, 1
    %s15 = ssub.s32 %s7, %s14
    %p16 = scmp.eq.s32.totalorder %s15, 0
    %s18 = sadd.s32 %s17, 1
    %s19 = scalar_select %p16, %s17, %s18
    %p22 = pneg %p16
    %p23 = scmp.eq.s32.totalorder %s7, 1
    %p24 = por %p22, %p23
    %p25 = scmp.ne.s32.totalorder %s17, %s20
    %p26 = scmp.eq.s32.totalorder %s7, 0
    %p27 = por %p25, %p26
    %p28 = scmp.ne.s32.totalorder %s17, %s20
    %p29 = scmp.eq.s32.totalorder %s12, 1
    %p30 = por %p28, %p29
    %p31 = scmp.ne.s32.totalorder %s20, %s21
    %p32 = scmp.eq.s32.totalorder %s12, 0
    %p33 = por %p31, %p32
    %p34 = scmp.ne.s32.totalorder %s20, %s21
    %p35 = scmp.eq.s32.totalorder %s13, 1
    %p36 = por %p34, %p35
    %p38 = scmp.ne.s32.totalorder %s21, %s37
    %p39 = scmp.eq.s32.totalorder %s13, 0
    %p40 = por %p38, %p39
    %s41 = ssub.s32 %s7, %s14
    %p42 = scmp.eq.s32.totalorder %s41, 0
    %s44 = sadd.s32 %s43, 1
    %s45 = scalar_select %p42, %s43, %s44
    %p48 = pneg %p42
    %p49 = scmp.eq.s32.totalorder %s7, 1
    %p50 = por %p48, %p49
    %p51 = scmp.ne.s32.totalorder %s43, %s46
    %p52 = scmp.eq.s32.totalorder %s7, 0
    %p53 = por %p51, %p52
    %p54 = scmp.ne.s32.totalorder %s43, %s46
    %p55 = scmp.eq.s32.totalorder %s12, 1
    %p56 = por %p54, %p55
    %p57 = scmp.ne.s32.totalorder %s46, %s47
    %p58 = scmp.eq.s32.totalorder %s12, 0
    %p59 = por %p57, %p58
    %p60 = scmp.ne.s32.totalorder %s46, %s47
    %p61 = scmp.eq.s32.totalorder %s13, 1
    %p62 = por %p60, %p61
    %p64 = scmp.ne.s32.totalorder %s47, %s63
    %p65 = scmp.eq.s32.totalorder %s13, 0
    %p66 = por %p64, %p65
    %p67 = scmp.le.s32.totalorder 1, %s7
    %p68 = scmp.lt.s32.totalorder %s7, 3
    %p69 = pnand %p67, %p68
    %p70 = pneg %p69
    // Predicated region
    $region9: #{downsampling_forward.5} parent=5 // pred_check
      _
    $region10: #{downsampling_forward.5} parent=5 // pred_check_branch
      %72 = sbr.rel (%p69) target = $region12
    $region11: #{downsampling_forward.5} parent=5 // pred_region
      %s73 = ssub.s32 %s7, 1
    $region12: #{downsampling_forward.5} parent=5 // pred_fallthru
      _
    %p74 = scmp.lt.s32.totalorder %s7, 2
    // Predicated region
    $region13: #{downsampling_forward.5} parent=5 // pred_check
      %p75 = pneg %p74
    $region14: #{downsampling_forward.5} parent=5 // pred_check_branch
      %77 = sbr.rel (%p75) target = $region16
    $region15: #{downsampling_forward.5} parent=5 // pred_region
      // Predicated region
      $region17: #{downsampling_forward.5} parent=15 // pred_check
        %p78 = pneg %p27
      $region18: #{downsampling_forward.5} parent=15 // pred_check_branch
        %80 = sbr.rel (%p78) target = $region20
      $region19: #{downsampling_forward.5} parent=15 // pred_region
        %p81 = scmp.lt.s32.totalorder %s7, 1
        %s82 = scalar_select %p81, %s7, 1
        %s83 = smul.addr %s82, 16
        %s84 = smul.addr %s83, 8
        %s85 = scalar_lea.vmem %s0, %s84
      $region20: #{downsampling_forward.5} parent=15 // pred_fallthru
        _
    $region16: #{downsampling_forward.5} parent=5 // pred_fallthru
      _
    %p86 = scmp.le.s32.totalorder 1, %s7
    %p87 = scmp.lt.s32.totalorder %s7, 3
    %p88 = pnand %p86, %p87
    %p89 = pneg %p88
    // Predicated region
    $region21: #{downsampling_forward.5} parent=5 // pred_check
      _
    $region22: #{downsampling_forward.5} parent=5 // pred_check_branch
      %91 = sbr.rel (%p88) target = $region24
    $region23: #{downsampling_forward.5} parent=5 // pred_region
      %s92 = ssub.s32 %s7, 1
      %p93 = scmp.lt.s32.totalorder %s12, 1
      %s94 = scalar_select %p93, %s12, 1
      %s95 = smul.addr %s94, 16
      %s96 = smul.addr %s95, 8
      %s97 = scalar_lea.vmem %s0, %s96
      %p98 = pneg %p33
      %p99 = pneg %p30
      %p100 = pneg %p59
      %p101 = pneg %p56
      %p102 = scmp.lt.s32.totalorder %s12, 1
      %s103 = scalar_select %p102, %s12, 1
      %s104 = smul.addr %s103, 20
      %s105 = smul.addr %s104, 4
      %s106 = scalar_lea.vmem %s1, %s105
      %p107 = scmp.lt.s32.totalorder %s12, 1
      %s108 = scalar_select %p107, %s12, 1
      %s109 = smul.addr %s108, 16
      %s110 = smul.addr %s109, 8
      %s111 = scalar_lea.vmem %s0, %s110
      %p112 = scmp.lt.s32.totalorder %s12, 1
      %s113 = scalar_select %p112, %s12, 1
      %s114 = smul.addr %s113, 20
      %s115 = smul.addr %s114, 4
      %s116 = scalar_lea.vmem %s1, %s115
      %v118 = vld [vmem:[%s111] sm:$0xff]
      %v119 = vld [vmem:[%s111 + $0x8] sm:$0xff]
      %v120 = vld [vmem:[%s111 + $0x10] sm:$0xff]
      %v121 = vld [vmem:[%s111 + $0x18] sm:$0xff]
      %v122 = vld [vmem:[%s111 + $0x20] sm:$0xff]
      %v123 = vld [vmem:[%s111 + $0x28] sm:$0xff]
      %v124 = vld [vmem:[%s111 + $0x30] sm:$0xff]
      %v125 = vld [vmem:[%s111 + $0x38] sm:$0xff]
      %v126 = vld [vmem:[%s111 + $0x40] sm:$0xff]
      %v127 = vld [vmem:[%s111 + $0x48] sm:$0xff]
      %v128 = vld [vmem:[%s111 + $0x50] sm:$0xff]
      %v129 = vld [vmem:[%s111 + $0x58] sm:$0xff]
      %v130 = vld [vmem:[%s111 + $0x60] sm:$0xff]
      %v131 = vld [vmem:[%s111 + $0x68] sm:$0xff]
      %v132 = vld [vmem:[%s111 + $0x70] sm:$0xff]
      %v133 = vld [vmem:[%s111 + $0x78] sm:$0xff]
      %v134 = vmax.f32 %v118, %v119
      %v135 = vmax.f32 %v120, %v121
      %v136 = vmax.f32 %v122, %v123
      %v137 = vmax.f32 %v124, %v125
      %v138 = vmax.f32 %v126, %v127
      %v139 = vmax.f32 %v128, %v129
      %v140 = vmax.f32 %v130, %v131
      %v141 = vmax.f32 %v132, %v133
      %150 = vrot.lane.b32.xlu0 %v134, 124
      %v151 = vpop.permute.xlu0 %150
      %152 = vrot.lane.b32.xlu0 %v135, 124
      %v153 = vpop.permute.xlu0 %152
      %154 = vrot.lane.b32.xlu0 %v136, 124
      %v155 = vpop.permute.xlu0 %154
      %156 = vrot.lane.b32.xlu0 %v137, 124
      %v157 = vpop.permute.xlu0 %156
      %158 = vrot.lane.b32.xlu0 %v138, 124
      %v159 = vpop.permute.xlu0 %158
      %160 = vrot.lane.b32.xlu0 %v139, 124
      %v161 = vpop.permute.xlu0 %160
      %162 = vrot.lane.b32.xlu0 %v140, 124
      %v163 = vpop.permute.xlu0 %162
      %164 = vrot.lane.b32.xlu0 %v141, 124
      %v165 = vpop.permute.xlu0 %164
      %v174 = vmax.f32 %v134, %v151
      %v175 = vmax.f32 %v135, %v153
      %v176 = vmax.f32 %v136, %v155
      %v177 = vmax.f32 %v137, %v157
      %v178 = vmax.f32 %v138, %v159
      %v179 = vmax.f32 %v139, %v161
      %v180 = vmax.f32 %v140, %v163
      %v181 = vmax.f32 %v141, %v165
      %vm182 = vcmask 27648
      %183 = vst.msk [vmem:[%s116] sm:$0xf] %vm182, 0
      %vm184 = vcmask 24576
      %185 = vst.msk [vmem:[%s116 + $0x4] sm:$0x1] %vm184, 0
      %s186 = scalar_lea.vmem %s116, 72
      %187 = vst.msk [vmem:[%s186] sm:$0xf] %vm182, 0
      %188 = vst.msk [vmem:[%s186 + $0x4] sm:$0x1] %vm184, 0
      %vm189 = vcmask 24576
      %vm190 = vsmask.f32 256
      %vm191 = vmand %vm189, %vm190
      %v192 = vld [vmem:[%s116] sm:$0x1]
      %v193 = vsel %vm191, 0, %v192
      %194 = vst [vmem:[%s116] sm:$0x1] %v193
      %v195 = vld [vmem:[%s116 + $0x8] sm:$0x1]
      %v196 = vsel %vm191, 0, %v195
      %197 = vst [vmem:[%s116 + $0x8] sm:$0x1] %v196
      %v198 = vld [vmem:[%s116 + $0x10] sm:$0x1]
      %v199 = vsel %vm191, 0, %v198
      %200 = vst [vmem:[%s116 + $0x10] sm:$0x1] %v199
      %v201 = vld [vmem:[%s116 + $0x18] sm:$0x1]
      %v202 = vsel %vm191, 0, %v201
      %203 = vst [vmem:[%s116 + $0x18] sm:$0x1] %v202
      %v204 = vld [vmem:[%s116 + $0x20] sm:$0x1]
      %v205 = vsel %vm191, 0, %v204
      %206 = vst [vmem:[%s116 + $0x20] sm:$0x1] %v205
      %v207 = vld [vmem:[%s116 + $0x28] sm:$0x1]
      %v208 = vsel %vm191, 0, %v207
      %209 = vst [vmem:[%s116 + $0x28] sm:$0x1] %v208
      %v210 = vld [vmem:[%s116 + $0x30] sm:$0x1]
      %v211 = vsel %vm191, 0, %v210
      %212 = vst [vmem:[%s116 + $0x30] sm:$0x1] %v211
      %v213 = vld [vmem:[%s116 + $0x38] sm:$0x1]
      %v214 = vsel %vm191, 0, %v213
      %215 = vst [vmem:[%s116 + $0x38] sm:$0x1] %v214
      %v216 = vld [vmem:[%s116 + $0x40] sm:$0x1]
      %v217 = vsel %vm191, 0, %v216
      %218 = vst [vmem:[%s116 + $0x40] sm:$0x1] %v217
      %v219 = vld [vmem:[%s116 + $0x48] sm:$0x1]
      %v220 = vsel %vm191, 0, %v219
      %221 = vst [vmem:[%s116 + $0x48] sm:$0x1] %v220
      %vm222 = vsmask.f32 7938
      %vm223 = vmand %vm189, %vm222
      %v224 = vld [vmem:[%s116 + $0x4] sm:$0x1]
      %v225 = vsel %vm223, 0, %v224
      %226 = vst [vmem:[%s116 + $0x4] sm:$0x1] %v225
      %v227 = vld [vmem:[%s116 + $0xc] sm:$0x1]
      %v228 = vsel %vm223, 0, %v227
      %229 = vst [vmem:[%s116 + $0xc] sm:$0x1] %v228
      %v230 = vld [vmem:[%s116 + $0x14] sm:$0x1]
      %v231 = vsel %vm223, 0, %v230
      %232 = vst [vmem:[%s116 + $0x14] sm:$0x1] %v231
      %v233 = vld [vmem:[%s116 + $0x1c] sm:$0x1]
      %v234 = vsel %vm223, 0, %v233
      %235 = vst [vmem:[%s116 + $0x1c] sm:$0x1] %v234
      %v236 = vld [vmem:[%s116 + $0x24] sm:$0x1]
      %v237 = vsel %vm223, 0, %v236
      %238 = vst [vmem:[%s116 + $0x24] sm:$0x1] %v237
      %v239 = vld [vmem:[%s116 + $0x2c] sm:$0x1]
      %v240 = vsel %vm223, 0, %v239
      %241 = vst [vmem:[%s116 + $0x2c] sm:$0x1] %v240
      %v242 = vld [vmem:[%s116 + $0x34] sm:$0x1]
      %v243 = vsel %vm223, 0, %v242
      %244 = vst [vmem:[%s116 + $0x34] sm:$0x1] %v243
      %v245 = vld [vmem:[%s116 + $0x3c] sm:$0x1]
      %v246 = vsel %vm223, 0, %v245
      %247 = vst [vmem:[%s116 + $0x3c] sm:$0x1] %v246
      %v248 = vld [vmem:[%s116 + $0x44] sm:$0x1]
      %v249 = vsel %vm223, 0, %v248
      %250 = vst [vmem:[%s116 + $0x44] sm:$0x1] %v249
      %v251 = vld [vmem:[%s116 + $0x4c] sm:$0x1]
      %v252 = vsel %vm223, 0, %v251
      %253 = vst [vmem:[%s116 + $0x4c] sm:$0x1] %v252
      %v254 = vpack.c.bf16 %v174, %v174
      %v255 = vpack.c.bf16 %v175, %v175
      %v256 = vpack.c.bf16 %v176, %v176
      %v257 = vpack.c.bf16 %v177, %v177
      %v258 = vpack.c.bf16 %v178, %v178
      %v259 = vpack.c.bf16 %v179, %v179
      %v260 = vpack.c.bf16 %v180, %v180
      %v261 = vpack.c.bf16 %v181, %v181
      %v263 = vshrl.u32 %v254, 16
      %v265 = vrot.slane %v263, 7
      %v266 = vshll.u32 %v254, 16
      %v268 = vor.u32 %v265, %v266
      %v269 = vrot.slane %v265, 4
      %v271 = vshrl.u32 %v255, 16
      %v273 = vrot.slane %v271, 7
      %v274 = vshll.u32 %v255, 16
      %v276 = vor.u32 %v273, %v274
      %v277 = vrot.slane %v273, 4
      %v279 = vshrl.u32 %v256, 16
      %v281 = vrot.slane %v279, 7
      %v282 = vshll.u32 %v256, 16
      %v284 = vor.u32 %v281, %v282
      %v285 = vrot.slane %v281, 4
      %v287 = vshrl.u32 %v257, 16
      %v289 = vrot.slane %v287, 7
      %v290 = vshll.u32 %v257, 16
      %v292 = vor.u32 %v289, %v290
      %v293 = vrot.slane %v289, 4
      %v295 = vshrl.u32 %v258, 16
      %v297 = vrot.slane %v295, 7
      %v298 = vshll.u32 %v258, 16
      %v300 = vor.u32 %v297, %v298
      %v301 = vrot.slane %v297, 4
      %v303 = vshrl.u32 %v259, 16
      %v305 = vrot.slane %v303, 7
      %v306 = vshll.u32 %v259, 16
      %v308 = vor.u32 %v305, %v306
      %v309 = vrot.slane %v305, 4
      %v311 = vshrl.u32 %v260, 16
      %v313 = vrot.slane %v311, 7
      %v314 = vshll.u32 %v260, 16
      %v316 = vor.u32 %v313, %v314
      %v317 = vrot.slane %v313, 4
      %v319 = vshrl.u32 %v261, 16
      %v321 = vrot.slane %v319, 7
      %v322 = vshll.u32 %v261, 16
      %v324 = vor.u32 %v321, %v322
      %v325 = vrot.slane %v321, 4
      %s342 = scalar_lea.vmem %s116, 8
      %vm343 = vcmask 27648
      %vm344 = vmand %vm343, %vm222
      %v345 = vld [vmem:[%s342] sm:$0xf]
      %v346 = vsel %vm344, %v268, %v345
      %347 = vst [vmem:[%s342] sm:$0xf] %v346
      %v348 = vld [vmem:[%s342 + $0x4] sm:$0x1]
      %v349 = vsel %vm191, %v269, %v348
      %350 = vst [vmem:[%s342 + $0x4] sm:$0x1] %v349
      %v351 = vld [vmem:[%s342 + $0x8] sm:$0xf]
      %v352 = vsel %vm344, %v276, %v351
      %353 = vst [vmem:[%s342 + $0x8] sm:$0xf] %v352
      %v354 = vld [vmem:[%s342 + $0xc] sm:$0x1]
      %v355 = vsel %vm191, %v277, %v354
      %356 = vst [vmem:[%s342 + $0xc] sm:$0x1] %v355
      %v357 = vld [vmem:[%s342 + $0x10] sm:$0xf]
      %v358 = vsel %vm344, %v284, %v357
      %359 = vst [vmem:[%s342 + $0x10] sm:$0xf] %v358
      %v360 = vld [vmem:[%s342 + $0x14] sm:$0x1]
      %v361 = vsel %vm191, %v285, %v360
      %362 = vst [vmem:[%s342 + $0x14] sm:$0x1] %v361
      %v363 = vld [vmem:[%s342 + $0x18] sm:$0xf]
      %v364 = vsel %vm344, %v292, %v363
      %365 = vst [vmem:[%s342 + $0x18] sm:$0xf] %v364
      %v366 = vld [vmem:[%s342 + $0x1c] sm:$0x1]
      %v367 = vsel %vm191, %v293, %v366
      %368 = vst [vmem:[%s342 + $0x1c] sm:$0x1] %v367
      %v369 = vld [vmem:[%s342 + $0x20] sm:$0xf]
      %v370 = vsel %vm344, %v300, %v369
      %371 = vst [vmem:[%s342 + $0x20] sm:$0xf] %v370
      %v372 = vld [vmem:[%s342 + $0x24] sm:$0x1]
      %v373 = vsel %vm191, %v301, %v372
      %374 = vst [vmem:[%s342 + $0x24] sm:$0x1] %v373
      %v375 = vld [vmem:[%s342 + $0x28] sm:$0xf]
      %v376 = vsel %vm344, %v308, %v375
      %377 = vst [vmem:[%s342 + $0x28] sm:$0xf] %v376
      %v378 = vld [vmem:[%s342 + $0x2c] sm:$0x1]
      %v379 = vsel %vm191, %v309, %v378
      %380 = vst [vmem:[%s342 + $0x2c] sm:$0x1] %v379
      %v381 = vld [vmem:[%s342 + $0x30] sm:$0xf]
      %v382 = vsel %vm344, %v316, %v381
      %383 = vst [vmem:[%s342 + $0x30] sm:$0xf] %v382
      %v384 = vld [vmem:[%s342 + $0x34] sm:$0x1]
      %v385 = vsel %vm191, %v317, %v384
      %386 = vst [vmem:[%s342 + $0x34] sm:$0x1] %v385
      %v387 = vld [vmem:[%s342 + $0x38] sm:$0xf]
      %v388 = vsel %vm344, %v324, %v387
      %389 = vst [vmem:[%s342 + $0x38] sm:$0xf] %v388
      %v390 = vld [vmem:[%s342 + $0x3c] sm:$0x1]
      %v391 = vsel %vm191, %v325, %v390
      %392 = vst [vmem:[%s342 + $0x3c] sm:$0x1] %v391
      %p393 = scmp.lt.s32.totalorder %s12, 1
      %s394 = scalar_select %p393, %s12, 1
      %s395 = smul.addr %s394, 20
      %s396 = smul.addr %s395, 4
      %s397 = scalar_lea.vmem %s1, %s396
      // Predicated region
      $region25: #{downsampling_forward.5} parent=23 // pred_check
        %p398 = pneg %p56
      $region26: #{downsampling_forward.5} parent=23 // pred_check_branch
        %400 = sbr.rel (%p398) target = $region28
      $region27: #{downsampling_forward.5} parent=23 // pred_region
        _
      $region28: #{downsampling_forward.5} parent=23 // pred_fallthru
        _
    $region24: #{downsampling_forward.5} parent=5 // pred_fallthru
      _
    %p401 = scmp.le.s32.totalorder 2, %s7
    // Predicated region
    $region29: #{downsampling_forward.5} parent=5 // pred_check
      %p402 = pneg %p401
    $region30: #{downsampling_forward.5} parent=5 // pred_check_branch
      %404 = sbr.rel (%p402) target = $region32
    $region31: #{downsampling_forward.5} parent=5 // pred_region
      %s405 = ssub.s32 %s7, 2
      // Predicated region
      $region33: #{downsampling_forward.5} parent=31 // pred_check
        %p406 = pneg %p62
      $region34: #{downsampling_forward.5} parent=31 // pred_check_branch
        %408 = sbr.rel (%p406) target = $region36
      $region35: #{downsampling_forward.5} parent=31 // pred_region
        %p409 = scmp.lt.s32.totalorder %s13, 1
        %s410 = scalar_select %p409, %s13, 1
        %s411 = smul.addr %s410, 20
        %s412 = smul.addr %s411, 4
        %s413 = scalar_lea.vmem %s1, %s412
      $region36: #{downsampling_forward.5} parent=31 // pred_fallthru
        _
    $region32: #{downsampling_forward.5} parent=5 // pred_fallthru
      _
  $region6: #{downsampling_forward.5} parent=0 // loop_footer
    %s11 = sadd.s32 1, %s7
  $region7: #{downsampling_forward.5} parent=0 // loop_footer_branch
    %6 = sbr.rel target = $region3
  $region8: #{downsampling_forward.5} parent=0 // loop_exit
    _

// kernel: downsampling_forward.8
$region0: #{downsampling_forward.8}
  #allocation0 [shape = 'u32[]', space=smem, size = 0x4, offset = 0x4, fixed_abs, tag = 'smem constant byte address 0x4 - core index']
  #allocation1 [shape = 'u32[72,128]{1,0:T(1,128)}', space=vmem, size = 0x9000, scoped, tag = 'internal scratch']
  #allocation2 [shape = 'bf16[64,72]{1,0:T(8,128)(2,1)}', space=vmem, size = 0x4000, scoped, tag = 'scratch operand']
  %s0 = inlined_call_operand.vmem [shape: bf16[2,10,10,8], index: 0, kind: input, shape index: {}]
  %s1 = inlined_call_operand.vmem [shape: f32[1,8], index: 1, kind: input, shape index: {}]
  %s2 = inlined_call_operand.vmem [shape: f32[1,8], index: 2, kind: input, shape index: {}]
  %s3 = inlined_call_operand.vmem [shape: bf16[72,8], index: 3, kind: input, shape index: {}]
  %s4 = inlined_call_operand.vmem [shape: bf16[2,8,8,8], index: 4, kind: output, shape index: {0}]
  %s5 = inlined_call_operand.vmem [shape: f32[2,1,8], index: 5, kind: output, shape index: {1}]
  %s6 = inlined_call_operand.vmem [shape: f32[2,1,8], index: 6, kind: output, shape index: {2}]
  %7 = xla_tuple %s4, %s5, %s6
  %s8 = sld [smem:[#allocation0]]
  $region69: #{downsampling_forward.8} parent=0
    _
  %s10 = ssub.s32 1, %s8
  %s11 = scalar_select 0, %s10, %s8
  loop: start=0, step=1, limit=4
  $region2: #{downsampling_forward.8} parent=0 // loop_pre_header
    _
  $region3: #{downsampling_forward.8} parent=0 // loop_header
    %s13 = sphi 0, %s17
    %p14 = scmp.ge.s32.totalorder %s13, 4
    %s20 = sphi 0, %s32
    %s21 = sphi 0, %s28
    %s22 = sphi 0, %s20
    %s23 = sphi 0, %s21
    %s24 = sphi 0, %s22
    %s25 = sphi 0, %s23
    %s35 = sphi 0, %s37
    %s38 = sphi 0, %s35
    %s39 = sphi 0, %s38
    %s55 = sphi 0, %s39
    %s59 = sphi 0, %s59
    %s61 = sphi 0, %s59
    %s62 = sphi 0, %s61
    %s76 = sphi 0, %s62
    %s80 = sphi 0, %s80
    %s82 = sphi 0, %s80
    %s83 = sphi 0, %s82
    %s97 = sphi 0, %s83
    %s101 = sphi 0, %s101
    %s103 = sphi 0, %s101
    %s104 = sphi 0, %s103
    %s118 = sphi 0, %s104
    %s126 = sphi 0, %s128
    %s129 = sphi 0, %s126
    %s130 = sphi 0, %s129
    %s146 = sphi 0, %s130
    %s152 = sphi 0, %s154
    %s155 = sphi 0, %s152
    %s156 = sphi 0, %s155
    %s172 = sphi 0, %s156
    %s178 = sphi 0, %s180
    %s181 = sphi 0, %s178
    %s182 = sphi 0, %s181
    %s198 = sphi 0, %s182
  $region4: #{downsampling_forward.8} parent=0 // loop_header_branch
    %16 = sbr.rel (%p14) target = $region8
  $region5: #{downsampling_forward.8} parent=0 // loop_body
    %s18 = ssub.s32 %s13, 1
    %s19 = ssub.s32 %s13, 2
    %s26 = sadd.s32 1, %s21
    %p27 = scmp.ge.s32.totalorder %s26, 1
    %s28 = scalar_select %p27, 0, %s26
    %s29 = sadd.s32 1, %s20
    %s30 = scalar_select %p27, %s29, %s20
    %p31 = scmp.ge.s32.totalorder %s30, 2
    %s32 = scalar_select %p31, 0, %s30
    %s33 = ssub.s32 %s20, %s32
    %p34 = scmp.eq.s32.totalorder %s33, 0
    %s36 = sadd.s32 %s35, 1
    %s37 = scalar_select %p34, %s35, %s36
    %p40 = pneg %p34
    %p41 = scmp.eq.s32.totalorder %s13, 1
    %p42 = por %p40, %p41
    %p43 = scmp.ne.s32.totalorder %s35, %s38
    %p44 = scmp.eq.s32.totalorder %s13, 0
    %p45 = por %p43, %p44
    %p46 = scmp.ne.s32.totalorder %s35, %s38
    %p47 = scmp.eq.s32.totalorder %s18, 1
    %p48 = por %p46, %p47
    %p49 = scmp.ne.s32.totalorder %s38, %s39
    %p50 = scmp.eq.s32.totalorder %s18, 0
    %p51 = por %p49, %p50
    %p52 = scmp.ne.s32.totalorder %s38, %s39
    %p53 = scmp.eq.s32.totalorder %s19, 1
    %p54 = por %p52, %p53
    %p56 = scmp.ne.s32.totalorder %s39, %s55
    %p57 = scmp.eq.s32.totalorder %s19, 0
    %p58 = por %p56, %p57
    %s60 = sadd.s32 %s59, 1
    %p63 = scmp.eq.s32.totalorder %s13, 1
    %p64 = scmp.ne.s32.totalorder %s59, %s61
    %p65 = scmp.eq.s32.totalorder %s13, 0
    %p66 = por %p64, %p65
    %p67 = scmp.ne.s32.totalorder %s59, %s61
    %p68 = scmp.eq.s32.totalorder %s18, 1
    %p69 = por %p67, %p68
    %p70 = scmp.ne.s32.totalorder %s61, %s62
    %p71 = scmp.eq.s32.totalorder %s18, 0
    %p72 = por %p70, %p71
    %p73 = scmp.ne.s32.totalorder %s61, %s62
    %p74 = scmp.eq.s32.totalorder %s19, 1
    %p75 = por %p73, %p74
    %p77 = scmp.ne.s32.totalorder %s62, %s76
    %p78 = scmp.eq.s32.totalorder %s19, 0
    %p79 = por %p77, %p78
    %s81 = sadd.s32 %s80, 1
    %p84 = scmp.eq.s32.totalorder %s13, 1
    %p85 = scmp.ne.s32.totalorder %s80, %s82
    %p86 = scmp.eq.s32.totalorder %s13, 0
    %p87 = por %p85, %p86
    %p88 = scmp.ne.s32.totalorder %s80, %s82
    %p89 = scmp.eq.s32.totalorder %s18, 1
    %p90 = por %p88, %p89
    %p91 = scmp.ne.s32.totalorder %s82, %s83
    %p92 = scmp.eq.s32.totalorder %s18, 0
    %p93 = por %p91, %p92
    %p94 = scmp.ne.s32.totalorder %s82, %s83
    %p95 = scmp.eq.s32.totalorder %s19, 1
    %p96 = por %p94, %p95
    %p98 = scmp.ne.s32.totalorder %s83, %s97
    %p99 = scmp.eq.s32.totalorder %s19, 0
    %p100 = por %p98, %p99
    %s102 = sadd.s32 %s101, 1
    %p105 = scmp.eq.s32.totalorder %s13, 1
    %p106 = scmp.ne.s32.totalorder %s101, %s103
    %p107 = scmp.eq.s32.totalorder %s13, 0
    %p108 = por %p106, %p107
    %p109 = scmp.ne.s32.totalorder %s101, %s103
    %p110 = scmp.eq.s32.totalorder %s18, 1
    %p111 = por %p109, %p110
    %p112 = scmp.ne.s32.totalorder %s103, %s104
    %p113 = scmp.eq.s32.totalorder %s18, 0
    %p114 = por %p112, %p113
    %p115 = scmp.ne.s32.totalorder %s103, %s104
    %p116 = scmp.eq.s32.totalorder %s19, 1
    %p117 = por %p115, %p116
    %p119 = scmp.ne.s32.totalorder %s104, %s118
    %p120 = scmp.eq.s32.totalorder %s19, 0
    %p121 = por %p119, %p120
    %s122 = ssub.s32 %s20, %s32
    %s123 = ssub.s32 %s21, %s28
    %s124 = sor.u32 %s122, %s123
    %p125 = scmp.eq.s32.totalorder %s124, 0
    %s127 = sadd.s32 %s126, 1
    %s128 = scalar_select %p125, %s126, %s127
    %p131 = pneg %p125
    %p132 = scmp.eq.s32.totalorder %s13, 1
    %p133 = por %p131, %p132
    %p134 = scmp.ne.s32.totalorder %s126, %s129
    %p135 = scmp.eq.s32.totalorder %s13, 0
    %p136 = por %p134, %p135
    %p137 = scmp.ne.s32.totalorder %s126, %s129
    %p138 = scmp.eq.s32.totalorder %s18, 1
    %p139 = por %p137, %p138
    %p140 = scmp.ne.s32.totalorder %s129, %s130
    %p141 = scmp.eq.s32.totalorder %s18, 0
    %p142 = por %p140, %p141
    %p143 = scmp.ne.s32.totalorder %s129, %s130
    %p144 = scmp.eq.s32.totalorder %s19, 1
    %p145 = por %p143, %p144
    %p147 = scmp.ne.s32.totalorder %s130, %s146
    %p148 = scmp.eq.s32.totalorder %s19, 0
    %p149 = por %p147, %p148
    %s150 = ssub.s32 %s20, %s32
    %p151 = scmp.eq.s32.totalorder %s150, 0
    %s153 = sadd.s32 %s152, 1
    %s154 = scalar_select %p151, %s152, %s153
    %p157 = pneg %p151
    %p158 = scmp.eq.s32.totalorder %s13, 1
    %p159 = por %p157, %p158
    %p160 = scmp.ne.s32.totalorder %s152, %s155
    %p161 = scmp.eq.s32.totalorder %s13, 0
    %p162 = por %p160, %p161
    %p163 = scmp.ne.s32.totalorder %s152, %s155
    %p164 = scmp.eq.s32.totalorder %s18, 1
    %p165 = por %p163, %p164
    %p166 = scmp.ne.s32.totalorder %s155, %s156
    %p167 = scmp.eq.s32.totalorder %s18, 0
    %p168 = por %p166, %p167
    %p169 = scmp.ne.s32.totalorder %s155, %s156
    %p170 = scmp.eq.s32.totalorder %s19, 1
    %p171 = por %p169, %p170
    %p173 = scmp.ne.s32.totalorder %s156, %s172
    %p174 = scmp.eq.s32.totalorder %s19, 0
    %p175 = por %p173, %p174
    %s176 = ssub.s32 %s20, %s32
    %p177 = scmp.eq.s32.totalorder %s176, 0
    %s179 = sadd.s32 %s178, 1
    %s180 = scalar_select %p177, %s178, %s179
    %p183 = pneg %p177
    %p184 = scmp.eq.s32.totalorder %s13, 1
    %p185 = por %p183, %p184
    %p186 = scmp.ne.s32.totalorder %s178, %s181
    %p187 = scmp.eq.s32.totalorder %s13, 0
    %p188 = por %p186, %p187
    %p189 = scmp.ne.s32.totalorder %s178, %s181
    %p190 = scmp.eq.s32.totalorder %s18, 1
    %p191 = por %p189, %p190
    %p192 = scmp.ne.s32.totalorder %s181, %s182
    %p193 = scmp.eq.s32.totalorder %s18, 0
    %p194 = por %p192, %p193
    %p195 = scmp.ne.s32.totalorder %s181, %s182
    %p196 = scmp.eq.s32.totalorder %s19, 1
    %p197 = por %p195, %p196
    %p199 = scmp.ne.s32.totalorder %s182, %s198
    %p200 = scmp.eq.s32.totalorder %s19, 0
    %p201 = por %p199, %p200
    %p202 = scmp.le.s32.totalorder 1, %s13
    %p203 = scmp.lt.s32.totalorder %s13, 3
    %p204 = pnand %p202, %p203
    %p205 = pneg %p204
    // Predicated region
    $region9: #{downsampling_forward.8} parent=5 // pred_check
      _
    $region10: #{downsampling_forward.8} parent=5 // pred_check_branch
      %207 = sbr.rel (%p204) target = $region12
    $region11: #{downsampling_forward.8} parent=5 // pred_region
      %s208 = ssub.s32 %s13, 1
      // Predicated region
      $region13: #{downsampling_forward.8} parent=11 // pred_check
        %p209 = pneg %p72
      $region14: #{downsampling_forward.8} parent=11 // pred_check_branch
        %211 = sbr.rel (%p209) target = $region16
      $region15: #{downsampling_forward.8} parent=11 // pred_region
        _
      $region16: #{downsampling_forward.8} parent=11 // pred_fallthru
        _
      // Predicated region
      $region17: #{downsampling_forward.8} parent=11 // pred_check
        %p212 = pneg %p93
      $region18: #{downsampling_forward.8} parent=11 // pred_check_branch
        %214 = sbr.rel (%p212) target = $region20
      $region19: #{downsampling_forward.8} parent=11 // pred_region
        _
      $region20: #{downsampling_forward.8} parent=11 // pred_fallthru
        _
      // Predicated region
      $region21: #{downsampling_forward.8} parent=11 // pred_check
        %p215 = pneg %p114
      $region22: #{downsampling_forward.8} parent=11 // pred_check_branch
        %217 = sbr.rel (%p215) target = $region24
      $region23: #{downsampling_forward.8} parent=11 // pred_region
        _
      $region24: #{downsampling_forward.8} parent=11 // pred_fallthru
        _
    $region12: #{downsampling_forward.8} parent=5 // pred_fallthru
      _
    %p218 = scmp.lt.s32.totalorder %s13, 2
    // Predicated region
    $region25: #{downsampling_forward.8} parent=5 // pred_check
      %p219 = pneg %p218
    $region26: #{downsampling_forward.8} parent=5 // pred_check_branch
      %221 = sbr.rel (%p219) target = $region28
    $region27: #{downsampling_forward.8} parent=5 // pred_region
      // Predicated region
      $region29: #{downsampling_forward.8} parent=27 // pred_check
        %p222 = pneg %p45
      $region30: #{downsampling_forward.8} parent=27 // pred_check_branch
        %224 = sbr.rel (%p222) target = $region32
      $region31: #{downsampling_forward.8} parent=27 // pred_region
        %p225 = scmp.lt.s32.totalorder %s20, 1
        %s226 = scalar_select %p225, %s20, 1
        %s227 = smul.addr %s226, 20
        %s228 = smul.addr %s227, 4
        %s229 = scalar_lea.vmem %s0, %s228
      $region32: #{downsampling_forward.8} parent=27 // pred_fallthru
        _
    $region28: #{downsampling_forward.8} parent=5 // pred_fallthru
      _
    %p230 = scmp.le.s32.totalorder 1, %s13
    %p231 = scmp.lt.s32.totalorder %s13, 3
    %p232 = pnand %p230, %p231
    %p233 = pneg %p232
    // Predicated region
    $region33: #{downsampling_forward.8} parent=5 // pred_check
      _
    $region34: #{downsampling_forward.8} parent=5 // pred_check_branch
      %235 = sbr.rel (%p232) target = $region36
    $region35: #{downsampling_forward.8} parent=5 // pred_region
      %s236 = ssub.s32 %s13, 1
      %p237 = scmp.lt.s32.totalorder %s22, 1
      %s238 = scalar_select %p237, %s22, 1
      %s239 = smul.addr %s238, 20
      %s240 = smul.addr %s239, 4
      %s241 = scalar_lea.vmem %s0, %s240
      %p242 = pneg %p51
      %p243 = pneg %p48
      %p244 = pneg %p72
      %p245 = pneg %p69
      %p246 = pneg %p93
      %p247 = pneg %p90
      %p248 = pneg %p114
      %p249 = pneg %p111
      %p250 = pneg %p142
      %p251 = pneg %p139
      %s252 = smul.u32 8, %s23
      %p253 = scmp.lt.s32.totalorder %s22, 1
      %s254 = scalar_select %p253, %s22, 1
      %p255 = scmp.lt.s32.totalorder %s252, 7
      %s256 = scalar_select %p255, %s252, 7
      %s257 = smul.addr %s254, 8
      %s258 = sadd.s32 %s256, %s257
      %s259 = smul.addr %s258, 4
      %s260 = scalar_lea.vmem %s4, %s259
      %p261 = pneg %p168
      %p262 = pneg %p165
      %p263 = scmp.lt.s32.totalorder %s22, 1
      %s264 = scalar_select %p263, %s22, 1
      %s265 = scalar_lea.vmem %s5, %s264
      %p266 = pneg %p194
      %p267 = pneg %p191
      %p268 = scmp.lt.s32.totalorder %s22, 1
      %s269 = scalar_select %p268, %s22, 1
      %s270 = scalar_lea.vmem %s6, %s269
      %p271 = scmp.lt.s32.totalorder %s22, 1
      %s272 = scalar_select %p271, %s22, 1
      %s273 = smul.addr %s272, 20
      %s274 = smul.addr %s273, 4
      %s275 = scalar_lea.vmem %s0, %s274
      %s276 = smul.u32 8, %s23
      %p277 = scmp.lt.s32.totalorder %s22, 1
      %s278 = scalar_select %p277, %s22, 1
      %p279 = scmp.lt.s32.totalorder %s276, 7
      %s280 = scalar_select %p279, %s276, 7
      %s281 = smul.addr %s278, 8
      %s282 = sadd.s32 %s280, %s281
      %s283 = smul.addr %s282, 4
      %s284 = scalar_lea.vmem %s4, %s283
      %s285 = smul.u32 8, %s23
      %p286 = scmp.lt.s32.totalorder %s22, 1
      %s287 = scalar_select %p286, %s22, 1
      %s288 = scalar_lea.vmem %s5, %s287
      %p289 = scmp.lt.s32.totalorder %s22, 1
      %s290 = scalar_select %p289, %s22, 1
      %s291 = scalar_lea.vmem %s6, %s290
      %p293 = scmp.eq.s32.totalorder %s23, 0
      // Predicated region
      $region37: #{downsampling_forward.8} parent=35 // pred_check
        %p294 = pneg %p293
      $region38: #{downsampling_forward.8} parent=35 // pred_check_branch
        %296 = sbr.rel (%p294) target = $region40
      $region39: #{downsampling_forward.8} parent=35 // pred_region
        %vm297 = vcmask 57344
        %298 = vst.msk [vmem:[%s288] sm:$0x1] %vm297, 0.0
        %299 = vst.msk [vmem:[%s291] sm:$0x1] %vm297, 0.0
      $region40: #{downsampling_forward.8} parent=35 // pred_fallthru
        _
      %s300 = smul.u32 %s23, 8
      %s301 = smul.u32 %s300, 2
      %s302 = smul.addr %s301, 4
      %s303 = scalar_lea.vmem %s275, %s302
      %v304 = vld [vmem:[%s303] sm:$0xf]
      %v305 = vld [vmem:[%s303 + $0x4] sm:$0x1]
      %v306 = vld [vmem:[%s303 + $0x8] sm:$0xf]
      %v307 = vld [vmem:[%s303 + $0xc] sm:$0x1]
      %v308 = vld [vmem:[%s303 + $0x10] sm:$0xf]
      %v309 = vld [vmem:[%s303 + $0x14] sm:$0x1]
      %v310 = vld [vmem:[%s303 + $0x18] sm:$0xf]
      %v311 = vld [vmem:[%s303 + $0x1c] sm:$0x1]
      %v312 = vld [vmem:[%s303 + $0x20] sm:$0xf]
      %v313 = vld [vmem:[%s303 + $0x24] sm:$0x1]
      %v314 = vld [vmem:[%s303 + $0x28] sm:$0xf]
      %v315 = vld [vmem:[%s303 + $0x2c] sm:$0x1]
      %v316 = vld [vmem:[%s303 + $0x30] sm:$0xf]
      %v317 = vld [vmem:[%s303 + $0x34] sm:$0x1]
      %v318 = vld [vmem:[%s303 + $0x38] sm:$0xf]
      %v319 = vld [vmem:[%s303 + $0x3c] sm:$0x1]
      %v320 = vld [vmem:[%s303 + $0x40] sm:$0xf]
      %v321 = vld [vmem:[%s303 + $0x44] sm:$0x1]
      %v322 = vld [vmem:[%s303 + $0x48] sm:$0xf]
      %v323 = vld [vmem:[%s303 + $0x4c] sm:$0x1]
      %v324 = vunpack.c.l.bf16 %v304
      %v325 = vunpack.c.l.bf16 %v305
      %v326 = vunpack.c.l.bf16 %v306
      %v327 = vunpack.c.l.bf16 %v307
      %v328 = vunpack.c.l.bf16 %v308
      %v329 = vunpack.c.l.bf16 %v309
      %v330 = vunpack.c.l.bf16 %v310
      %v331 = vunpack.c.l.bf16 %v311
      %v332 = vunpack.c.l.bf16 %v312
      %v333 = vunpack.c.l.bf16 %v313
      %v334 = vunpack.c.l.bf16 %v314
      %v335 = vunpack.c.l.bf16 %v315
      %v336 = vunpack.c.l.bf16 %v316
      %v337 = vunpack.c.l.bf16 %v317
      %v338 = vunpack.c.l.bf16 %v318
      %v339 = vunpack.c.l.bf16 %v319
      %v340 = vunpack.c.l.bf16 %v320
      %v341 = vunpack.c.l.bf16 %v321
      %v342 = vunpack.c.l.bf16 %v322
      %v343 = vunpack.c.l.bf16 %v323
      %v344 = vld [vmem:[%s1] sm:$0x1]
      %v346 = vperm.slane %v344, 0
      %v348 = vmul.f32 %v324, %v346
      %v349 = vmul.f32 %v325, %v346
      %v350 = vmul.f32 %v326, %v346
      %v351 = vmul.f32 %v327, %v346
      %v352 = vmul.f32 %v328, %v346
      %v353 = vmul.f32 %v329, %v346
      %v354 = vmul.f32 %v330, %v346
      %v355 = vmul.f32 %v331, %v346
      %v356 = vmul.f32 %v332, %v346
      %v357 = vmul.f32 %v333, %v346
      %v358 = vmul.f32 %v334, %v346
      %v359 = vmul.f32 %v335, %v346
      %v360 = vmul.f32 %v336, %v346
      %v361 = vmul.f32 %v337, %v346
      %v362 = vmul.f32 %v338, %v346
      %v363 = vmul.f32 %v339, %v346
      %v364 = vmul.f32 %v340, %v346
      %v365 = vmul.f32 %v341, %v346
      %v366 = vmul.f32 %v342, %v346
      %v367 = vmul.f32 %v343, %v346
      %v368 = vld [vmem:[%s2] sm:$0x1]
      %v370 = vperm.slane %v368, 0
      %v372 = vadd.f32 %v348, %v370
      %v373 = vadd.f32 %v349, %v370
      %v374 = vadd.f32 %v350, %v370
      %v375 = vadd.f32 %v351, %v370
      %v376 = vadd.f32 %v352, %v370
      %v377 = vadd.f32 %v353, %v370
      %v378 = vadd.f32 %v354, %v370
      %v379 = vadd.f32 %v355, %v370
      %v380 = vadd.f32 %v356, %v370
      %v381 = vadd.f32 %v357, %v370
      %v382 = vadd.f32 %v358, %v370
      %v383 = vadd.f32 %v359, %v370
      %v384 = vadd.f32 %v360, %v370
      %v385 = vadd.f32 %v361, %v370
      %v386 = vadd.f32 %v362, %v370
      %v387 = vadd.f32 %v363, %v370
      %v388 = vadd.f32 %v364, %v370
      %v389 = vadd.f32 %v365, %v370
      %v390 = vadd.f32 %v366, %v370
      %v391 = vadd.f32 %v367, %v370
      %v392 = vmax.f32 %v372, 0.0
      %v393 = vmax.f32 %v373, 0.0
      %v394 = vmax.f32 %v374, 0.0
      %v395 = vmax.f32 %v375, 0.0
      %v396 = vmax.f32 %v376, 0.0
      %v397 = vmax.f32 %v377, 0.0
      %v398 = vmax.f32 %v378, 0.0
      %v399 = vmax.f32 %v379, 0.0
      %v400 = vmax.f32 %v380, 0.0
      %v401 = vmax.f32 %v381, 0.0
      %v402 = vmax.f32 %v382, 0.0
      %v403 = vmax.f32 %v383, 0.0
      %v404 = vmax.f32 %v384, 0.0
      %v405 = vmax.f32 %v385, 0.0
      %v406 = vmax.f32 %v386, 0.0
      %v407 = vmax.f32 %v387, 0.0
      %v408 = vmax.f32 %v388, 0.0
      %v409 = vmax.f32 %v389, 0.0
      %v410 = vmax.f32 %v390, 0.0
      %v411 = vmax.f32 %v391, 0.0
      %v412 = vstv %s300
      %v413 = vadd.s32 %v412, 1
      %v414 = vadd.s32 %v412, 2
      %v415 = vadd.s32 %v412, 3
      %v416 = vadd.s32 %v412, 4
      %v417 = vadd.s32 %v412, 5
      %v418 = vadd.s32 %v412, 6
      %v419 = vadd.s32 %v412, 7
      %v420 = vadd.s32 %v412, 8
      %v421 = vadd.s32 %v412, 9
      %v422 = vlaneseq
      %v423 = vshrl.u32 %v422, 7
      %v424 = vadd.s32 %v423, 8
      %vm425 = vcmp.ge.s32.totalorder %v412, 1
      %vm426 = vcmp.ge.s32.totalorder %v413, 1
      %vm427 = vcmp.ge.s32.totalorder %v414, 1
      %vm428 = vcmp.ge.s32.totalorder %v415, 1
      %vm429 = vcmp.ge.s32.totalorder %v416, 1
      %vm430 = vcmp.ge.s32.totalorder %v417, 1
      %vm431 = vcmp.ge.s32.totalorder %v418, 1
      %vm432 = vcmp.ge.s32.totalorder %v419, 1
      %vm433 = vcmp.ge.s32.totalorder %v420, 1
      %vm434 = vcmp.ge.s32.totalorder %v421, 1
      %vm435 = vcmp.le.s32.totalorder %v412, 8
      %vm436 = vcmp.le.s32.totalorder %v413, 8
      %vm437 = vcmp.le.s32.totalorder %v414, 8
      %vm438 = vcmp.le.s32.totalorder %v415, 8
      %vm439 = vcmp.le.s32.totalorder %v416, 8
      %vm440 = vcmp.le.s32.totalorder %v417, 8
      %vm441 = vcmp.le.s32.totalorder %v418, 8
      %vm442 = vcmp.le.s32.totalorder %v419, 8
      %vm443 = vcmp.le.s32.totalorder %v420, 8
      %vm444 = vcmp.le.s32.totalorder %v421, 8
      %vm445 = vmand %vm425, %vm435
      %vm446 = vmand %vm426, %vm436
      %vm447 = vmand %vm427, %vm437
      %vm448 = vmand %vm428, %vm438
      %vm449 = vmand %vm429, %vm439
      %vm450 = vmand %vm430, %vm440
      %vm451 = vmand %vm431, %vm441
      %vm452 = vmand %vm432, %vm442
      %vm453 = vmand %vm433, %vm443
      %vm454 = vmand %vm434, %vm444
      %vm455 = vcmp.ge.s32.totalorder %v423, 1
      %vm456 = vcmp.ge.s32.totalorder %v424, 1
      %vm457 = vmand %vm445, %vm455
      %vm458 = vmand %vm445, %vm456
      %vm459 = vmand %vm446, %vm455
      %vm460 = vmand %vm446, %vm456
      %vm461 = vmand %vm447, %vm455
      %vm462 = vmand %vm447, %vm456
      %vm463 = vmand %vm448, %vm455
      %vm464 = vmand %vm448, %vm456
      %vm465 = vmand %vm449, %vm455
      %vm466 = vmand %vm449, %vm456
      %vm467 = vmand %vm450, %vm455
      %vm468 = vmand %vm450, %vm456
      %vm469 = vmand %vm451, %vm455
      %vm470 = vmand %vm451, %vm456
      %vm471 = vmand %vm452, %vm455
      %vm472 = vmand %vm452, %vm456
      %vm473 = vmand %vm453, %vm455
      %vm474 = vmand %vm453, %vm456
      %vm475 = vmand %vm454, %vm455
      %vm476 = vmand %vm454, %vm456
      %vm477 = vcmp.le.s32.totalorder %v423, 8
      %vm478 = vcmp.le.s32.totalorder %v424, 8
      %vm479 = vmand %vm457, %vm477
      %vm480 = vmand %vm458, %vm478
      %vm481 = vmand %vm459, %vm477
      %vm482 = vmand %vm460, %vm478
      %vm483 = vmand %vm461, %vm477
      %vm484 = vmand %vm462, %vm478
      %vm485 = vmand %vm463, %vm477
      %vm486 = vmand %vm464, %vm478
      %vm487 = vmand %vm465, %vm477
      %vm488 = vmand %vm466, %vm478
      %vm489 = vmand %vm467, %vm477
      %vm490 = vmand %vm468, %vm478
      %vm491 = vmand %vm469, %vm477
      %vm492 = vmand %vm470, %vm478
      %vm493 = vmand %vm471, %vm477
      %vm494 = vmand %vm472, %vm478
      %vm495 = vmand %vm473, %vm477
      %vm496 = vmand %vm474, %vm478
      %vm497 = vmand %vm475, %vm477
      %vm498 = vmand %vm476, %vm478
      %v499 = vsel %vm479, 1, 0
      %v500 = vsel %vm480, 1, 0
      %v501 = vsel %vm481, 1, 0
      %v502 = vsel %vm482, 1, 0
      %v503 = vsel %vm483, 1, 0
      %v504 = vsel %vm484, 1, 0
      %v505 = vsel %vm485, 1, 0
      %v506 = vsel %vm486, 1, 0
      %v507 = vsel %vm487, 1, 0
      %v508 = vsel %vm488, 1, 0
      %v509 = vsel %vm489, 1, 0
      %v510 = vsel %vm490, 1, 0
      %v511 = vsel %vm491, 1, 0
      %v512 = vsel %vm492, 1, 0
      %v513 = vsel %vm493, 1, 0
      %v514 = vsel %vm494, 1, 0
      %v515 = vsel %vm495, 1, 0
      %v516 = vsel %vm496, 1, 0
      %v517 = vsel %vm497, 1, 0
      %v518 = vsel %vm498, 1, 0
      %vm519 = vcmp.eq.s32.totalorder %v499, 1
      %vm520 = vcmp.eq.s32.totalorder %v500, 1
      %vm521 = vcmp.eq.s32.totalorder %v501, 1
      %vm522 = vcmp.eq.s32.totalorder %v502, 1
      %vm523 = vcmp.eq.s32.totalorder %v503, 1
      %vm524 = vcmp.eq.s32.totalorder %v504, 1
      %vm525 = vcmp.eq.s32.totalorder %v505, 1
      %vm526 = vcmp.eq.s32.totalorder %v506, 1
      %vm527 = vcmp.eq.s32.totalorder %v507, 1
      %vm528 = vcmp.eq.s32.totalorder %v508, 1
      %vm529 = vcmp.eq.s32.totalorder %v509, 1
      %vm530 = vcmp.eq.s32.totalorder %v510, 1
      %vm531 = vcmp.eq.s32.totalorder %v511, 1
      %vm532 = vcmp.eq.s32.totalorder %v512, 1
      %vm533 = vcmp.eq.s32.totalorder %v513, 1
      %vm534 = vcmp.eq.s32.totalorder %v514, 1
      %vm535 = vcmp.eq.s32.totalorder %v515, 1
      %vm536 = vcmp.eq.s32.totalorder %v516, 1
      %vm537 = vcmp.eq.s32.totalorder %v517, 1
      %vm538 = vcmp.eq.s32.totalorder %v518, 1
      %v539 = vsel %vm519, %v392, 0.0
      %v540 = vsel %vm520, %v393, 0.0
      %v541 = vsel %vm521, %v394, 0.0
      %v542 = vsel %vm522, %v395, 0.0
      %v543 = vsel %vm523, %v396, 0.0
      %v544 = vsel %vm524, %v397, 0.0
      %v545 = vsel %vm525, %v398, 0.0
      %v546 = vsel %vm526, %v399, 0.0
      %v547 = vsel %vm527, %v400, 0.0
      %v548 = vsel %vm528, %v401, 0.0
      %v549 = vsel %vm529, %v402, 0.0
      %v550 = vsel %vm530, %v403, 0.0
      %v551 = vsel %vm531, %v404, 0.0
      %v552 = vsel %vm532, %v405, 0.0
      %v553 = vsel %vm533, %v406, 0.0
      %v554 = vsel %vm534, %v407, 0.0
      %v555 = vsel %vm535, %v408, 0.0
      %v556 = vsel %vm536, %v409, 0.0
      %v557 = vsel %vm537, %v410, 0.0
      %v558 = vsel %vm538, %v411, 0.0
      %v559 = vpack.c.bf16 %v539, %v539
      %v560 = vpack.c.bf16 %v541, %v541
      %v561 = vpack.c.bf16 %v543, %v543
      %v562 = vpack.c.bf16 %v545, %v545
      %v563 = vpack.c.bf16 %v547, %v547
      %v564 = vpack.c.bf16 %v549, %v549
      %v565 = vpack.c.bf16 %v551, %v551
      %v566 = vpack.c.bf16 %v553, %v553
      %vm567 = vcmask 60416
      %568 = vst.msk [vmem:[#allocation2] sm:$0xf] %vm567, %v559
      %569 = vst.msk [vmem:[#allocation2 + $0x4] sm:$0xf] %vm567, %v560
      %570 = vst.msk [vmem:[#allocation2 + $0x8] sm:$0xf] %vm567, %v561
      %571 = vst.msk [vmem:[#allocation2 + $0xc] sm:$0xf] %vm567, %v562
      %572 = vst.msk [vmem:[#allocation2 + $0x10] sm:$0xf] %vm567, %v563
      %573 = vst.msk [vmem:[#allocation2 + $0x14] sm:$0xf] %vm567, %v564
      %574 = vst.msk [vmem:[#allocation2 + $0x18] sm:$0xf] %vm567, %v565
      %575 = vst.msk [vmem:[#allocation2 + $0x1c] sm:$0xf] %vm567, %v566
      %vm592 = vcmask 1046528
      %v593 = vrot.slane %v539, 1
      %v594 = vrot.slane %v540, 1
      %v595 = vsel %vm592, %v593, %v594
      %v596 = vrot.slane %v541, 1
      %v597 = vrot.slane %v542, 1
      %v598 = vsel %vm592, %v596, %v597
      %v599 = vrot.slane %v543, 1
      %v600 = vrot.slane %v544, 1
      %v601 = vsel %vm592, %v599, %v600
      %v602 = vrot.slane %v545, 1
      %v603 = vrot.slane %v546, 1
      %v604 = vsel %vm592, %v602, %v603
      %v605 = vrot.slane %v547, 1
      %v606 = vrot.slane %v548, 1
      %v607 = vsel %vm592, %v605, %v606
      %v608 = vrot.slane %v549, 1
      %v609 = vrot.slane %v550, 1
      %v610 = vsel %vm592, %v608, %v609
      %v611 = vrot.slane %v551, 1
      %v612 = vrot.slane %v552, 1
      %v613 = vsel %vm592, %v611, %v612
      %v614 = vrot.slane %v553, 1
      %v615 = vrot.slane %v554, 1
      %v616 = vsel %vm592, %v614, %v615
      %v625 = vpack.c.bf16 %v595, %v595
      %v626 = vpack.c.bf16 %v598, %v598
      %v627 = vpack.c.bf16 %v601, %v601
      %v628 = vpack.c.bf16 %v604, %v604
      %v629 = vpack.c.bf16 %v607, %v607
      %v630 = vpack.c.bf16 %v610, %v610
      %v631 = vpack.c.bf16 %v613, %v613
      %v632 = vpack.c.bf16 %v616, %v616
      %641 = vrot.lane.b32.xlu0 %v625, 8
      %v642 = vpop.permute.xlu0 %641
      %643 = vrot.lane.b32.xlu0 %v626, 8
      %v644 = vpop.permute.xlu0 %643
      %645 = vrot.lane.b32.xlu0 %v627, 8
      %v646 = vpop.permute.xlu0 %645
      %647 = vrot.lane.b32.xlu0 %v628, 8
      %v648 = vpop.permute.xlu0 %647
      %649 = vrot.lane.b32.xlu0 %v629, 8
      %v650 = vpop.permute.xlu0 %649
      %651 = vrot.lane.b32.xlu0 %v630, 8
      %v652 = vpop.permute.xlu0 %651
      %653 = vrot.lane.b32.xlu0 %v631, 8
      %v654 = vpop.permute.xlu0 %653
      %655 = vrot.lane.b32.xlu0 %v632, 8
      %v656 = vpop.permute.xlu0 %655
      %vm665 = vcmask 126016
      %666 = vst.msk [vmem:[#allocation2] sm:$0xf] %vm665, %v642
      %667 = vst.msk [vmem:[#allocation2 + $0x4] sm:$0xf] %vm665, %v644
      %668 = vst.msk [vmem:[#allocation2 + $0x8] sm:$0xf] %vm665, %v646
      %669 = vst.msk [vmem:[#allocation2 + $0xc] sm:$0xf] %vm665, %v648
      %670 = vst.msk [vmem:[#allocation2 + $0x10] sm:$0xf] %vm665, %v650
      %671 = vst.msk [vmem:[#allocation2 + $0x14] sm:$0xf] %vm665, %v652
      %672 = vst.msk [vmem:[#allocation2 + $0x18] sm:$0xf] %vm665, %v654
      %673 = vst.msk [vmem:[#allocation2 + $0x1c] sm:$0xf] %vm665, %v656
      %vm674 = vcmask 1045504
      %v675 = vrot.slane %v539, 2
      %v676 = vrot.slane %v540, 2
      %v677 = vsel %vm674, %v675, %v676
      %v678 = vrot.slane %v541, 2
      %v679 = vrot.slane %v542, 2
      %v680 = vsel %vm674, %v678, %v679
      %v681 = vrot.slane %v543, 2
      %v682 = vrot.slane %v544, 2
      %v683 = vsel %vm674, %v681, %v682
      %v684 = vrot.slane %v545, 2
      %v685 = vrot.slane %v546, 2
      %v686 = vsel %vm674, %v684, %v685
      %v687 = vrot.slane %v547, 2
      %v688 = vrot.slane %v548, 2
      %v689 = vsel %vm674, %v687, %v688
      %v690 = vrot.slane %v549, 2
      %v691 = vrot.slane %v550, 2
      %v692 = vsel %vm674, %v690, %v691
      %v693 = vrot.slane %v551, 2
      %v694 = vrot.slane %v552, 2
      %v695 = vsel %vm674, %v693, %v694
      %v696 = vrot.slane %v553, 2
      %v697 = vrot.slane %v554, 2
      %v698 = vsel %vm674, %v696, %v697
      %v707 = vpack.c.bf16 %v677, %v677
      %v708 = vpack.c.bf16 %v680, %v680
      %v709 = vpack.c.bf16 %v683, %v683
      %v710 = vpack.c.bf16 %v686, %v686
      %v711 = vpack.c.bf16 %v689, %v689
      %v712 = vpack.c.bf16 %v692, %v692
      %v713 = vpack.c.bf16 %v695, %v695
      %v714 = vpack.c.bf16 %v698, %v698
      %723 = vrot.lane.b32.xlu0 %v707, 16
      %v724 = vpop.permute.xlu0 %723
      %725 = vrot.lane.b32.xlu0 %v708, 16
      %v726 = vpop.permute.xlu0 %725
      %727 = vrot.lane.b32.xlu0 %v709, 16
      %v728 = vpop.permute.xlu0 %727
      %729 = vrot.lane.b32.xlu0 %v710, 16
      %v730 = vpop.permute.xlu0 %729
      %731 = vrot.lane.b32.xlu0 %v711, 16
      %v732 = vpop.permute.xlu0 %731
      %733 = vrot.lane.b32.xlu0 %v712, 16
      %v734 = vpop.permute.xlu0 %733
      %735 = vrot.lane.b32.xlu0 %v713, 16
      %v736 = vpop.permute.xlu0 %735
      %737 = vrot.lane.b32.xlu0 %v714, 16
      %v738 = vpop.permute.xlu0 %737
      %vm747 = vcmask 191616
      %748 = vst.msk [vmem:[#allocation2] sm:$0xf] %vm747, %v724
      %749 = vst.msk [vmem:[#allocation2 + $0x4] sm:$0xf] %vm747, %v726
      %750 = vst.msk [vmem:[#allocation2 + $0x8] sm:$0xf] %vm747, %v728
      %751 = vst.msk [vmem:[#allocation2 + $0xc] sm:$0xf] %vm747, %v730
      %752 = vst.msk [vmem:[#allocation2 + $0x10] sm:$0xf] %vm747, %v732
      %753 = vst.msk [vmem:[#allocation2 + $0x14] sm:$0xf] %vm747, %v734
      %754 = vst.msk [vmem:[#allocation2 + $0x18] sm:$0xf] %vm747, %v736
      %755 = vst.msk [vmem:[#allocation2 + $0x1c] sm:$0xf] %vm747, %v738
      %v756 = vpack.c.bf16 %v555, %v555
      %765 = vrot.lane.b32.xlu0 %v560, 24
      %v766 = vpop.permute.xlu0 %765
      %767 = vrot.lane.b32.xlu0 %v561, 24
      %v768 = vpop.permute.xlu0 %767
      %769 = vrot.lane.b32.xlu0 %v562, 24
      %v770 = vpop.permute.xlu0 %769
      %771 = vrot.lane.b32.xlu0 %v563, 24
      %v772 = vpop.permute.xlu0 %771
      %773 = vrot.lane.b32.xlu0 %v564, 24
      %v774 = vpop.permute.xlu0 %773
      %775 = vrot.lane.b32.xlu0 %v565, 24
      %v776 = vpop.permute.xlu0 %775
      %777 = vrot.lane.b32.xlu0 %v566, 24
      %v778 = vpop.permute.xlu0 %777
      %779 = vrot.lane.b32.xlu0 %v756, 24
      %v780 = vpop.permute.xlu0 %779
      %vm789 = vcmask 257216
      %790 = vst.msk [vmem:[#allocation2] sm:$0xf] %vm789, %v766
      %791 = vst.msk [vmem:[#allocation2 + $0x4] sm:$0xf] %vm789, %v768
      %792 = vst.msk [vmem:[#allocation2 + $0x8] sm:$0xf] %vm789, %v770
      %793 = vst.msk [vmem:[#allocation2 + $0xc] sm:$0xf] %vm789, %v772
      %794 = vst.msk [vmem:[#allocation2 + $0x10] sm:$0xf] %vm789, %v774
      %795 = vst.msk [vmem:[#allocation2 + $0x14] sm:$0xf] %vm789, %v776
      %796 = vst.msk [vmem:[#allocation2 + $0x18] sm:$0xf] %vm789, %v778
      %797 = vst.msk [vmem:[#allocation2 + $0x1c] sm:$0xf] %vm789, %v780
      %v800 = vrot.slane %v555, 1
      %v801 = vrot.slane %v556, 1
      %v802 = vsel %vm592, %v800, %v801
      %v804 = vpack.c.bf16 %v802, %v802
      %806 = vrot.lane.b32.xlu0 %v626, 32
      %v807 = vpop.permute.xlu0 %806
      %808 = vrot.lane.b32.xlu0 %v627, 32
      %v809 = vpop.permute.xlu0 %808
      %810 = vrot.lane.b32.xlu0 %v628, 32
      %v811 = vpop.permute.xlu0 %810
      %812 = vrot.lane.b32.xlu0 %v629, 32
      %v813 = vpop.permute.xlu0 %812
      %814 = vrot.lane.b32.xlu0 %v630, 32
      %v815 = vpop.permute.xlu0 %814
      %816 = vrot.lane.b32.xlu0 %v631, 32
      %v817 = vpop.permute.xlu0 %816
      %818 = vrot.lane.b32.xlu0 %v632, 32
      %v819 = vpop.permute.xlu0 %818
      %820 = vrot.lane.b32.xlu0 %v804, 32
      %v821 = vpop.permute.xlu0 %820
      %vm830 = vcmask 322816
      %831 = vst.msk [vmem:[#allocation2] sm:$0xf] %vm830, %v807
      %832 = vst.msk [vmem:[#allocation2 + $0x4] sm:$0xf] %vm830, %v809
      %833 = vst.msk [vmem:[#allocation2 + $0x8] sm:$0xf] %vm830, %v811
      %834 = vst.msk [vmem:[#allocation2 + $0xc] sm:$0xf] %vm830, %v813
      %835 = vst.msk [vmem:[#allocation2 + $0x10] sm:$0xf] %vm830, %v815
      %836 = vst.msk [vmem:[#allocation2 + $0x14] sm:$0xf] %vm830, %v817
      %837 = vst.msk [vmem:[#allocation2 + $0x18] sm:$0xf] %vm830, %v819
      %838 = vst.msk [vmem:[#allocation2 + $0x1c] sm:$0xf] %vm830, %v821
      %v839 = vrot.slane %v555, 2
      %v840 = vrot.slane %v556, 2
      %v841 = vsel %vm674, %v839, %v840
      %v843 = vpack.c.bf16 %v841, %v841
      %845 = vrot.lane.b32.xlu0 %v708, 40
      %v846 = vpop.permute.xlu0 %845
      %847 = vrot.lane.b32.xlu0 %v709, 40
      %v848 = vpop.permute.xlu0 %847
      %849 = vrot.lane.b32.xlu0 %v710, 40
      %v850 = vpop.permute.xlu0 %849
      %851 = vrot.lane.b32.xlu0 %v711, 40
      %v852 = vpop.permute.xlu0 %851
      %853 = vrot.lane.b32.xlu0 %v712, 40
      %v854 = vpop.permute.xlu0 %853
      %855 = vrot.lane.b32.xlu0 %v713, 40
      %v856 = vpop.permute.xlu0 %855
      %857 = vrot.lane.b32.xlu0 %v714, 40
      %v858 = vpop.permute.xlu0 %857
      %859 = vrot.lane.b32.xlu0 %v843, 40
      %v860 = vpop.permute.xlu0 %859
      %vm869 = vcmask 388416
      %870 = vst.msk [vmem:[#allocation2] sm:$0xf] %vm869, %v846
      %871 = vst.msk [vmem:[#allocation2 + $0x4] sm:$0xf] %vm869, %v848
      %872 = vst.msk [vmem:[#allocation2 + $0x8] sm:$0xf] %vm869, %v850
      %873 = vst.msk [vmem:[#allocation2 + $0xc] sm:$0xf] %vm869, %v852
      %874 = vst.msk [vmem:[#allocation2 + $0x10] sm:$0xf] %vm869, %v854
      %875 = vst.msk [vmem:[#allocation2 + $0x14] sm:$0xf] %vm869, %v856
      %876 = vst.msk [vmem:[#allocation2 + $0x18] sm:$0xf] %vm869, %v858
      %877 = vst.msk [vmem:[#allocation2 + $0x1c] sm:$0xf] %vm869, %v860
      %v878 = vpack.c.bf16 %v557, %v557
      %880 = vrot.lane.b32.xlu0 %v561, 48
      %v881 = vpop.permute.xlu0 %880
      %882 = vrot.lane.b32.xlu0 %v562, 48
      %v883 = vpop.permute.xlu0 %882
      %884 = vrot.lane.b32.xlu0 %v563, 48
      %v885 = vpop.permute.xlu0 %884
      %886 = vrot.lane.b32.xlu0 %v564, 48
      %v887 = vpop.permute.xlu0 %886
      %888 = vrot.lane.b32.xlu0 %v565, 48
      %v889 = vpop.permute.xlu0 %888
      %890 = vrot.lane.b32.xlu0 %v566, 48
      %v891 = vpop.permute.xlu0 %890
      %892 = vrot.lane.b32.xlu0 %v756, 48
      %v893 = vpop.permute.xlu0 %892
      %894 = vrot.lane.b32.xlu0 %v878, 48
      %v895 = vpop.permute.xlu0 %894
      %vm904 = vcmask 454016
      %905 = vst.msk [vmem:[#allocation2] sm:$0xf] %vm904, %v881
      %906 = vst.msk [vmem:[#allocation2 + $0x4] sm:$0xf] %vm904, %v883
      %907 = vst.msk [vmem:[#allocation2 + $0x8] sm:$0xf] %vm904, %v885
      %908 = vst.msk [vmem:[#allocation2 + $0xc] sm:$0xf] %vm904, %v887
      %909 = vst.msk [vmem:[#allocation2 + $0x10] sm:$0xf] %vm904, %v889
      %910 = vst.msk [vmem:[#allocation2 + $0x14] sm:$0xf] %vm904, %v891
      %911 = vst.msk [vmem:[#allocation2 + $0x18] sm:$0xf] %vm904, %v893
      %912 = vst.msk [vmem:[#allocation2 + $0x1c] sm:$0xf] %vm904, %v895
      %v915 = vrot.slane %v557, 1
      %v916 = vrot.slane %v558, 1
      %v917 = vsel %vm592, %v915, %v916
      %v919 = vpack.c.bf16 %v917, %v917
      %921 = vrot.lane.b32.xlu0 %v627, 56
      %v922 = vpop.permute.xlu0 %921
      %923 = vrot.lane.b32.xlu0 %v628, 56
      %v924 = vpop.permute.xlu0 %923
      %925 = vrot.lane.b32.xlu0 %v629, 56
      %v926 = vpop.permute.xlu0 %925
      %927 = vrot.lane.b32.xlu0 %v630, 56
      %v928 = vpop.permute.xlu0 %927
      %929 = vrot.lane.b32.xlu0 %v631, 56
      %v930 = vpop.permute.xlu0 %929
      %931 = vrot.lane.b32.xlu0 %v632, 56
      %v932 = vpop.permute.xlu0 %931
      %933 = vrot.lane.b32.xlu0 %v804, 56
      %v934 = vpop.permute.xlu0 %933
      %935 = vrot.lane.b32.xlu0 %v919, 56
      %v936 = vpop.permute.xlu0 %935
      %vm945 = vcmask 519616
      %946 = vst.msk [vmem:[#allocation2] sm:$0xf] %vm945, %v922
      %947 = vst.msk [vmem:[#allocation2 + $0x4] sm:$0xf] %vm945, %v924
      %948 = vst.msk [vmem:[#allocation2 + $0x8] sm:$0xf] %vm945, %v926
      %949 = vst.msk [vmem:[#allocation2 + $0xc] sm:$0xf] %vm945, %v928
      %950 = vst.msk [vmem:[#allocation2 + $0x10] sm:$0xf] %vm945, %v930
      %951 = vst.msk [vmem:[#allocation2 + $0x14] sm:$0xf] %vm945, %v932
      %952 = vst.msk [vmem:[#allocation2 + $0x18] sm:$0xf] %vm945, %v934
      %953 = vst.msk [vmem:[#allocation2 + $0x1c] sm:$0xf] %vm945, %v936
      %v954 = vrot.slane %v557, 2
      %v955 = vrot.slane %v558, 2
      %v956 = vsel %vm674, %v954, %v955
      %v958 = vpack.c.bf16 %v956, %v956
      %960 = vrot.lane.b32.xlu0 %v709, 64
      %v961 = vpop.permute.xlu0 %960
      %962 = vrot.lane.b32.xlu0 %v710, 64
      %v963 = vpop.permute.xlu0 %962
      %964 = vrot.lane.b32.xlu0 %v711, 64
      %v965 = vpop.permute.xlu0 %964
      %966 = vrot.lane.b32.xlu0 %v712, 64
      %v967 = vpop.permute.xlu0 %966
      %968 = vrot.lane.b32.xlu0 %v713, 64
      %v969 = vpop.permute.xlu0 %968
      %970 = vrot.lane.b32.xlu0 %v714, 64
      %v971 = vpop.permute.xlu0 %970
      %972 = vrot.lane.b32.xlu0 %v843, 64
      %v973 = vpop.permute.xlu0 %972
      %974 = vrot.lane.b32.xlu0 %v958, 64
      %v975 = vpop.permute.xlu0 %974
      %vm984 = vcmask 585216
      %985 = vst.msk [vmem:[#allocation2] sm:$0xf] %vm984, %v961
      %986 = vst.msk [vmem:[#allocation2 + $0x4] sm:$0xf] %vm984, %v963
      %987 = vst.msk [vmem:[#allocation2 + $0x8] sm:$0xf] %vm984, %v965
      %988 = vst.msk [vmem:[#allocation2 + $0xc] sm:$0xf] %vm984, %v967
      %989 = vst.msk [vmem:[#allocation2 + $0x10] sm:$0xf] %vm984, %v969
      %990 = vst.msk [vmem:[#allocation2 + $0x14] sm:$0xf] %vm984, %v971
      %991 = vst.msk [vmem:[#allocation2 + $0x18] sm:$0xf] %vm984, %v973
      %992 = vst.msk [vmem:[#allocation2 + $0x1c] sm:$0xf] %vm984, %v975
      %v993 = vld [vmem:[#allocation2] sm:$0xf]
      %v994 = vld [vmem:[#allocation2 + $0x4] sm:$0xf]
      %v995 = vld [vmem:[#allocation2 + $0x8] sm:$0xf]
      %v996 = vld [vmem:[#allocation2 + $0xc] sm:$0xf]
      %v997 = vld [vmem:[#allocation2 + $0x10] sm:$0xf]
      %v998 = vld [vmem:[#allocation2 + $0x14] sm:$0xf]
      %v999 = vld [vmem:[#allocation2 + $0x18] sm:$0xf]
      %v1000 = vld [vmem:[#allocation2 + $0x1c] sm:$0xf]
      %v1001 = vld [vmem:[%s3] sm:$0xf]
      %v1002 = vld [vmem:[%s3 + $0x4] sm:$0xf]
      %v1003 = vld [vmem:[%s3 + $0x8] sm:$0xf]
      %v1004 = vld [vmem:[%s3 + $0xc] sm:$0xf]
      %v1005 = vld [vmem:[%s3 + $0x10] sm:$0xf]
      %v1006 = vld [vmem:[%s3 + $0x14] sm:$0xf]
      %v1007 = vld [vmem:[%s3 + $0x18] sm:$0xf]
      %v1008 = vld [vmem:[%s3 + $0x1c] sm:$0xf]
      %v1009 = vld [vmem:[%s3 + $0x20] sm:$0xf]
      %v1018 = vunpack.c.l.b16 %v993
      %v1019 = vunpack.c.l.b16 %v994
      %v1020 = vunpack.c.l.b16 %v995
      %v1021 = vunpack.c.l.b16 %v996
      %v1022 = vunpack.c.l.b16 %v997
      %v1023 = vunpack.c.l.b16 %v998
      %v1024 = vunpack.c.l.b16 %v999
      %v1025 = vunpack.c.l.b16 %v1000
      %v1026 = vpack.c.b16 %v1019, %v1018
      %v1027 = vpack.c.b16 %v1021, %v1020
      %v1028 = vpack.c.b16 %v1023, %v1022
      %v1029 = vpack.c.b16 %v1025, %v1024
      %v1039 = vunpack.c.l.b16 %v1001
      %v1040 = vunpack.c.l.b16 %v1002
      %v1041 = vunpack.c.l.b16 %v1003
      %v1042 = vunpack.c.l.b16 %v1004
      %v1043 = vunpack.c.l.b16 %v1005
      %v1044 = vunpack.c.l.b16 %v1006
      %v1045 = vunpack.c.l.b16 %v1007
      %v1046 = vunpack.c.l.b16 %v1008
      %v1047 = vunpack.c.l.b16 %v1009
      %v1048 = vpack.c.b16 %v1040, %v1039
      %v1049 = vpack.c.b16 %v1042, %v1041
      %v1050 = vpack.c.b16 %v1044, %v1043
      %v1051 = vpack.c.b16 %v1046, %v1045
      %v1052 = vpack.c.b16 %v1047, %v1047
      %vm1057 = vcmask 588800
      %v1059 = vsel %vm1057, %v1026, 0
      %v1062 = vsel %vm1057, %v1027, 0
      %v1065 = vsel %vm1057, %v1028, 0
      %v1068 = vsel %vm1057, %v1029, 0
      %vm1070 = vcmask 1043456
      %v1072 = vsel %vm1070, %v1052, 0
      %1074 = vmatpush.bf16.msra.mxu0 0
      %1075 = vmatpush.bf16.msra.mxu0 0
      %1076 = vmatpush.bf16.msra.mxu0 0
      %1077 = vmatpush.bf16.msra.mxu0 %v1072
      %1078 = vmatpush.bf16.msra.mxu0 %v1051
      %1079 = vmatpush.bf16.msra.mxu0 %v1050
      %1080 = vmatpush.bf16.msra.mxu0 %v1049
      %1081 = vmatpush.bf16.msra.mxu0 %v1048
      %1082 = vmatmul.bf16.gmra.mxu0 %v1059
      %v1083 = vpop.f32.mrf.mxu0
      %v1084 = vadd.f32 0.0, %v1083
      %v1085 = vpop.f32.mrf.mxu0
      %v1086 = vadd.f32 0.0, %v1085
      %1087 = vmatmul.bf16.gmra.mxu0 %v1062
      %v1088 = vpop.f32.mrf.mxu0
      %v1089 = vadd.f32 0.0, %v1088
      %v1090 = vpop.f32.mrf.mxu0
      %v1091 = vadd.f32 0.0, %v1090
      %1092 = vmatmul.bf16.gmra.mxu0 %v1065
      %v1093 = vpop.f32.mrf.mxu0
      %v1094 = vadd.f32 0.0, %v1093
      %v1095 = vpop.f32.mrf.mxu0
      %v1096 = vadd.f32 0.0, %v1095
      %1097 = vmatmul.bf16.gmra.mxu0 %v1068
      %v1098 = vpop.f32.mrf.mxu0
      %v1099 = vadd.f32 0.0, %v1098
      %v1100 = vpop.f32.mrf.mxu0
      %v1101 = vadd.f32 0.0, %v1100
      %1102 = vdwg.mxu0
      %v1103 = vld [vmem:[%s288] sm:$0x1]
      %vm1104 = vcmask 64512
      %v1105 = vsel %vm1104, %v1084, 0.0
      %v1106 = vsel %vm1104, %v1086, 0.0
      %v1107 = vadd.f32 %v1105, %v1106
      %v1108 = vsel %vm1104, %v1089, 0.0
      %v1109 = vadd.f32 %v1107, %v1108
      %v1110 = vsel %vm1104, %v1091, 0.0
      %v1111 = vadd.f32 %v1109, %v1110
      %v1112 = vsel %vm1104, %v1094, 0.0
      %v1113 = vadd.f32 %v1111, %v1112
      %v1114 = vsel %vm1104, %v1096, 0.0
      %v1115 = vadd.f32 %v1113, %v1114
      %v1116 = vsel %vm1104, %v1099, 0.0
      %v1117 = vadd.f32 %v1115, %v1116
      %v1118 = vsel %vm1104, %v1101, 0.0
      %v1119 = vadd.f32 %v1117, %v1118
      %v1120 = vrot.slane %v1119, 4
      %v1121 = vadd.f32 %v1119, %v1120
      %v1122 = vrot.slane %v1121, 2
      %v1123 = vadd.f32 %v1121, %v1122
      %v1124 = vrot.slane %v1123, 1
      %v1125 = vadd.f32 %v1123, %v1124
      %v1126 = vadd.f32 %v1103, %v1125
      %vm1127 = vcmask 57344
      %1128 = vst.msk [vmem:[%s288] sm:$0x1] %vm1127, %v1126
      %v1129 = vld [vmem:[%s291] sm:$0x1]
      %v1130 = vmul.f32 %v1084, %v1084
      %v1131 = vmul.f32 %v1086, %v1086
      %v1132 = vmul.f32 %v1089, %v1089
      %v1133 = vmul.f32 %v1091, %v1091
      %v1134 = vmul.f32 %v1094, %v1094
      %v1135 = vmul.f32 %v1096, %v1096
      %v1136 = vmul.f32 %v1099, %v1099
      %v1137 = vmul.f32 %v1101, %v1101
      %v1138 = vsel %vm1104, %v1130, 0.0
      %v1139 = vsel %vm1104, %v1131, 0.0
      %v1140 = vadd.f32 %v1138, %v1139
      %v1141 = vsel %vm1104, %v1132, 0.0
      %v1142 = vadd.f32 %v1140, %v1141
      %v1143 = vsel %vm1104, %v1133, 0.0
      %v1144 = vadd.f32 %v1142, %v1143
      %v1145 = vsel %vm1104, %v1134, 0.0
      %v1146 = vadd.f32 %v1144, %v1145
      %v1147 = vsel %vm1104, %v1135, 0.0
      %v1148 = vadd.f32 %v1146, %v1147
      %v1149 = vsel %vm1104, %v1136, 0.0
      %v1150 = vadd.f32 %v1148, %v1149
      %v1151 = vsel %vm1104, %v1137, 0.0
      %v1152 = vadd.f32 %v1150, %v1151
      %v1153 = vrot.slane %v1152, 4
      %v1154 = vadd.f32 %v1152, %v1153
      %v1155 = vrot.slane %v1154, 2
      %v1156 = vadd.f32 %v1154, %v1155
      %v1157 = vrot.slane %v1156, 1
      %v1158 = vadd.f32 %v1156, %v1157
      %v1159 = vadd.f32 %v1129, %v1158
      %1160 = vst.msk [vmem:[%s291] sm:$0x1] %vm1127, %v1159
      %v1161 = vpack.c.bf16 %v1084, %v1084
      %v1162 = vpack.c.bf16 %v1086, %v1086
      %v1163 = vpack.c.bf16 %v1089, %v1089
      %v1164 = vpack.c.bf16 %v1091, %v1091
      %v1165 = vpack.c.bf16 %v1094, %v1094
      %v1166 = vpack.c.bf16 %v1096, %v1096
      %v1167 = vpack.c.bf16 %v1099, %v1099
      %v1168 = vpack.c.bf16 %v1101, %v1101
      %1169 = vst.msk [vmem:[%s284] sm:$0xf] %vm567, %v1161
      %1170 = vst.msk [vmem:[%s284 + $0x4] sm:$0xf] %vm567, %v1162
      %1171 = vst.msk [vmem:[%s284 + $0x8] sm:$0xf] %vm567, %v1163
      %1172 = vst.msk [vmem:[%s284 + $0xc] sm:$0xf] %vm567, %v1164
      %1173 = vst.msk [vmem:[%s284 + $0x10] sm:$0xf] %vm567, %v1165
      %1174 = vst.msk [vmem:[%s284 + $0x14] sm:$0xf] %vm567, %v1166
      %1175 = vst.msk [vmem:[%s284 + $0x18] sm:$0xf] %vm567, %v1167
      %1176 = vst.msk [vmem:[%s284 + $0x1c] sm:$0xf] %vm567, %v1168
      %s1177 = smul.u32 8, %s23
      %p1178 = scmp.lt.s32.totalorder %s22, 1
      %s1179 = scalar_select %p1178, %s22, 1
      %p1180 = scmp.lt.s32.totalorder %s1177, 7
      %s1181 = scalar_select %p1180, %s1177, 7
      %s1182 = smul.addr %s1179, 8
      %s1183 = sadd.s32 %s1181, %s1182
      %s1184 = smul.addr %s1183, 4
      %s1185 = scalar_lea.vmem %s4, %s1184
      %p1186 = scmp.lt.s32.totalorder %s22, 1
      %s1187 = scalar_select %p1186, %s22, 1
      %s1188 = scalar_lea.vmem %s5, %s1187
      %p1189 = scmp.lt.s32.totalorder %s22, 1
      %s1190 = scalar_select %p1189, %s22, 1
      %s1191 = scalar_lea.vmem %s6, %s1190
      // Predicated region
      $region41: #{downsampling_forward.8} parent=35 // pred_check
        %p1192 = pneg %p139
      $region42: #{downsampling_forward.8} parent=35 // pred_check_branch
        %1194 = sbr.rel (%p1192) target = $region44
      $region43: #{downsampling_forward.8} parent=35 // pred_region
        %s1195 = smul.u32 8, %s23
      $region44: #{downsampling_forward.8} parent=35 // pred_fallthru
        _
      // Predicated region
      $region45: #{downsampling_forward.8} parent=35 // pred_check
        %p1196 = pneg %p165
      $region46: #{downsampling_forward.8} parent=35 // pred_check_branch
        %1198 = sbr.rel (%p1196) target = $region48
      $region47: #{downsampling_forward.8} parent=35 // pred_region
        _
      $region48: #{downsampling_forward.8} parent=35 // pred_fallthru
        _
      // Predicated region
      $region49: #{downsampling_forward.8} parent=35 // pred_check
        %p1199 = pneg %p191
      $region50: #{downsampling_forward.8} parent=35 // pred_check_branch
        %1201 = sbr.rel (%p1199) target = $region52
      $region51: #{downsampling_forward.8} parent=35 // pred_region
        _
      $region52: #{downsampling_forward.8} parent=35 // pred_fallthru
        _
    $region36: #{downsampling_forward.8} parent=5 // pred_fallthru
      _
    %p1202 = scmp.le.s32.totalorder 2, %s13
    // Predicated region
    $region53: #{downsampling_forward.8} parent=5 // pred_check
      %p1203 = pneg %p1202
    $region54: #{downsampling_forward.8} parent=5 // pred_check_branch
      %1205 = sbr.rel (%p1203) target = $region56
    $region55: #{downsampling_forward.8} parent=5 // pred_region
      %s1206 = ssub.s32 %s13, 2
      // Predicated region
      $region57: #{downsampling_forward.8} parent=55 // pred_check
        %p1207 = pneg %p145
      $region58: #{downsampling_forward.8} parent=55 // pred_check_branch
        %1209 = sbr.rel (%p1207) target = $region60
      $region59: #{downsampling_forward.8} parent=55 // pred_region
        %s1210 = smul.u32 8, %s25
        %p1211 = scmp.lt.s32.totalorder %s24, 1
        %s1212 = scalar_select %p1211, %s24, 1
        %p1213 = scmp.lt.s32.totalorder %s1210, 7
        %s1214 = scalar_select %p1213, %s1210, 7
        %s1215 = smul.addr %s1212, 8
        %s1216 = sadd.s32 %s1214, %s1215
        %s1217 = smul.addr %s1216, 4
        %s1218 = scalar_lea.vmem %s4, %s1217
      $region60: #{downsampling_forward.8} parent=55 // pred_fallthru
        _
      // Predicated region
      $region61: #{downsampling_forward.8} parent=55 // pred_check
        %p1219 = pneg %p171
      $region62: #{downsampling_forward.8} parent=55 // pred_check_branch
        %1221 = sbr.rel (%p1219) target = $region64
      $region63: #{downsampling_forward.8} parent=55 // pred_region
        %p1222 = scmp.lt.s32.totalorder %s24, 1
        %s1223 = scalar_select %p1222, %s24, 1
        %s1224 = scalar_lea.vmem %s5, %s1223
      $region64: #{downsampling_forward.8} parent=55 // pred_fallthru
        _
      // Predicated region
      $region65: #{downsampling_forward.8} parent=55 // pred_check
        %p1225 = pneg %p197
      $region66: #{downsampling_forward.8} parent=55 // pred_check_branch
        %1227 = sbr.rel (%p1225) target = $region68
      $region67: #{downsampling_forward.8} parent=55 // pred_region
        %p1228 = scmp.lt.s32.totalorder %s24, 1
        %s1229 = scalar_select %p1228, %s24, 1
        %s1230 = scalar_lea.vmem %s6, %s1229
      $region68: #{downsampling_forward.8} parent=55 // pred_fallthru
        _
    $region56: #{downsampling_forward.8} parent=5 // pred_fallthru
      _
  $region6: #{downsampling_forward.8} parent=0 // loop_footer
    %s17 = sadd.s32 1, %s13
  $region7: #{downsampling_forward.8} parent=0 // loop_footer_branch
    %12 = sbr.rel target = $region3
  $region8: #{downsampling_forward.8} parent=0 // loop_exit
    _

// kernel: downsampling_forward.9
$region0: #{downsampling_forward.9}
  #allocation0 [shape = 'u32[]', space=smem, size = 0x4, offset = 0x4, fixed_abs, tag = 'smem constant byte address 0x4 - core index']
  #allocation1 [shape = 'u32[72,128]{1,0:T(1,128)}', space=vmem, size = 0x9000, scoped, tag = 'internal scratch']
  %s0 = inlined_call_operand.vmem [shape: bf16[2,8,8,8], index: 0, kind: input, shape index: {}]
  %s1 = inlined_call_operand.vmem [shape: f32[1,8], index: 1, kind: input, shape index: {}]
  %s2 = inlined_call_operand.vmem [shape: f32[1,8], index: 2, kind: input, shape index: {}]
  %s3 = inlined_call_operand.vmem [shape: f32[2,8,8,8], index: 3, kind: output, shape index: {}]
  %s4 = sld [smem:[#allocation0]]
  $region45: #{downsampling_forward.9} parent=0
    _
  %s6 = ssub.s32 1, %s4
  %s7 = scalar_select 0, %s6, %s4
  loop: start=0, step=1, limit=4
  $region2: #{downsampling_forward.9} parent=0 // loop_pre_header
    _
  $region3: #{downsampling_forward.9} parent=0 // loop_header
    %s9 = sphi 0, %s13
    %p10 = scmp.ge.s32.totalorder %s9, 4
    %s16 = sphi 0, %s28
    %s17 = sphi 0, %s24
    %s18 = sphi 0, %s16
    %s19 = sphi 0, %s17
    %s20 = sphi 0, %s18
    %s21 = sphi 0, %s19
    %s33 = sphi 0, %s35
    %s36 = sphi 0, %s33
    %s37 = sphi 0, %s36
    %s53 = sphi 0, %s37
    %s57 = sphi 0, %s57
    %s59 = sphi 0, %s57
    %s60 = sphi 0, %s59
    %s74 = sphi 0, %s60
    %s78 = sphi 0, %s78
    %s80 = sphi 0, %s78
    %s81 = sphi 0, %s80
    %s95 = sphi 0, %s81
    %s103 = sphi 0, %s105
    %s106 = sphi 0, %s103
    %s107 = sphi 0, %s106
    %s123 = sphi 0, %s107
  $region4: #{downsampling_forward.9} parent=0 // loop_header_branch
    %12 = sbr.rel (%p10) target = $region8
  $region5: #{downsampling_forward.9} parent=0 // loop_body
    %s14 = ssub.s32 %s9, 1
    %s15 = ssub.s32 %s9, 2
    %s22 = sadd.s32 1, %s17
    %p23 = scmp.ge.s32.totalorder %s22, 1
    %s24 = scalar_select %p23, 0, %s22
    %s25 = sadd.s32 1, %s16
    %s26 = scalar_select %p23, %s25, %s16
    %p27 = scmp.ge.s32.totalorder %s26, 2
    %s28 = scalar_select %p27, 0, %s26
    %s29 = ssub.s32 %s16, %s28
    %s30 = ssub.s32 %s17, %s24
    %s31 = sor.u32 %s29, %s30
    %p32 = scmp.eq.s32.totalorder %s31, 0
    %s34 = sadd.s32 %s33, 1
    %s35 = scalar_select %p32, %s33, %s34
    %p38 = pneg %p32
    %p39 = scmp.eq.s32.totalorder %s9, 1
    %p40 = por %p38, %p39
    %p41 = scmp.ne.s32.totalorder %s33, %s36
    %p42 = scmp.eq.s32.totalorder %s9, 0
    %p43 = por %p41, %p42
    %p44 = scmp.ne.s32.totalorder %s33, %s36
    %p45 = scmp.eq.s32.totalorder %s14, 1
    %p46 = por %p44, %p45
    %p47 = scmp.ne.s32.totalorder %s36, %s37
    %p48 = scmp.eq.s32.totalorder %s14, 0
    %p49 = por %p47, %p48
    %p50 = scmp.ne.s32.totalorder %s36, %s37
    %p51 = scmp.eq.s32.totalorder %s15, 1
    %p52 = por %p50, %p51
    %p54 = scmp.ne.s32.totalorder %s37, %s53
    %p55 = scmp.eq.s32.totalorder %s15, 0
    %p56 = por %p54, %p55
    %s58 = sadd.s32 %s57, 1
    %p61 = scmp.eq.s32.totalorder %s9, 1
    %p62 = scmp.ne.s32.totalorder %s57, %s59
    %p63 = scmp.eq.s32.totalorder %s9, 0
    %p64 = por %p62, %p63
    %p65 = scmp.ne.s32.totalorder %s57, %s59
    %p66 = scmp.eq.s32.totalorder %s14, 1
    %p67 = por %p65, %p66
    %p68 = scmp.ne.s32.totalorder %s59, %s60
    %p69 = scmp.eq.s32.totalorder %s14, 0
    %p70 = por %p68, %p69
    %p71 = scmp.ne.s32.totalorder %s59, %s60
    %p72 = scmp.eq.s32.totalorder %s15, 1
    %p73 = por %p71, %p72
    %p75 = scmp.ne.s32.totalorder %s60, %s74
    %p76 = scmp.eq.s32.totalorder %s15, 0
    %p77 = por %p75, %p76
    %s79 = sadd.s32 %s78, 1
    %p82 = scmp.eq.s32.totalorder %s9, 1
    %p83 = scmp.ne.s32.totalorder %s78, %s80
    %p84 = scmp.eq.s32.totalorder %s9, 0
    %p85 = por %p83, %p84
    %p86 = scmp.ne.s32.totalorder %s78, %s80
    %p87 = scmp.eq.s32.totalorder %s14, 1
    %p88 = por %p86, %p87
    %p89 = scmp.ne.s32.totalorder %s80, %s81
    %p90 = scmp.eq.s32.totalorder %s14, 0
    %p91 = por %p89, %p90
    %p92 = scmp.ne.s32.totalorder %s80, %s81
    %p93 = scmp.eq.s32.totalorder %s15, 1
    %p94 = por %p92, %p93
    %p96 = scmp.ne.s32.totalorder %s81, %s95
    %p97 = scmp.eq.s32.totalorder %s15, 0
    %p98 = por %p96, %p97
    %s99 = ssub.s32 %s16, %s28
    %s100 = ssub.s32 %s17, %s24
    %s101 = sor.u32 %s99, %s100
    %p102 = scmp.eq.s32.totalorder %s101, 0
    %s104 = sadd.s32 %s103, 1
    %s105 = scalar_select %p102, %s103, %s104
    %p108 = pneg %p102
    %p109 = scmp.eq.s32.totalorder %s9, 1
    %p110 = por %p108, %p109
    %p111 = scmp.ne.s32.totalorder %s103, %s106
    %p112 = scmp.eq.s32.totalorder %s9, 0
    %p113 = por %p111, %p112
    %p114 = scmp.ne.s32.totalorder %s103, %s106
    %p115 = scmp.eq.s32.totalorder %s14, 1
    %p116 = por %p114, %p115
    %p117 = scmp.ne.s32.totalorder %s106, %s107
    %p118 = scmp.eq.s32.totalorder %s14, 0
    %p119 = por %p117, %p118
    %p120 = scmp.ne.s32.totalorder %s106, %s107
    %p121 = scmp.eq.s32.totalorder %s15, 1
    %p122 = por %p120, %p121
    %p124 = scmp.ne.s32.totalorder %s107, %s123
    %p125 = scmp.eq.s32.totalorder %s15, 0
    %p126 = por %p124, %p125
    %p127 = scmp.le.s32.totalorder 1, %s9
    %p128 = scmp.lt.s32.totalorder %s9, 3
    %p129 = pnand %p127, %p128
    %p130 = pneg %p129
    // Predicated region
    $region9: #{downsampling_forward.9} parent=5 // pred_check
      _
    $region10: #{downsampling_forward.9} parent=5 // pred_check_branch
      %132 = sbr.rel (%p129) target = $region12
    $region11: #{downsampling_forward.9} parent=5 // pred_region
      %s133 = ssub.s32 %s9, 1
      // Predicated region
      $region13: #{downsampling_forward.9} parent=11 // pred_check
        %p134 = pneg %p70
      $region14: #{downsampling_forward.9} parent=11 // pred_check_branch
        %136 = sbr.rel (%p134) target = $region16
      $region15: #{downsampling_forward.9} parent=11 // pred_region
        _
      $region16: #{downsampling_forward.9} parent=11 // pred_fallthru
        _
      // Predicated region
      $region17: #{downsampling_forward.9} parent=11 // pred_check
        %p137 = pneg %p91
      $region18: #{downsampling_forward.9} parent=11 // pred_check_branch
        %139 = sbr.rel (%p137) target = $region20
      $region19: #{downsampling_forward.9} parent=11 // pred_region
        _
      $region20: #{downsampling_forward.9} parent=11 // pred_fallthru
        _
    $region12: #{downsampling_forward.9} parent=5 // pred_fallthru
      _
    %p140 = scmp.lt.s32.totalorder %s9, 2
    // Predicated region
    $region21: #{downsampling_forward.9} parent=5 // pred_check
      %p141 = pneg %p140
    $region22: #{downsampling_forward.9} parent=5 // pred_check_branch
      %143 = sbr.rel (%p141) target = $region24
    $region23: #{downsampling_forward.9} parent=5 // pred_region
      // Predicated region
      $region25: #{downsampling_forward.9} parent=23 // pred_check
        %p144 = pneg %p43
      $region26: #{downsampling_forward.9} parent=23 // pred_check_branch
        %146 = sbr.rel (%p144) target = $region28
      $region27: #{downsampling_forward.9} parent=23 // pred_region
        %s147 = smul.u32 8, %s17
        %p148 = scmp.lt.s32.totalorder %s16, 1
        %s149 = scalar_select %p148, %s16, 1
        %p150 = scmp.lt.s32.totalorder %s147, 7
        %s151 = scalar_select %p150, %s147, 7
        %s152 = smul.addr %s149, 8
        %s153 = sadd.s32 %s151, %s152
        %s154 = smul.addr %s153, 4
        %s155 = scalar_lea.vmem %s0, %s154
        %s156 = smul.u32 8, %s17
      $region28: #{downsampling_forward.9} parent=23 // pred_fallthru
        _
    $region24: #{downsampling_forward.9} parent=5 // pred_fallthru
      _
    %p157 = scmp.le.s32.totalorder 1, %s9
    %p158 = scmp.lt.s32.totalorder %s9, 3
    %p159 = pnand %p157, %p158
    %p160 = pneg %p159
    // Predicated region
    $region29: #{downsampling_forward.9} parent=5 // pred_check
      _
    $region30: #{downsampling_forward.9} parent=5 // pred_check_branch
      %162 = sbr.rel (%p159) target = $region32
    $region31: #{downsampling_forward.9} parent=5 // pred_region
      %s163 = ssub.s32 %s9, 1
      %s164 = smul.u32 8, %s19
      %p165 = scmp.lt.s32.totalorder %s18, 1
      %s166 = scalar_select %p165, %s18, 1
      %p167 = scmp.lt.s32.totalorder %s164, 7
      %s168 = scalar_select %p167, %s164, 7
      %s169 = smul.addr %s166, 8
      %s170 = sadd.s32 %s168, %s169
      %s171 = smul.addr %s170, 4
      %s172 = scalar_lea.vmem %s0, %s171
      %p173 = pneg %p49
      %p174 = pneg %p46
      %p175 = pneg %p70
      %p176 = pneg %p67
      %p177 = pneg %p91
      %p178 = pneg %p88
      %p179 = pneg %p119
      %p180 = pneg %p116
      %s181 = smul.u32 8, %s19
      %p182 = scmp.lt.s32.totalorder %s18, 1
      %s183 = scalar_select %p182, %s18, 1
      %p184 = scmp.lt.s32.totalorder %s181, 7
      %s185 = scalar_select %p184, %s181, 7
      %s186 = smul.addr %s183, 8
      %s187 = sadd.s32 %s185, %s186
      %s188 = smul.addr %s187, 8
      %s189 = scalar_lea.vmem %s3, %s188
      %s190 = smul.u32 8, %s19
      %p191 = scmp.lt.s32.totalorder %s18, 1
      %s192 = scalar_select %p191, %s18, 1
      %p193 = scmp.lt.s32.totalorder %s190, 7
      %s194 = scalar_select %p193, %s190, 7
      %s195 = smul.addr %s192, 8
      %s196 = sadd.s32 %s194, %s195
      %s197 = smul.addr %s196, 4
      %s198 = scalar_lea.vmem %s0, %s197
      %s199 = smul.u32 8, %s19
      %s200 = smul.u32 8, %s19
      %p201 = scmp.lt.s32.totalorder %s18, 1
      %s202 = scalar_select %p201, %s18, 1
      %p203 = scmp.lt.s32.totalorder %s200, 7
      %s204 = scalar_select %p203, %s200, 7
      %s205 = smul.addr %s202, 8
      %s206 = sadd.s32 %s204, %s205
      %s207 = smul.addr %s206, 8
      %s208 = scalar_lea.vmem %s3, %s207
      %s209 = smul.u32 8, %s19
      %v210 = vld [vmem:[%s198] sm:$0xf]
      %v211 = vld [vmem:[%s198 + $0x4] sm:$0xf]
      %v212 = vld [vmem:[%s198 + $0x8] sm:$0xf]
      %v213 = vld [vmem:[%s198 + $0xc] sm:$0xf]
      %v214 = vld [vmem:[%s198 + $0x10] sm:$0xf]
      %v215 = vld [vmem:[%s198 + $0x14] sm:$0xf]
      %v216 = vld [vmem:[%s198 + $0x18] sm:$0xf]
      %v217 = vld [vmem:[%s198 + $0x1c] sm:$0xf]
      %v218 = vunpack.c.l.bf16 %v210
      %v219 = vunpack.c.l.bf16 %v211
      %v220 = vunpack.c.l.bf16 %v212
      %v221 = vunpack.c.l.bf16 %v213
      %v222 = vunpack.c.l.bf16 %v214
      %v223 = vunpack.c.l.bf16 %v215
      %v224 = vunpack.c.l.bf16 %v216
      %v225 = vunpack.c.l.bf16 %v217
      %v226 = vld [vmem:[%s1] sm:$0x1]
      %v228 = vperm.slane %v226, 0
      %v230 = vmul.f32 %v218, %v228
      %v231 = vmul.f32 %v219, %v228
      %v232 = vmul.f32 %v220, %v228
      %v233 = vmul.f32 %v221, %v228
      %v234 = vmul.f32 %v222, %v228
      %v235 = vmul.f32 %v223, %v228
      %v236 = vmul.f32 %v224, %v228
      %v237 = vmul.f32 %v225, %v228
      %v238 = vld [vmem:[%s2] sm:$0x1]
      %v240 = vperm.slane %v238, 0
      %v242 = vadd.f32 %v230, %v240
      %v243 = vadd.f32 %v231, %v240
      %v244 = vadd.f32 %v232, %v240
      %v245 = vadd.f32 %v233, %v240
      %v246 = vadd.f32 %v234, %v240
      %v247 = vadd.f32 %v235, %v240
      %v248 = vadd.f32 %v236, %v240
      %v249 = vadd.f32 %v237, %v240
      %v250 = vmax.f32 %v242, 0.0
      %v251 = vmax.f32 %v243, 0.0
      %v252 = vmax.f32 %v244, 0.0
      %v253 = vmax.f32 %v245, 0.0
      %v254 = vmax.f32 %v246, 0.0
      %v255 = vmax.f32 %v247, 0.0
      %v256 = vmax.f32 %v248, 0.0
      %v257 = vmax.f32 %v249, 0.0
      %vm258 = vcmask 64512
      %259 = vst.msk [vmem:[%s208] sm:$0xff] %vm258, %v250
      %260 = vst.msk [vmem:[%s208 + $0x8] sm:$0xff] %vm258, %v251
      %261 = vst.msk [vmem:[%s208 + $0x10] sm:$0xff] %vm258, %v252
      %262 = vst.msk [vmem:[%s208 + $0x18] sm:$0xff] %vm258, %v253
      %263 = vst.msk [vmem:[%s208 + $0x20] sm:$0xff] %vm258, %v254
      %264 = vst.msk [vmem:[%s208 + $0x28] sm:$0xff] %vm258, %v255
      %265 = vst.msk [vmem:[%s208 + $0x30] sm:$0xff] %vm258, %v256
      %266 = vst.msk [vmem:[%s208 + $0x38] sm:$0xff] %vm258, %v257
      %s267 = smul.u32 8, %s19
      %p268 = scmp.lt.s32.totalorder %s18, 1
      %s269 = scalar_select %p268, %s18, 1
      %p270 = scmp.lt.s32.totalorder %s267, 7
      %s271 = scalar_select %p270, %s267, 7
      %s272 = smul.addr %s269, 8
      %s273 = sadd.s32 %s271, %s272
      %s274 = smul.addr %s273, 8
      %s275 = scalar_lea.vmem %s3, %s274
      // Predicated region
      $region33: #{downsampling_forward.9} parent=31 // pred_check
        %p276 = pneg %p116
      $region34: #{downsampling_forward.9} parent=31 // pred_check_branch
        %278 = sbr.rel (%p276) target = $region36
      $region35: #{downsampling_forward.9} parent=31 // pred_region
        %s279 = smul.u32 8, %s19
      $region36: #{downsampling_forward.9} parent=31 // pred_fallthru
        _
    $region32: #{downsampling_forward.9} parent=5 // pred_fallthru
      _
    %p280 = scmp.le.s32.totalorder 2, %s9
    // Predicated region
    $region37: #{downsampling_forward.9} parent=5 // pred_check
      %p281 = pneg %p280
    $region38: #{downsampling_forward.9} parent=5 // pred_check_branch
      %283 = sbr.rel (%p281) target = $region40
    $region39: #{downsampling_forward.9} parent=5 // pred_region
      %s284 = ssub.s32 %s9, 2
      // Predicated region
      $region41: #{downsampling_forward.9} parent=39 // pred_check
        %p285 = pneg %p122
      $region42: #{downsampling_forward.9} parent=39 // pred_check_branch
        %287 = sbr.rel (%p285) target = $region44
      $region43: #{downsampling_forward.9} parent=39 // pred_region
        %s288 = smul.u32 8, %s21
        %p289 = scmp.lt.s32.totalorder %s20, 1
        %s290 = scalar_select %p289, %s20, 1
        %p291 = scmp.lt.s32.totalorder %s288, 7
        %s292 = scalar_select %p291, %s288, 7
        %s293 = smul.addr %s290, 8
        %s294 = sadd.s32 %s292, %s293
        %s295 = smul.addr %s294, 8
        %s296 = scalar_lea.vmem %s3, %s295
      $region44: #{downsampling_forward.9} parent=39 // pred_fallthru
        _
    $region40: #{downsampling_forward.9} parent=5 // pred_fallthru
      _
  $region6: #{downsampling_forward.9} parent=0 // loop_footer
    %s13 = sadd.s32 1, %s9
  $region7: #{downsampling_forward.9} parent=0 // loop_footer_branch
    %8 = sbr.rel target = $region3
  $region8: #{downsampling_forward.9} parent=0 // loop_exit
    _

// kernel: downsampling_forward.6
$region0: #{downsampling_forward.6}
  #allocation0 [shape = 'u32[]', space=smem, size = 0x4, offset = 0x4, fixed_abs, tag = 'smem constant byte address 0x4 - core index']
  #allocation1 [shape = 'u32[72,128]{1,0:T(1,128)}', space=vmem, size = 0x9000, scoped, tag = 'internal scratch']
  #allocation2 [shape = 'bf16[64,36]{1,0:T(8,128)(2,1)}', space=vmem, size = 0x4000, scoped, tag = 'scratch operand']
  %s0 = inlined_call_operand.vmem [shape: bf16[2,10,10,4], index: 0, kind: input, shape index: {}]
  %s1 = inlined_call_operand.vmem [shape: f32[1,4], index: 1, kind: input, shape index: {}]
  %s2 = inlined_call_operand.vmem [shape: f32[1,4], index: 2, kind: input, shape index: {}]
  %s3 = inlined_call_operand.vmem [shape: bf16[36,8], index: 3, kind: input, shape index: {}]
  %s4 = inlined_call_operand.vmem [shape: bf16[2,10,10,8], index: 4, kind: output, shape index: {0}]
  %s5 = inlined_call_operand.vmem [shape: f32[2,1,8], index: 5, kind: output, shape index: {1}]
  %s6 = inlined_call_operand.vmem [shape: f32[2,1,8], index: 6, kind: output, shape index: {2}]
  %7 = xla_tuple %s4, %s5, %s6
  %s8 = sld [smem:[#allocation0]]
  $region69: #{downsampling_forward.6} parent=0
    _
  %s10 = ssub.s32 1, %s8
  %s11 = scalar_select 0, %s10, %s8
  loop: start=0, step=1, limit=4
  $region2: #{downsampling_forward.6} parent=0 // loop_pre_header
    _
  $region3: #{downsampling_forward.6} parent=0 // loop_header
    %s13 = sphi 0, %s17
    %p14 = scmp.ge.s32.totalorder %s13, 4
    %s20 = sphi 0, %s32
    %s21 = sphi 0, %s28
    %s22 = sphi 0, %s20
    %s23 = sphi 0, %s21
    %s24 = sphi 0, %s22
    %s25 = sphi 0, %s23
    %s35 = sphi 0, %s37
    %s38 = sphi 0, %s35
    %s39 = sphi 0, %s38
    %s55 = sphi 0, %s39
    %s59 = sphi 0, %s59
    %s61 = sphi 0, %s59
    %s62 = sphi 0, %s61
    %s76 = sphi 0, %s62
    %s80 = sphi 0, %s80
    %s82 = sphi 0, %s80
    %s83 = sphi 0, %s82
    %s97 = sphi 0, %s83
    %s101 = sphi 0, %s101
    %s103 = sphi 0, %s101
    %s104 = sphi 0, %s103
    %s118 = sphi 0, %s104
    %s124 = sphi 0, %s126
    %s127 = sphi 0, %s124
    %s128 = sphi 0, %s127
    %s144 = sphi 0, %s128
    %s150 = sphi 0, %s152
    %s153 = sphi 0, %s150
    %s154 = sphi 0, %s153
    %s170 = sphi 0, %s154
    %s176 = sphi 0, %s178
    %s179 = sphi 0, %s176
    %s180 = sphi 0, %s179
    %s196 = sphi 0, %s180
  $region4: #{downsampling_forward.6} parent=0 // loop_header_branch
    %16 = sbr.rel (%p14) target = $region8
  $region5: #{downsampling_forward.6} parent=0 // loop_body
    %s18 = ssub.s32 %s13, 1
    %s19 = ssub.s32 %s13, 2
    %s26 = sadd.s32 1, %s21
    %p27 = scmp.ge.s32.totalorder %s26, 1
    %s28 = scalar_select %p27, 0, %s26
    %s29 = sadd.s32 1, %s20
    %s30 = scalar_select %p27, %s29, %s20
    %p31 = scmp.ge.s32.totalorder %s30, 2
    %s32 = scalar_select %p31, 0, %s30
    %s33 = ssub.s32 %s20, %s32
    %p34 = scmp.eq.s32.totalorder %s33, 0
    %s36 = sadd.s32 %s35, 1
    %s37 = scalar_select %p34, %s35, %s36
    %p40 = pneg %p34
    %p41 = scmp.eq.s32.totalorder %s13, 1
    %p42 = por %p40, %p41
    %p43 = scmp.ne.s32.totalorder %s35, %s38
    %p44 = scmp.eq.s32.totalorder %s13, 0
    %p45 = por %p43, %p44
    %p46 = scmp.ne.s32.totalorder %s35, %s38
    %p47 = scmp.eq.s32.totalorder %s18, 1
    %p48 = por %p46, %p47
    %p49 = scmp.ne.s32.totalorder %s38, %s39
    %p50 = scmp.eq.s32.totalorder %s18, 0
    %p51 = por %p49, %p50
    %p52 = scmp.ne.s32.totalorder %s38, %s39
    %p53 = scmp.eq.s32.totalorder %s19, 1
    %p54 = por %p52, %p53
    %p56 = scmp.ne.s32.totalorder %s39, %s55
    %p57 = scmp.eq.s32.totalorder %s19, 0
    %p58 = por %p56, %p57
    %s60 = sadd.s32 %s59, 1
    %p63 = scmp.eq.s32.totalorder %s13, 1
    %p64 = scmp.ne.s32.totalorder %s59, %s61
    %p65 = scmp.eq.s32.totalorder %s13, 0
    %p66 = por %p64, %p65
    %p67 = scmp.ne.s32.totalorder %s59, %s61
    %p68 = scmp.eq.s32.totalorder %s18, 1
    %p69 = por %p67, %p68
    %p70 = scmp.ne.s32.totalorder %s61, %s62
    %p71 = scmp.eq.s32.totalorder %s18, 0
    %p72 = por %p70, %p71
    %p73 = scmp.ne.s32.totalorder %s61, %s62
    %p74 = scmp.eq.s32.totalorder %s19, 1
    %p75 = por %p73, %p74
    %p77 = scmp.ne.s32.totalorder %s62, %s76
    %p78 = scmp.eq.s32.totalorder %s19, 0
    %p79 = por %p77, %p78
    %s81 = sadd.s32 %s80, 1
    %p84 = scmp.eq.s32.totalorder %s13, 1
    %p85 = scmp.ne.s32.totalorder %s80, %s82
    %p86 = scmp.eq.s32.totalorder %s13, 0
    %p87 = por %p85, %p86
    %p88 = scmp.ne.s32.totalorder %s80, %s82
    %p89 = scmp.eq.s32.totalorder %s18, 1
    %p90 = por %p88, %p89
    %p91 = scmp.ne.s32.totalorder %s82, %s83
    %p92 = scmp.eq.s32.totalorder %s18, 0
    %p93 = por %p91, %p92
    %p94 = scmp.ne.s32.totalorder %s82, %s83
    %p95 = scmp.eq.s32.totalorder %s19, 1
    %p96 = por %p94, %p95
    %p98 = scmp.ne.s32.totalorder %s83, %s97
    %p99 = scmp.eq.s32.totalorder %s19, 0
    %p100 = por %p98, %p99
    %s102 = sadd.s32 %s101, 1
    %p105 = scmp.eq.s32.totalorder %s13, 1
    %p106 = scmp.ne.s32.totalorder %s101, %s103
    %p107 = scmp.eq.s32.totalorder %s13, 0
    %p108 = por %p106, %p107
    %p109 = scmp.ne.s32.totalorder %s101, %s103
    %p110 = scmp.eq.s32.totalorder %s18, 1
    %p111 = por %p109, %p110
    %p112 = scmp.ne.s32.totalorder %s103, %s104
    %p113 = scmp.eq.s32.totalorder %s18, 0
    %p114 = por %p112, %p113
    %p115 = scmp.ne.s32.totalorder %s103, %s104
    %p116 = scmp.eq.s32.totalorder %s19, 1
    %p117 = por %p115, %p116
    %p119 = scmp.ne.s32.totalorder %s104, %s118
    %p120 = scmp.eq.s32.totalorder %s19, 0
    %p121 = por %p119, %p120
    %s122 = ssub.s32 %s20, %s32
    %p123 = scmp.eq.s32.totalorder %s122, 0
    %s125 = sadd.s32 %s124, 1
    %s126 = scalar_select %p123, %s124, %s125
    %p129 = pneg %p123
    %p130 = scmp.eq.s32.totalorder %s13, 1
    %p131 = por %p129, %p130
    %p132 = scmp.ne.s32.totalorder %s124, %s127
    %p133 = scmp.eq.s32.totalorder %s13, 0
    %p134 = por %p132, %p133
    %p135 = scmp.ne.s32.totalorder %s124, %s127
    %p136 = scmp.eq.s32.totalorder %s18, 1
    %p137 = por %p135, %p136
    %p138 = scmp.ne.s32.totalorder %s127, %s128
    %p139 = scmp.eq.s32.totalorder %s18, 0
    %p140 = por %p138, %p139
    %p141 = scmp.ne.s32.totalorder %s127, %s128
    %p142 = scmp.eq.s32.totalorder %s19, 1
    %p143 = por %p141, %p142
    %p145 = scmp.ne.s32.totalorder %s128, %s144
    %p146 = scmp.eq.s32.totalorder %s19, 0
    %p147 = por %p145, %p146
    %s148 = ssub.s32 %s20, %s32
    %p149 = scmp.eq.s32.totalorder %s148, 0
    %s151 = sadd.s32 %s150, 1
    %s152 = scalar_select %p149, %s150, %s151
    %p155 = pneg %p149
    %p156 = scmp.eq.s32.totalorder %s13, 1
    %p157 = por %p155, %p156
    %p158 = scmp.ne.s32.totalorder %s150, %s153
    %p159 = scmp.eq.s32.totalorder %s13, 0
    %p160 = por %p158, %p159
    %p161 = scmp.ne.s32.totalorder %s150, %s153
    %p162 = scmp.eq.s32.totalorder %s18, 1
    %p163 = por %p161, %p162
    %p164 = scmp.ne.s32.totalorder %s153, %s154
    %p165 = scmp.eq.s32.totalorder %s18, 0
    %p166 = por %p164, %p165
    %p167 = scmp.ne.s32.totalorder %s153, %s154
    %p168 = scmp.eq.s32.totalorder %s19, 1
    %p169 = por %p167, %p168
    %p171 = scmp.ne.s32.totalorder %s154, %s170
    %p172 = scmp.eq.s32.totalorder %s19, 0
    %p173 = por %p171, %p172
    %s174 = ssub.s32 %s20, %s32
    %p175 = scmp.eq.s32.totalorder %s174, 0
    %s177 = sadd.s32 %s176, 1
    %s178 = scalar_select %p175, %s176, %s177
    %p181 = pneg %p175
    %p182 = scmp.eq.s32.totalorder %s13, 1
    %p183 = por %p181, %p182
    %p184 = scmp.ne.s32.totalorder %s176, %s179
    %p185 = scmp.eq.s32.totalorder %s13, 0
    %p186 = por %p184, %p185
    %p187 = scmp.ne.s32.totalorder %s176, %s179
    %p188 = scmp.eq.s32.totalorder %s18, 1
    %p189 = por %p187, %p188
    %p190 = scmp.ne.s32.totalorder %s179, %s180
    %p191 = scmp.eq.s32.totalorder %s18, 0
    %p192 = por %p190, %p191
    %p193 = scmp.ne.s32.totalorder %s179, %s180
    %p194 = scmp.eq.s32.totalorder %s19, 1
    %p195 = por %p193, %p194
    %p197 = scmp.ne.s32.totalorder %s180, %s196
    %p198 = scmp.eq.s32.totalorder %s19, 0
    %p199 = por %p197, %p198
    %p200 = scmp.le.s32.totalorder 1, %s13
    %p201 = scmp.lt.s32.totalorder %s13, 3
    %p202 = pnand %p200, %p201
    %p203 = pneg %p202
    // Predicated region
    $region9: #{downsampling_forward.6} parent=5 // pred_check
      _
    $region10: #{downsampling_forward.6} parent=5 // pred_check_branch
      %205 = sbr.rel (%p202) target = $region12
    $region11: #{downsampling_forward.6} parent=5 // pred_region
      %s206 = ssub.s32 %s13, 1
      // Predicated region
      $region13: #{downsampling_forward.6} parent=11 // pred_check
        %p207 = pneg %p72
      $region14: #{downsampling_forward.6} parent=11 // pred_check_branch
        %209 = sbr.rel (%p207) target = $region16
      $region15: #{downsampling_forward.6} parent=11 // pred_region
        _
      $region16: #{downsampling_forward.6} parent=11 // pred_fallthru
        _
      // Predicated region
      $region17: #{downsampling_forward.6} parent=11 // pred_check
        %p210 = pneg %p93
      $region18: #{downsampling_forward.6} parent=11 // pred_check_branch
        %212 = sbr.rel (%p210) target = $region20
      $region19: #{downsampling_forward.6} parent=11 // pred_region
        _
      $region20: #{downsampling_forward.6} parent=11 // pred_fallthru
        _
      // Predicated region
      $region21: #{downsampling_forward.6} parent=11 // pred_check
        %p213 = pneg %p114
      $region22: #{downsampling_forward.6} parent=11 // pred_check_branch
        %215 = sbr.rel (%p213) target = $region24
      $region23: #{downsampling_forward.6} parent=11 // pred_region
        _
      $region24: #{downsampling_forward.6} parent=11 // pred_fallthru
        _
    $region12: #{downsampling_forward.6} parent=5 // pred_fallthru
      _
    %p216 = scmp.lt.s32.totalorder %s13, 2
    // Predicated region
    $region25: #{downsampling_forward.6} parent=5 // pred_check
      %p217 = pneg %p216
    $region26: #{downsampling_forward.6} parent=5 // pred_check_branch
      %219 = sbr.rel (%p217) target = $region28
    $region27: #{downsampling_forward.6} parent=5 // pred_region
      // Predicated region
      $region29: #{downsampling_forward.6} parent=27 // pred_check
        %p220 = pneg %p45
      $region30: #{downsampling_forward.6} parent=27 // pred_check_branch
        %222 = sbr.rel (%p220) target = $region32
      $region31: #{downsampling_forward.6} parent=27 // pred_region
        %p223 = scmp.lt.s32.totalorder %s20, 1
        %s224 = scalar_select %p223, %s20, 1
        %s225 = smul.addr %s224, 20
        %s226 = smul.addr %s225, 4
        %s227 = scalar_lea.vmem %s0, %s226
      $region32: #{downsampling_forward.6} parent=27 // pred_fallthru
        _
    $region28: #{downsampling_forward.6} parent=5 // pred_fallthru
      _
    %p228 = scmp.le.s32.totalorder 1, %s13
    %p229 = scmp.lt.s32.totalorder %s13, 3
    %p230 = pnand %p228, %p229
    %p231 = pneg %p230
    // Predicated region
    $region33: #{downsampling_forward.6} parent=5 // pred_check
      _
    $region34: #{downsampling_forward.6} parent=5 // pred_check_branch
      %233 = sbr.rel (%p230) target = $region36
    $region35: #{downsampling_forward.6} parent=5 // pred_region
      %s234 = ssub.s32 %s13, 1
      %p235 = scmp.lt.s32.totalorder %s22, 1
      %s236 = scalar_select %p235, %s22, 1
      %s237 = smul.addr %s236, 20
      %s238 = smul.addr %s237, 4
      %s239 = scalar_lea.vmem %s0, %s238
      %p240 = pneg %p51
      %p241 = pneg %p48
      %p242 = pneg %p72
      %p243 = pneg %p69
      %p244 = pneg %p93
      %p245 = pneg %p90
      %p246 = pneg %p114
      %p247 = pneg %p111
      %p248 = pneg %p140
      %p249 = pneg %p137
      %p250 = scmp.lt.s32.totalorder %s22, 1
      %s251 = scalar_select %p250, %s22, 1
      %s252 = smul.addr %s251, 20
      %s253 = smul.addr %s252, 4
      %s254 = scalar_lea.vmem %s4, %s253
      %p255 = pneg %p166
      %p256 = pneg %p163
      %p257 = scmp.lt.s32.totalorder %s22, 1
      %s258 = scalar_select %p257, %s22, 1
      %s259 = scalar_lea.vmem %s5, %s258
      %p260 = pneg %p192
      %p261 = pneg %p189
      %p262 = scmp.lt.s32.totalorder %s22, 1
      %s263 = scalar_select %p262, %s22, 1
      %s264 = scalar_lea.vmem %s6, %s263
      %p265 = scmp.lt.s32.totalorder %s22, 1
      %s266 = scalar_select %p265, %s22, 1
      %s267 = smul.addr %s266, 20
      %s268 = smul.addr %s267, 4
      %s269 = scalar_lea.vmem %s0, %s268
      %p270 = scmp.lt.s32.totalorder %s22, 1
      %s271 = scalar_select %p270, %s22, 1
      %s272 = smul.addr %s271, 20
      %s273 = smul.addr %s272, 4
      %s274 = scalar_lea.vmem %s4, %s273
      %p275 = scmp.lt.s32.totalorder %s22, 1
      %s276 = scalar_select %p275, %s22, 1
      %s277 = scalar_lea.vmem %s5, %s276
      %p278 = scmp.lt.s32.totalorder %s22, 1
      %s279 = scalar_select %p278, %s22, 1
      %s280 = scalar_lea.vmem %s6, %s279
      %p282 = scmp.eq.s32.totalorder %s23, 0
      // Predicated region
      $region37: #{downsampling_forward.6} parent=35 // pred_check
        %p283 = pneg %p282
      $region38: #{downsampling_forward.6} parent=35 // pred_check_branch
        %285 = sbr.rel (%p283) target = $region40
      $region39: #{downsampling_forward.6} parent=35 // pred_region
        %vm286 = vcmask 57344
        %287 = vst.msk [vmem:[%s277] sm:$0x1] %vm286, 0.0
        %288 = vst.msk [vmem:[%s280] sm:$0x1] %vm286, 0.0
        %vm289 = vcmask 60416
        %290 = vst.msk [vmem:[%s274] sm:$0xf] %vm289, 0
        %291 = vst.msk [vmem:[%s274 + $0x4] sm:$0x1] %vm286, 0
        %s292 = scalar_lea.vmem %s274, 72
        %293 = vst.msk [vmem:[%s292] sm:$0xf] %vm289, 0
        %294 = vst.msk [vmem:[%s292 + $0x4] sm:$0x1] %vm286, 0
        %vm295 = vcmask 57344
        %vm296 = vsmask.f32 256
        %vm297 = vmand %vm295, %vm296
        %v298 = vld [vmem:[%s274] sm:$0x1]
        %v299 = vsel %vm297, 0, %v298
        %300 = vst [vmem:[%s274] sm:$0x1] %v299
        %v301 = vld [vmem:[%s274 + $0x8] sm:$0x1]
        %v302 = vsel %vm297, 0, %v301
        %303 = vst [vmem:[%s274 + $0x8] sm:$0x1] %v302
        %v304 = vld [vmem:[%s274 + $0x10] sm:$0x1]
        %v305 = vsel %vm297, 0, %v304
        %306 = vst [vmem:[%s274 + $0x10] sm:$0x1] %v305
        %v307 = vld [vmem:[%s274 + $0x18] sm:$0x1]
        %v308 = vsel %vm297, 0, %v307
        %309 = vst [vmem:[%s274 + $0x18] sm:$0x1] %v308
        %v310 = vld [vmem:[%s274 + $0x20] sm:$0x1]
        %v311 = vsel %vm297, 0, %v310
        %312 = vst [vmem:[%s274 + $0x20] sm:$0x1] %v311
        %v313 = vld [vmem:[%s274 + $0x28] sm:$0x1]
        %v314 = vsel %vm297, 0, %v313
        %315 = vst [vmem:[%s274 + $0x28] sm:$0x1] %v314
        %v316 = vld [vmem:[%s274 + $0x30] sm:$0x1]
        %v317 = vsel %vm297, 0, %v316
        %318 = vst [vmem:[%s274 + $0x30] sm:$0x1] %v317
        %v319 = vld [vmem:[%s274 + $0x38] sm:$0x1]
        %v320 = vsel %vm297, 0, %v319
        %321 = vst [vmem:[%s274 + $0x38] sm:$0x1] %v320
        %v322 = vld [vmem:[%s274 + $0x40] sm:$0x1]
        %v323 = vsel %vm297, 0, %v322
        %324 = vst [vmem:[%s274 + $0x40] sm:$0x1] %v323
        %v325 = vld [vmem:[%s274 + $0x48] sm:$0x1]
        %v326 = vsel %vm297, 0, %v325
        %327 = vst [vmem:[%s274 + $0x48] sm:$0x1] %v326
        %vm328 = vsmask.f32 7938
        %vm329 = vmand %vm295, %vm328
        %v330 = vld [vmem:[%s274 + $0x4] sm:$0x1]
        %v331 = vsel %vm329, 0, %v330
        %332 = vst [vmem:[%s274 + $0x4] sm:$0x1] %v331
        %v333 = vld [vmem:[%s274 + $0xc] sm:$0x1]
        %v334 = vsel %vm329, 0, %v333
        %335 = vst [vmem:[%s274 + $0xc] sm:$0x1] %v334
        %v336 = vld [vmem:[%s274 + $0x14] sm:$0x1]
        %v337 = vsel %vm329, 0, %v336
        %338 = vst [vmem:[%s274 + $0x14] sm:$0x1] %v337
        %v339 = vld [vmem:[%s274 + $0x1c] sm:$0x1]
        %v340 = vsel %vm329, 0, %v339
        %341 = vst [vmem:[%s274 + $0x1c] sm:$0x1] %v340
        %v342 = vld [vmem:[%s274 + $0x24] sm:$0x1]
        %v343 = vsel %vm329, 0, %v342
        %344 = vst [vmem:[%s274 + $0x24] sm:$0x1] %v343
        %v345 = vld [vmem:[%s274 + $0x2c] sm:$0x1]
        %v346 = vsel %vm329, 0, %v345
        %347 = vst [vmem:[%s274 + $0x2c] sm:$0x1] %v346
        %v348 = vld [vmem:[%s274 + $0x34] sm:$0x1]
        %v349 = vsel %vm329, 0, %v348
        %350 = vst [vmem:[%s274 + $0x34] sm:$0x1] %v349
        %v351 = vld [vmem:[%s274 + $0x3c] sm:$0x1]
        %v352 = vsel %vm329, 0, %v351
        %353 = vst [vmem:[%s274 + $0x3c] sm:$0x1] %v352
        %v354 = vld [vmem:[%s274 + $0x44] sm:$0x1]
        %v355 = vsel %vm329, 0, %v354
        %356 = vst [vmem:[%s274 + $0x44] sm:$0x1] %v355
        %v357 = vld [vmem:[%s274 + $0x4c] sm:$0x1]
        %v358 = vsel %vm329, 0, %v357
        %359 = vst [vmem:[%s274 + $0x4c] sm:$0x1] %v358
      $region40: #{downsampling_forward.6} parent=35 // pred_fallthru
        _
      %s360 = smul.u32 %s23, 8
      %s361 = smul.u32 %s360, 2
      %s362 = smul.addr %s361, 4
      %s363 = scalar_lea.vmem %s269, %s362
      %v364 = vld [vmem:[%s363] sm:$0xf]
      %v365 = vld [vmem:[%s363 + $0x4] sm:$0x1]
      %v366 = vld [vmem:[%s363 + $0x8] sm:$0xf]
      %v367 = vld [vmem:[%s363 + $0xc] sm:$0x1]
      %v368 = vld [vmem:[%s363 + $0x10] sm:$0xf]
      %v369 = vld [vmem:[%s363 + $0x14] sm:$0x1]
      %v370 = vld [vmem:[%s363 + $0x18] sm:$0xf]
      %v371 = vld [vmem:[%s363 + $0x1c] sm:$0x1]
      %v372 = vld [vmem:[%s363 + $0x20] sm:$0xf]
      %v373 = vld [vmem:[%s363 + $0x24] sm:$0x1]
      %v374 = vld [vmem:[%s363 + $0x28] sm:$0xf]
      %v375 = vld [vmem:[%s363 + $0x2c] sm:$0x1]
      %v376 = vld [vmem:[%s363 + $0x30] sm:$0xf]
      %v377 = vld [vmem:[%s363 + $0x34] sm:$0x1]
      %v378 = vld [vmem:[%s363 + $0x38] sm:$0xf]
      %v379 = vld [vmem:[%s363 + $0x3c] sm:$0x1]
      %v380 = vld [vmem:[%s363 + $0x40] sm:$0xf]
      %v381 = vld [vmem:[%s363 + $0x44] sm:$0x1]
      %v382 = vld [vmem:[%s363 + $0x48] sm:$0xf]
      %v383 = vld [vmem:[%s363 + $0x4c] sm:$0x1]
      %v384 = vunpack.c.l.bf16 %v364
      %v385 = vunpack.c.l.bf16 %v365
      %v386 = vunpack.c.l.bf16 %v366
      %v387 = vunpack.c.l.bf16 %v367
      %v388 = vunpack.c.l.bf16 %v368
      %v389 = vunpack.c.l.bf16 %v369
      %v390 = vunpack.c.l.bf16 %v370
      %v391 = vunpack.c.l.bf16 %v371
      %v392 = vunpack.c.l.bf16 %v372
      %v393 = vunpack.c.l.bf16 %v373
      %v394 = vunpack.c.l.bf16 %v374
      %v395 = vunpack.c.l.bf16 %v375
      %v396 = vunpack.c.l.bf16 %v376
      %v397 = vunpack.c.l.bf16 %v377
      %v398 = vunpack.c.l.bf16 %v378
      %v399 = vunpack.c.l.bf16 %v379
      %v400 = vunpack.c.l.bf16 %v380
      %v401 = vunpack.c.l.bf16 %v381
      %v402 = vunpack.c.l.bf16 %v382
      %v403 = vunpack.c.l.bf16 %v383
      %v404 = vpack.c.bf16 %v384, %v384
      %v405 = vpack.c.bf16 %v386, %v386
      %v406 = vpack.c.bf16 %v388, %v388
      %v407 = vpack.c.bf16 %v390, %v390
      %v408 = vpack.c.bf16 %v392, %v392
      %v409 = vpack.c.bf16 %v394, %v394
      %v410 = vpack.c.bf16 %v396, %v396
      %v411 = vpack.c.bf16 %v398, %v398
      %vm412 = vcmask 27648
      %413 = vst.msk [vmem:[#allocation2] sm:$0xf] %vm412, %v404
      %414 = vst.msk [vmem:[#allocation2 + $0x4] sm:$0xf] %vm412, %v405
      %415 = vst.msk [vmem:[#allocation2 + $0x8] sm:$0xf] %vm412, %v406
      %416 = vst.msk [vmem:[#allocation2 + $0xc] sm:$0xf] %vm412, %v407
      %417 = vst.msk [vmem:[#allocation2 + $0x10] sm:$0xf] %vm412, %v408
      %418 = vst.msk [vmem:[#allocation2 + $0x14] sm:$0xf] %vm412, %v409
      %419 = vst.msk [vmem:[#allocation2 + $0x18] sm:$0xf] %vm412, %v410
      %420 = vst.msk [vmem:[#allocation2 + $0x1c] sm:$0xf] %vm412, %v411
      %vm437 = vcmask 1046528
      %v438 = vrot.slane %v384, 1
      %v439 = vrot.slane %v385, 1
      %v440 = vsel %vm437, %v438, %v439
      %v441 = vrot.slane %v386, 1
      %v442 = vrot.slane %v387, 1
      %v443 = vsel %vm437, %v441, %v442
      %v444 = vrot.slane %v388, 1
      %v445 = vrot.slane %v389, 1
      %v446 = vsel %vm437, %v444, %v445
      %v447 = vrot.slane %v390, 1
      %v448 = vrot.slane %v391, 1
      %v449 = vsel %vm437, %v447, %v448
      %v450 = vrot.slane %v392, 1
      %v451 = vrot.slane %v393, 1
      %v452 = vsel %vm437, %v450, %v451
      %v453 = vrot.slane %v394, 1
      %v454 = vrot.slane %v395, 1
      %v455 = vsel %vm437, %v453, %v454
      %v456 = vrot.slane %v396, 1
      %v457 = vrot.slane %v397, 1
      %v458 = vsel %vm437, %v456, %v457
      %v459 = vrot.slane %v398, 1
      %v460 = vrot.slane %v399, 1
      %v461 = vsel %vm437, %v459, %v460
      %v470 = vpack.c.bf16 %v440, %v440
      %v471 = vpack.c.bf16 %v443, %v443
      %v472 = vpack.c.bf16 %v446, %v446
      %v473 = vpack.c.bf16 %v449, %v449
      %v474 = vpack.c.bf16 %v452, %v452
      %v475 = vpack.c.bf16 %v455, %v455
      %v476 = vpack.c.bf16 %v458, %v458
      %v477 = vpack.c.bf16 %v461, %v461
      %486 = vrot.lane.b32.xlu0 %v470, 4
      %v487 = vpop.permute.xlu0 %486
      %488 = vrot.lane.b32.xlu0 %v471, 4
      %v489 = vpop.permute.xlu0 %488
      %490 = vrot.lane.b32.xlu0 %v472, 4
      %v491 = vpop.permute.xlu0 %490
      %492 = vrot.lane.b32.xlu0 %v473, 4
      %v493 = vpop.permute.xlu0 %492
      %494 = vrot.lane.b32.xlu0 %v474, 4
      %v495 = vpop.permute.xlu0 %494
      %496 = vrot.lane.b32.xlu0 %v475, 4
      %v497 = vpop.permute.xlu0 %496
      %498 = vrot.lane.b32.xlu0 %v476, 4
      %v499 = vpop.permute.xlu0 %498
      %500 = vrot.lane.b32.xlu0 %v477, 4
      %v501 = vpop.permute.xlu0 %500
      %vm510 = vcmask 60448
      %511 = vst.msk [vmem:[#allocation2] sm:$0xf] %vm510, %v487
      %512 = vst.msk [vmem:[#allocation2 + $0x4] sm:$0xf] %vm510, %v489
      %513 = vst.msk [vmem:[#allocation2 + $0x8] sm:$0xf] %vm510, %v491
      %514 = vst.msk [vmem:[#allocation2 + $0xc] sm:$0xf] %vm510, %v493
      %515 = vst.msk [vmem:[#allocation2 + $0x10] sm:$0xf] %vm510, %v495
      %516 = vst.msk [vmem:[#allocation2 + $0x14] sm:$0xf] %vm510, %v497
      %517 = vst.msk [vmem:[#allocation2 + $0x18] sm:$0xf] %vm510, %v499
      %518 = vst.msk [vmem:[#allocation2 + $0x1c] sm:$0xf] %vm510, %v501
      %vm519 = vcmask 1045504
      %v520 = vrot.slane %v384, 2
      %v521 = vrot.slane %v385, 2
      %v522 = vsel %vm519, %v520, %v521
      %v523 = vrot.slane %v386, 2
      %v524 = vrot.slane %v387, 2
      %v525 = vsel %vm519, %v523, %v524
      %v526 = vrot.slane %v388, 2
      %v527 = vrot.slane %v389, 2
      %v528 = vsel %vm519, %v526, %v527
      %v529 = vrot.slane %v390, 2
      %v530 = vrot.slane %v391, 2
      %v531 = vsel %vm519, %v529, %v530
      %v532 = vrot.slane %v392, 2
      %v533 = vrot.slane %v393, 2
      %v534 = vsel %vm519, %v532, %v533
      %v535 = vrot.slane %v394, 2
      %v536 = vrot.slane %v395, 2
      %v537 = vsel %vm519, %v535, %v536
      %v538 = vrot.slane %v396, 2
      %v539 = vrot.slane %v397, 2
      %v540 = vsel %vm519, %v538, %v539
      %v541 = vrot.slane %v398, 2
      %v542 = vrot.slane %v399, 2
      %v543 = vsel %vm519, %v541, %v542
      %v552 = vpack.c.bf16 %v522, %v522
      %v553 = vpack.c.bf16 %v525, %v525
      %v554 = vpack.c.bf16 %v528, %v528
      %v555 = vpack.c.bf16 %v531, %v531
      %v556 = vpack.c.bf16 %v534, %v534
      %v557 = vpack.c.bf16 %v537, %v537
      %v558 = vpack.c.bf16 %v540, %v540
      %v559 = vpack.c.bf16 %v543, %v543
      %568 = vrot.lane.b32.xlu0 %v552, 8
      %v569 = vpop.permute.xlu0 %568
      %570 = vrot.lane.b32.xlu0 %v553, 8
      %v571 = vpop.permute.xlu0 %570
      %572 = vrot.lane.b32.xlu0 %v554, 8
      %v573 = vpop.permute.xlu0 %572
      %574 = vrot.lane.b32.xlu0 %v555, 8
      %v575 = vpop.permute.xlu0 %574
      %576 = vrot.lane.b32.xlu0 %v556, 8
      %v577 = vpop.permute.xlu0 %576
      %578 = vrot.lane.b32.xlu0 %v557, 8
      %v579 = vpop.permute.xlu0 %578
      %580 = vrot.lane.b32.xlu0 %v558, 8
      %v581 = vpop.permute.xlu0 %580
      %582 = vrot.lane.b32.xlu0 %v559, 8
      %v583 = vpop.permute.xlu0 %582
      %vm592 = vcmask 93248
      %593 = vst.msk [vmem:[#allocation2] sm:$0xf] %vm592, %v569
      %594 = vst.msk [vmem:[#allocation2 + $0x4] sm:$0xf] %vm592, %v571
      %595 = vst.msk [vmem:[#allocation2 + $0x8] sm:$0xf] %vm592, %v573
      %596 = vst.msk [vmem:[#allocation2 + $0xc] sm:$0xf] %vm592, %v575
      %597 = vst.msk [vmem:[#allocation2 + $0x10] sm:$0xf] %vm592, %v577
      %598 = vst.msk [vmem:[#allocation2 + $0x14] sm:$0xf] %vm592, %v579
      %599 = vst.msk [vmem:[#allocation2 + $0x18] sm:$0xf] %vm592, %v581
      %600 = vst.msk [vmem:[#allocation2 + $0x1c] sm:$0xf] %vm592, %v583
      %v601 = vpack.c.bf16 %v400, %v400
      %610 = vrot.lane.b32.xlu0 %v405, 12
      %v611 = vpop.permute.xlu0 %610
      %612 = vrot.lane.b32.xlu0 %v406, 12
      %v613 = vpop.permute.xlu0 %612
      %614 = vrot.lane.b32.xlu0 %v407, 12
      %v615 = vpop.permute.xlu0 %614
      %616 = vrot.lane.b32.xlu0 %v408, 12
      %v617 = vpop.permute.xlu0 %616
      %618 = vrot.lane.b32.xlu0 %v409, 12
      %v619 = vpop.permute.xlu0 %618
      %620 = vrot.lane.b32.xlu0 %v410, 12
      %v621 = vpop.permute.xlu0 %620
      %622 = vrot.lane.b32.xlu0 %v411, 12
      %v623 = vpop.permute.xlu0 %622
      %624 = vrot.lane.b32.xlu0 %v601, 12
      %v625 = vpop.permute.xlu0 %624
      %vm634 = vcmask 126048
      %635 = vst.msk [vmem:[#allocation2] sm:$0xf] %vm634, %v611
      %636 = vst.msk [vmem:[#allocation2 + $0x4] sm:$0xf] %vm634, %v613
      %637 = vst.msk [vmem:[#allocation2 + $0x8] sm:$0xf] %vm634, %v615
      %638 = vst.msk [vmem:[#allocation2 + $0xc] sm:$0xf] %vm634, %v617
      %639 = vst.msk [vmem:[#allocation2 + $0x10] sm:$0xf] %vm634, %v619
      %640 = vst.msk [vmem:[#allocation2 + $0x14] sm:$0xf] %vm634, %v621
      %641 = vst.msk [vmem:[#allocation2 + $0x18] sm:$0xf] %vm634, %v623
      %642 = vst.msk [vmem:[#allocation2 + $0x1c] sm:$0xf] %vm634, %v625
      %v645 = vrot.slane %v400, 1
      %v646 = vrot.slane %v401, 1
      %v647 = vsel %vm437, %v645, %v646
      %v649 = vpack.c.bf16 %v647, %v647
      %651 = vrot.lane.b32.xlu0 %v471, 16
      %v652 = vpop.permute.xlu0 %651
      %653 = vrot.lane.b32.xlu0 %v472, 16
      %v654 = vpop.permute.xlu0 %653
      %655 = vrot.lane.b32.xlu0 %v473, 16
      %v656 = vpop.permute.xlu0 %655
      %657 = vrot.lane.b32.xlu0 %v474, 16
      %v658 = vpop.permute.xlu0 %657
      %659 = vrot.lane.b32.xlu0 %v475, 16
      %v660 = vpop.permute.xlu0 %659
      %661 = vrot.lane.b32.xlu0 %v476, 16
      %v662 = vpop.permute.xlu0 %661
      %663 = vrot.lane.b32.xlu0 %v477, 16
      %v664 = vpop.permute.xlu0 %663
      %665 = vrot.lane.b32.xlu0 %v649, 16
      %v666 = vpop.permute.xlu0 %665
      %vm675 = vcmask 158848
      %676 = vst.msk [vmem:[#allocation2] sm:$0xf] %vm675, %v652
      %677 = vst.msk [vmem:[#allocation2 + $0x4] sm:$0xf] %vm675, %v654
      %678 = vst.msk [vmem:[#allocation2 + $0x8] sm:$0xf] %vm675, %v656
      %679 = vst.msk [vmem:[#allocation2 + $0xc] sm:$0xf] %vm675, %v658
      %680 = vst.msk [vmem:[#allocation2 + $0x10] sm:$0xf] %vm675, %v660
      %681 = vst.msk [vmem:[#allocation2 + $0x14] sm:$0xf] %vm675, %v662
      %682 = vst.msk [vmem:[#allocation2 + $0x18] sm:$0xf] %vm675, %v664
      %683 = vst.msk [vmem:[#allocation2 + $0x1c] sm:$0xf] %vm675, %v666
      %v684 = vrot.slane %v400, 2
      %v685 = vrot.slane %v401, 2
      %v686 = vsel %vm519, %v684, %v685
      %v688 = vpack.c.bf16 %v686, %v686
      %690 = vrot.lane.b32.xlu0 %v553, 20
      %v691 = vpop.permute.xlu0 %690
      %692 = vrot.lane.b32.xlu0 %v554, 20
      %v693 = vpop.permute.xlu0 %692
      %694 = vrot.lane.b32.xlu0 %v555, 20
      %v695 = vpop.permute.xlu0 %694
      %696 = vrot.lane.b32.xlu0 %v556, 20
      %v697 = vpop.permute.xlu0 %696
      %698 = vrot.lane.b32.xlu0 %v557, 20
      %v699 = vpop.permute.xlu0 %698
      %700 = vrot.lane.b32.xlu0 %v558, 20
      %v701 = vpop.permute.xlu0 %700
      %702 = vrot.lane.b32.xlu0 %v559, 20
      %v703 = vpop.permute.xlu0 %702
      %704 = vrot.lane.b32.xlu0 %v688, 20
      %v705 = vpop.permute.xlu0 %704
      %vm714 = vcmask 191648
      %715 = vst.msk [vmem:[#allocation2] sm:$0xf] %vm714, %v691
      %716 = vst.msk [vmem:[#allocation2 + $0x4] sm:$0xf] %vm714, %v693
      %717 = vst.msk [vmem:[#allocation2 + $0x8] sm:$0xf] %vm714, %v695
      %718 = vst.msk [vmem:[#allocation2 + $0xc] sm:$0xf] %vm714, %v697
      %719 = vst.msk [vmem:[#allocation2 + $0x10] sm:$0xf] %vm714, %v699
      %720 = vst.msk [vmem:[#allocation2 + $0x14] sm:$0xf] %vm714, %v701
      %721 = vst.msk [vmem:[#allocation2 + $0x18] sm:$0xf] %vm714, %v703
      %722 = vst.msk [vmem:[#allocation2 + $0x1c] sm:$0xf] %vm714, %v705
      %v723 = vpack.c.bf16 %v402, %v402
      %725 = vrot.lane.b32.xlu0 %v406, 24
      %v726 = vpop.permute.xlu0 %725
      %727 = vrot.lane.b32.xlu0 %v407, 24
      %v728 = vpop.permute.xlu0 %727
      %729 = vrot.lane.b32.xlu0 %v408, 24
      %v730 = vpop.permute.xlu0 %729
      %731 = vrot.lane.b32.xlu0 %v409, 24
      %v732 = vpop.permute.xlu0 %731
      %733 = vrot.lane.b32.xlu0 %v410, 24
      %v734 = vpop.permute.xlu0 %733
      %735 = vrot.lane.b32.xlu0 %v411, 24
      %v736 = vpop.permute.xlu0 %735
      %737 = vrot.lane.b32.xlu0 %v601, 24
      %v738 = vpop.permute.xlu0 %737
      %739 = vrot.lane.b32.xlu0 %v723, 24
      %v740 = vpop.permute.xlu0 %739
      %vm749 = vcmask 224448
      %750 = vst.msk [vmem:[#allocation2] sm:$0xf] %vm749, %v726
      %751 = vst.msk [vmem:[#allocation2 + $0x4] sm:$0xf] %vm749, %v728
      %752 = vst.msk [vmem:[#allocation2 + $0x8] sm:$0xf] %vm749, %v730
      %753 = vst.msk [vmem:[#allocation2 + $0xc] sm:$0xf] %vm749, %v732
      %754 = vst.msk [vmem:[#allocation2 + $0x10] sm:$0xf] %vm749, %v734
      %755 = vst.msk [vmem:[#allocation2 + $0x14] sm:$0xf] %vm749, %v736
      %756 = vst.msk [vmem:[#allocation2 + $0x18] sm:$0xf] %vm749, %v738
      %757 = vst.msk [vmem:[#allocation2 + $0x1c] sm:$0xf] %vm749, %v740
      %v760 = vrot.slane %v402, 1
      %v761 = vrot.slane %v403, 1
      %v762 = vsel %vm437, %v760, %v761
      %v764 = vpack.c.bf16 %v762, %v762
      %766 = vrot.lane.b32.xlu0 %v472, 28
      %v767 = vpop.permute.xlu0 %766
      %768 = vrot.lane.b32.xlu0 %v473, 28
      %v769 = vpop.permute.xlu0 %768
      %770 = vrot.lane.b32.xlu0 %v474, 28
      %v771 = vpop.permute.xlu0 %770
      %772 = vrot.lane.b32.xlu0 %v475, 28
      %v773 = vpop.permute.xlu0 %772
      %774 = vrot.lane.b32.xlu0 %v476, 28
      %v775 = vpop.permute.xlu0 %774
      %776 = vrot.lane.b32.xlu0 %v477, 28
      %v777 = vpop.permute.xlu0 %776
      %778 = vrot.lane.b32.xlu0 %v649, 28
      %v779 = vpop.permute.xlu0 %778
      %780 = vrot.lane.b32.xlu0 %v764, 28
      %v781 = vpop.permute.xlu0 %780
      %vm790 = vcmask 257248
      %791 = vst.msk [vmem:[#allocation2] sm:$0xf] %vm790, %v767
      %792 = vst.msk [vmem:[#allocation2 + $0x4] sm:$0xf] %vm790, %v769
      %793 = vst.msk [vmem:[#allocation2 + $0x8] sm:$0xf] %vm790, %v771
      %794 = vst.msk [vmem:[#allocation2 + $0xc] sm:$0xf] %vm790, %v773
      %795 = vst.msk [vmem:[#allocation2 + $0x10] sm:$0xf] %vm790, %v775
      %796 = vst.msk [vmem:[#allocation2 + $0x14] sm:$0xf] %vm790, %v777
      %797 = vst.msk [vmem:[#allocation2 + $0x18] sm:$0xf] %vm790, %v779
      %798 = vst.msk [vmem:[#allocation2 + $0x1c] sm:$0xf] %vm790, %v781
      %v799 = vrot.slane %v402, 2
      %v800 = vrot.slane %v403, 2
      %v801 = vsel %vm519, %v799, %v800
      %v803 = vpack.c.bf16 %v801, %v801
      %805 = vrot.lane.b32.xlu0 %v554, 32
      %v806 = vpop.permute.xlu0 %805
      %807 = vrot.lane.b32.xlu0 %v555, 32
      %v808 = vpop.permute.xlu0 %807
      %809 = vrot.lane.b32.xlu0 %v556, 32
      %v810 = vpop.permute.xlu0 %809
      %811 = vrot.lane.b32.xlu0 %v557, 32
      %v812 = vpop.permute.xlu0 %811
      %813 = vrot.lane.b32.xlu0 %v558, 32
      %v814 = vpop.permute.xlu0 %813
      %815 = vrot.lane.b32.xlu0 %v559, 32
      %v816 = vpop.permute.xlu0 %815
      %817 = vrot.lane.b32.xlu0 %v688, 32
      %v818 = vpop.permute.xlu0 %817
      %819 = vrot.lane.b32.xlu0 %v803, 32
      %v820 = vpop.permute.xlu0 %819
      %vm829 = vcmask 290048
      %830 = vst.msk [vmem:[#allocation2] sm:$0xf] %vm829, %v806
      %831 = vst.msk [vmem:[#allocation2 + $0x4] sm:$0xf] %vm829, %v808
      %832 = vst.msk [vmem:[#allocation2 + $0x8] sm:$0xf] %vm829, %v810
      %833 = vst.msk [vmem:[#allocation2 + $0xc] sm:$0xf] %vm829, %v812
      %834 = vst.msk [vmem:[#allocation2 + $0x10] sm:$0xf] %vm829, %v814
      %835 = vst.msk [vmem:[#allocation2 + $0x14] sm:$0xf] %vm829, %v816
      %836 = vst.msk [vmem:[#allocation2 + $0x18] sm:$0xf] %vm829, %v818
      %837 = vst.msk [vmem:[#allocation2 + $0x1c] sm:$0xf] %vm829, %v820
      %v838 = vld [vmem:[#allocation2] sm:$0xf]
      %v839 = vld [vmem:[#allocation2 + $0x4] sm:$0xf]
      %v840 = vld [vmem:[#allocation2 + $0x8] sm:$0xf]
      %v841 = vld [vmem:[#allocation2 + $0xc] sm:$0xf]
      %v842 = vld [vmem:[#allocation2 + $0x10] sm:$0xf]
      %v843 = vld [vmem:[#allocation2 + $0x14] sm:$0xf]
      %v844 = vld [vmem:[#allocation2 + $0x18] sm:$0xf]
      %v845 = vld [vmem:[#allocation2 + $0x1c] sm:$0xf]
      %v846 = vld [vmem:[%s3] sm:$0xf]
      %v847 = vld [vmem:[%s3 + $0x4] sm:$0xf]
      %v848 = vld [vmem:[%s3 + $0x8] sm:$0xf]
      %v849 = vld [vmem:[%s3 + $0xc] sm:$0xf]
      %v850 = vld [vmem:[%s3 + $0x10] sm:$0x3]
      %v859 = vunpack.c.l.b16 %v838
      %v860 = vunpack.c.l.b16 %v839
      %v861 = vunpack.c.l.b16 %v840
      %v862 = vunpack.c.l.b16 %v841
      %v863 = vunpack.c.l.b16 %v842
      %v864 = vunpack.c.l.b16 %v843
      %v865 = vunpack.c.l.b16 %v844
      %v866 = vunpack.c.l.b16 %v845
      %v867 = vpack.c.b16 %v860, %v859
      %v868 = vpack.c.b16 %v862, %v861
      %v869 = vpack.c.b16 %v864, %v863
      %v870 = vpack.c.b16 %v866, %v865
      %v876 = vunpack.c.l.b16 %v846
      %v877 = vunpack.c.l.b16 %v847
      %v878 = vunpack.c.l.b16 %v848
      %v879 = vunpack.c.l.b16 %v849
      %v880 = vunpack.c.l.b16 %v850
      %v881 = vpack.c.b16 %v877, %v876
      %v882 = vpack.c.b16 %v879, %v878
      %v883 = vpack.c.b16 %v880, %v880
      %vm886 = vcmask 293888
      %v888 = vsel %vm886, %v867, 0
      %v891 = vsel %vm886, %v868, 0
      %v894 = vsel %vm886, %v869, 0
      %v897 = vsel %vm886, %v870, 0
      %vm899 = vcmask 1041408
      %v901 = vsel %vm899, %v883, 0
      %903 = vmatpush.bf16.msra.mxu0 0
      %904 = vmatpush.bf16.msra.mxu0 0
      %905 = vmatpush.bf16.msra.mxu0 0
      %906 = vmatpush.bf16.msra.mxu0 0
      %907 = vmatpush.bf16.msra.mxu0 0
      %908 = vmatpush.bf16.msra.mxu0 %v901
      %909 = vmatpush.bf16.msra.mxu0 %v882
      %910 = vmatpush.bf16.msra.mxu0 %v881
      %911 = vmatmul.bf16.gmra.mxu0 %v888
      %v912 = vpop.f32.mrf.mxu0
      %v913 = vadd.f32 0.0, %v912
      %v914 = vpop.f32.mrf.mxu0
      %v915 = vadd.f32 0.0, %v914
      %916 = vmatmul.bf16.gmra.mxu0 %v891
      %v917 = vpop.f32.mrf.mxu0
      %v918 = vadd.f32 0.0, %v917
      %v919 = vpop.f32.mrf.mxu0
      %v920 = vadd.f32 0.0, %v919
      %921 = vmatmul.bf16.gmra.mxu0 %v894
      %v922 = vpop.f32.mrf.mxu0
      %v923 = vadd.f32 0.0, %v922
      %v924 = vpop.f32.mrf.mxu0
      %v925 = vadd.f32 0.0, %v924
      %926 = vmatmul.bf16.gmra.mxu0 %v897
      %v927 = vpop.f32.mrf.mxu0
      %v928 = vadd.f32 0.0, %v927
      %v929 = vpop.f32.mrf.mxu0
      %v930 = vadd.f32 0.0, %v929
      %931 = vdwg.mxu0
      %v932 = vld [vmem:[%s277] sm:$0x1]
      %vm933 = vcmask 64512
      %v934 = vsel %vm933, %v913, 0.0
      %v935 = vsel %vm933, %v915, 0.0
      %v936 = vadd.f32 %v934, %v935
      %v937 = vsel %vm933, %v918, 0.0
      %v938 = vadd.f32 %v936, %v937
      %v939 = vsel %vm933, %v920, 0.0
      %v940 = vadd.f32 %v938, %v939
      %v941 = vsel %vm933, %v923, 0.0
      %v942 = vadd.f32 %v940, %v941
      %v943 = vsel %vm933, %v925, 0.0
      %v944 = vadd.f32 %v942, %v943
      %v945 = vsel %vm933, %v928, 0.0
      %v946 = vadd.f32 %v944, %v945
      %v947 = vsel %vm933, %v930, 0.0
      %v948 = vadd.f32 %v946, %v947
      %v949 = vrot.slane %v948, 4
      %v950 = vadd.f32 %v948, %v949
      %v951 = vrot.slane %v950, 2
      %v952 = vadd.f32 %v950, %v951
      %v953 = vrot.slane %v952, 1
      %v954 = vadd.f32 %v952, %v953
      %v955 = vadd.f32 %v932, %v954
      %vm956 = vcmask 57344
      %957 = vst.msk [vmem:[%s277] sm:$0x1] %vm956, %v955
      %v958 = vld [vmem:[%s280] sm:$0x1]
      %v959 = vmul.f32 %v913, %v913
      %v960 = vmul.f32 %v915, %v915
      %v961 = vmul.f32 %v918, %v918
      %v962 = vmul.f32 %v920, %v920
      %v963 = vmul.f32 %v923, %v923
      %v964 = vmul.f32 %v925, %v925
      %v965 = vmul.f32 %v928, %v928
      %v966 = vmul.f32 %v930, %v930
      %v967 = vsel %vm933, %v959, 0.0
      %v968 = vsel %vm933, %v960, 0.0
      %v969 = vadd.f32 %v967, %v968
      %v970 = vsel %vm933, %v961, 0.0
      %v971 = vadd.f32 %v969, %v970
      %v972 = vsel %vm933, %v962, 0.0
      %v973 = vadd.f32 %v971, %v972
      %v974 = vsel %vm933, %v963, 0.0
      %v975 = vadd.f32 %v973, %v974
      %v976 = vsel %vm933, %v964, 0.0
      %v977 = vadd.f32 %v975, %v976
      %v978 = vsel %vm933, %v965, 0.0
      %v979 = vadd.f32 %v977, %v978
      %v980 = vsel %vm933, %v966, 0.0
      %v981 = vadd.f32 %v979, %v980
      %v982 = vrot.slane %v981, 4
      %v983 = vadd.f32 %v981, %v982
      %v984 = vrot.slane %v983, 2
      %v985 = vadd.f32 %v983, %v984
      %v986 = vrot.slane %v985, 1
      %v987 = vadd.f32 %v985, %v986
      %v988 = vadd.f32 %v958, %v987
      %989 = vst.msk [vmem:[%s280] sm:$0x1] %vm956, %v988
      %v990 = vpack.c.bf16 %v913, %v913
      %v991 = vpack.c.bf16 %v915, %v915
      %v992 = vpack.c.bf16 %v918, %v918
      %v993 = vpack.c.bf16 %v920, %v920
      %v994 = vpack.c.bf16 %v923, %v923
      %v995 = vpack.c.bf16 %v925, %v925
      %v996 = vpack.c.bf16 %v928, %v928
      %v997 = vpack.c.bf16 %v930, %v930
      %s998 = sadd.s32 %s360, 1
      %v1000 = vshrl.u32 %v990, 16
      %v1002 = vrot.slane %v1000, 7
      %v1003 = vshll.u32 %v990, 16
      %v1005 = vor.u32 %v1002, %v1003
      %v1006 = vrot.slane %v1002, 4
      %v1008 = vshrl.u32 %v991, 16
      %v1010 = vrot.slane %v1008, 7
      %v1011 = vshll.u32 %v991, 16
      %v1013 = vor.u32 %v1010, %v1011
      %v1014 = vrot.slane %v1010, 4
      %v1016 = vshrl.u32 %v992, 16
      %v1018 = vrot.slane %v1016, 7
      %v1019 = vshll.u32 %v992, 16
      %v1021 = vor.u32 %v1018, %v1019
      %v1022 = vrot.slane %v1018, 4
      %v1024 = vshrl.u32 %v993, 16
      %v1026 = vrot.slane %v1024, 7
      %v1027 = vshll.u32 %v993, 16
      %v1029 = vor.u32 %v1026, %v1027
      %v1030 = vrot.slane %v1026, 4
      %v1032 = vshrl.u32 %v994, 16
      %v1034 = vrot.slane %v1032, 7
      %v1035 = vshll.u32 %v994, 16
      %v1037 = vor.u32 %v1034, %v1035
      %v1038 = vrot.slane %v1034, 4
      %v1040 = vshrl.u32 %v995, 16
      %v1042 = vrot.slane %v1040, 7
      %v1043 = vshll.u32 %v995, 16
      %v1045 = vor.u32 %v1042, %v1043
      %v1046 = vrot.slane %v1042, 4
      %v1048 = vshrl.u32 %v996, 16
      %v1050 = vrot.slane %v1048, 7
      %v1051 = vshll.u32 %v996, 16
      %v1053 = vor.u32 %v1050, %v1051
      %v1054 = vrot.slane %v1050, 4
      %v1056 = vshrl.u32 %v997, 16
      %v1058 = vrot.slane %v1056, 7
      %v1059 = vshll.u32 %v997, 16
      %v1061 = vor.u32 %v1058, %v1059
      %v1062 = vrot.slane %v1058, 4
      %s1079 = smul.u32 %s998, 2
      %s1080 = smul.addr %s1079, 4
      %s1081 = scalar_lea.vmem %s274, %s1080
      %vm1082 = vcmask 60416
      %vm1083 = vsmask.f32 7938
      %vm1084 = vmand %vm1082, %vm1083
      %v1085 = vld [vmem:[%s1081] sm:$0xf]
      %v1086 = vsel %vm1084, %v1005, %v1085
      %1087 = vst [vmem:[%s1081] sm:$0xf] %v1086
      %vm1088 = vcmask 57344
      %vm1089 = vsmask.f32 256
      %vm1090 = vmand %vm1088, %vm1089
      %v1091 = vld [vmem:[%s1081 + $0x4] sm:$0x1]
      %v1092 = vsel %vm1090, %v1006, %v1091
      %1093 = vst [vmem:[%s1081 + $0x4] sm:$0x1] %v1092
      %v1094 = vld [vmem:[%s1081 + $0x8] sm:$0xf]
      %v1095 = vsel %vm1084, %v1013, %v1094
      %1096 = vst [vmem:[%s1081 + $0x8] sm:$0xf] %v1095
      %v1097 = vld [vmem:[%s1081 + $0xc] sm:$0x1]
      %v1098 = vsel %vm1090, %v1014, %v1097
      %1099 = vst [vmem:[%s1081 + $0xc] sm:$0x1] %v1098
      %v1100 = vld [vmem:[%s1081 + $0x10] sm:$0xf]
      %v1101 = vsel %vm1084, %v1021, %v1100
      %1102 = vst [vmem:[%s1081 + $0x10] sm:$0xf] %v1101
      %v1103 = vld [vmem:[%s1081 + $0x14] sm:$0x1]
      %v1104 = vsel %vm1090, %v1022, %v1103
      %1105 = vst [vmem:[%s1081 + $0x14] sm:$0x1] %v1104
      %v1106 = vld [vmem:[%s1081 + $0x18] sm:$0xf]
      %v1107 = vsel %vm1084, %v1029, %v1106
      %1108 = vst [vmem:[%s1081 + $0x18] sm:$0xf] %v1107
      %v1109 = vld [vmem:[%s1081 + $0x1c] sm:$0x1]
      %v1110 = vsel %vm1090, %v1030, %v1109
      %1111 = vst [vmem:[%s1081 + $0x1c] sm:$0x1] %v1110
      %v1112 = vld [vmem:[%s1081 + $0x20] sm:$0xf]
      %v1113 = vsel %vm1084, %v1037, %v1112
      %1114 = vst [vmem:[%s1081 + $0x20] sm:$0xf] %v1113
      %v1115 = vld [vmem:[%s1081 + $0x24] sm:$0x1]
      %v1116 = vsel %vm1090, %v1038, %v1115
      %1117 = vst [vmem:[%s1081 + $0x24] sm:$0x1] %v1116
      %v1118 = vld [vmem:[%s1081 + $0x28] sm:$0xf]
      %v1119 = vsel %vm1084, %v1045, %v1118
      %1120 = vst [vmem:[%s1081 + $0x28] sm:$0xf] %v1119
      %v1121 = vld [vmem:[%s1081 + $0x2c] sm:$0x1]
      %v1122 = vsel %vm1090, %v1046, %v1121
      %1123 = vst [vmem:[%s1081 + $0x2c] sm:$0x1] %v1122
      %v1124 = vld [vmem:[%s1081 + $0x30] sm:$0xf]
      %v1125 = vsel %vm1084, %v1053, %v1124
      %1126 = vst [vmem:[%s1081 + $0x30] sm:$0xf] %v1125
      %v1127 = vld [vmem:[%s1081 + $0x34] sm:$0x1]
      %v1128 = vsel %vm1090, %v1054, %v1127
      %1129 = vst [vmem:[%s1081 + $0x34] sm:$0x1] %v1128
      %v1130 = vld [vmem:[%s1081 + $0x38] sm:$0xf]
      %v1131 = vsel %vm1084, %v1061, %v1130
      %1132 = vst [vmem:[%s1081 + $0x38] sm:$0xf] %v1131
      %v1133 = vld [vmem:[%s1081 + $0x3c] sm:$0x1]
      %v1134 = vsel %vm1090, %v1062, %v1133
      %1135 = vst [vmem:[%s1081 + $0x3c] sm:$0x1] %v1134
      %p1136 = scmp.lt.s32.totalorder %s22, 1
      %s1137 = scalar_select %p1136, %s22, 1
      %s1138 = smul.addr %s1137, 20
      %s1139 = smul.addr %s1138, 4
      %s1140 = scalar_lea.vmem %s4, %s1139
      %p1141 = scmp.lt.s32.totalorder %s22, 1
      %s1142 = scalar_select %p1141, %s22, 1
      %s1143 = scalar_lea.vmem %s5, %s1142
      %p1144 = scmp.lt.s32.totalorder %s22, 1
      %s1145 = scalar_select %p1144, %s22, 1
      %s1146 = scalar_lea.vmem %s6, %s1145
      // Predicated region
      $region41: #{downsampling_forward.6} parent=35 // pred_check
        %p1147 = pneg %p137
      $region42: #{downsampling_forward.6} parent=35 // pred_check_branch
        %1149 = sbr.rel (%p1147) target = $region44
      $region43: #{downsampling_forward.6} parent=35 // pred_region
        _
      $region44: #{downsampling_forward.6} parent=35 // pred_fallthru
        _
      // Predicated region
      $region45: #{downsampling_forward.6} parent=35 // pred_check
        %p1150 = pneg %p163
      $region46: #{downsampling_forward.6} parent=35 // pred_check_branch
        %1152 = sbr.rel (%p1150) target = $region48
      $region47: #{downsampling_forward.6} parent=35 // pred_region
        _
      $region48: #{downsampling_forward.6} parent=35 // pred_fallthru
        _
      // Predicated region
      $region49: #{downsampling_forward.6} parent=35 // pred_check
        %p1153 = pneg %p189
      $region50: #{downsampling_forward.6} parent=35 // pred_check_branch
        %1155 = sbr.rel (%p1153) target = $region52
      $region51: #{downsampling_forward.6} parent=35 // pred_region
        _
      $region52: #{downsampling_forward.6} parent=35 // pred_fallthru
        _
    $region36: #{downsampling_forward.6} parent=5 // pred_fallthru
      _
    %p1156 = scmp.le.s32.totalorder 2, %s13
    // Predicated region
    $region53: #{downsampling_forward.6} parent=5 // pred_check
      %p1157 = pneg %p1156
    $region54: #{downsampling_forward.6} parent=5 // pred_check_branch
      %1159 = sbr.rel (%p1157) target = $region56
    $region55: #{downsampling_forward.6} parent=5 // pred_region
      %s1160 = ssub.s32 %s13, 2
      // Predicated region
      $region57: #{downsampling_forward.6} parent=55 // pred_check
        %p1161 = pneg %p143
      $region58: #{downsampling_forward.6} parent=55 // pred_check_branch
        %1163 = sbr.rel (%p1161) target = $region60
      $region59: #{downsampling_forward.6} parent=55 // pred_region
        %p1164 = scmp.lt.s32.totalorder %s24, 1
        %s1165 = scalar_select %p1164, %s24, 1
        %s1166 = smul.addr %s1165, 20
        %s1167 = smul.addr %s1166, 4
        %s1168 = scalar_lea.vmem %s4, %s1167
      $region60: #{downsampling_forward.6} parent=55 // pred_fallthru
        _
      // Predicated region
      $region61: #{downsampling_forward.6} parent=55 // pred_check
        %p1169 = pneg %p169
      $region62: #{downsampling_forward.6} parent=55 // pred_check_branch
        %1171 = sbr.rel (%p1169) target = $region64
      $region63: #{downsampling_forward.6} parent=55 // pred_region
        %p1172 = scmp.lt.s32.totalorder %s24, 1
        %s1173 = scalar_select %p1172, %s24, 1
        %s1174 = scalar_lea.vmem %s5, %s1173
      $region64: #{downsampling_forward.6} parent=55 // pred_fallthru
        _
      // Predicated region
      $region65: #{downsampling_forward.6} parent=55 // pred_check
        %p1175 = pneg %p195
      $region66: #{downsampling_forward.6} parent=55 // pred_check_branch
        %1177 = sbr.rel (%p1175) target = $region68
      $region67: #{downsampling_forward.6} parent=55 // pred_region
        %p1178 = scmp.lt.s32.totalorder %s24, 1
        %s1179 = scalar_select %p1178, %s24, 1
        %s1180 = scalar_lea.vmem %s6, %s1179
      $region68: #{downsampling_forward.6} parent=55 // pred_fallthru
        _
    $region56: #{downsampling_forward.6} parent=5 // pred_fallthru
      _
  $region6: #{downsampling_forward.6} parent=0 // loop_footer
    %s17 = sadd.s32 1, %s13
  $region7: #{downsampling_forward.6} parent=0 // loop_footer_branch
    %12 = sbr.rel target = $region3
  $region8: #{downsampling_forward.6} parent=0 // loop_exit
    _

// kernel: downsampling_forward.7
$region0: #{downsampling_forward.7}
  #allocation0 [shape = 'u32[]', space=smem, size = 0x4, offset = 0x4, fixed_abs, tag = 'smem constant byte address 0x4 - core index']
  #allocation1 [shape = 'u32[72,128]{1,0:T(1,128)}', space=vmem, size = 0x9000, scoped, tag = 'internal scratch']
  #allocation2 [shape = 'bf16[64,72]{1,0:T(8,128)(2,1)}', space=vmem, size = 0x4000, scoped, tag = 'scratch operand']
  %s0 = inlined_call_operand.vmem [shape: bf16[2,10,10,8], index: 0, kind: input, shape index: {}]
  %s1 = inlined_call_operand.vmem [shape: f32[1,8], index: 1, kind: input, shape index: {}]
  %s2 = inlined_call_operand.vmem [shape: f32[1,8], index: 2, kind: input, shape index: {}]
  %s3 = inlined_call_operand.vmem [shape: bf16[72,8], index: 3, kind: input, shape index: {}]
  %s4 = inlined_call_operand.vmem [shape: bf16[2,10,10,8], index: 4, kind: output, shape index: {0}]
  %s5 = inlined_call_operand.vmem [shape: f32[2,1,8], index: 5, kind: output, shape index: {1}]
  %s6 = inlined_call_operand.vmem [shape: f32[2,1,8], index: 6, kind: output, shape index: {2}]
  %7 = xla_tuple %s4, %s5, %s6
  %s8 = sld [smem:[#allocation0]]
  $region69: #{downsampling_forward.7} parent=0
    _
  %s10 = ssub.s32 1, %s8
  %s11 = scalar_select 0, %s10, %s8
  loop: start=0, step=1, limit=4
  $region2: #{downsampling_forward.7} parent=0 // loop_pre_header
    _
  $region3: #{downsampling_forward.7} parent=0 // loop_header
    %s13 = sphi 0, %s17
    %p14 = scmp.ge.s32.totalorder %s13, 4
    %s20 = sphi 0, %s32
    %s21 = sphi 0, %s28
    %s22 = sphi 0, %s20
    %s23 = sphi 0, %s21
    %s24 = sphi 0, %s22
    %s25 = sphi 0, %s23
    %s35 = sphi 0, %s37
    %s38 = sphi 0, %s35
    %s39 = sphi 0, %s38
    %s55 = sphi 0, %s39
    %s59 = sphi 0, %s59
    %s61 = sphi 0, %s59
    %s62 = sphi 0, %s61
    %s76 = sphi 0, %s62
    %s80 = sphi 0, %s80
    %s82 = sphi 0, %s80
    %s83 = sphi 0, %s82
    %s97 = sphi 0, %s83
    %s101 = sphi 0, %s101
    %s103 = sphi 0, %s101
    %s104 = sphi 0, %s103
    %s118 = sphi 0, %s104
    %s124 = sphi 0, %s126
    %s127 = sphi 0, %s124
    %s128 = sphi 0, %s127
    %s144 = sphi 0, %s128
    %s150 = sphi 0, %s152
    %s153 = sphi 0, %s150
    %s154 = sphi 0, %s153
    %s170 = sphi 0, %s154
    %s176 = sphi 0, %s178
    %s179 = sphi 0, %s176
    %s180 = sphi 0, %s179
    %s196 = sphi 0, %s180
  $region4: #{downsampling_forward.7} parent=0 // loop_header_branch
    %16 = sbr.rel (%p14) target = $region8
  $region5: #{downsampling_forward.7} parent=0 // loop_body
    %s18 = ssub.s32 %s13, 1
    %s19 = ssub.s32 %s13, 2
    %s26 = sadd.s32 1, %s21
    %p27 = scmp.ge.s32.totalorder %s26, 1
    %s28 = scalar_select %p27, 0, %s26
    %s29 = sadd.s32 1, %s20
    %s30 = scalar_select %p27, %s29, %s20
    %p31 = scmp.ge.s32.totalorder %s30, 2
    %s32 = scalar_select %p31, 0, %s30
    %s33 = ssub.s32 %s20, %s32
    %p34 = scmp.eq.s32.totalorder %s33, 0
    %s36 = sadd.s32 %s35, 1
    %s37 = scalar_select %p34, %s35, %s36
    %p40 = pneg %p34
    %p41 = scmp.eq.s32.totalorder %s13, 1
    %p42 = por %p40, %p41
    %p43 = scmp.ne.s32.totalorder %s35, %s38
    %p44 = scmp.eq.s32.totalorder %s13, 0
    %p45 = por %p43, %p44
    %p46 = scmp.ne.s32.totalorder %s35, %s38
    %p47 = scmp.eq.s32.totalorder %s18, 1
    %p48 = por %p46, %p47
    %p49 = scmp.ne.s32.totalorder %s38, %s39
    %p50 = scmp.eq.s32.totalorder %s18, 0
    %p51 = por %p49, %p50
    %p52 = scmp.ne.s32.totalorder %s38, %s39
    %p53 = scmp.eq.s32.totalorder %s19, 1
    %p54 = por %p52, %p53
    %p56 = scmp.ne.s32.totalorder %s39, %s55
    %p57 = scmp.eq.s32.totalorder %s19, 0
    %p58 = por %p56, %p57
    %s60 = sadd.s32 %s59, 1
    %p63 = scmp.eq.s32.totalorder %s13, 1
    %p64 = scmp.ne.s32.totalorder %s59, %s61
    %p65 = scmp.eq.s32.totalorder %s13, 0
    %p66 = por %p64, %p65
    %p67 = scmp.ne.s32.totalorder %s59, %s61
    %p68 = scmp.eq.s32.totalorder %s18, 1
    %p69 = por %p67, %p68
    %p70 = scmp.ne.s32.totalorder %s61, %s62
    %p71 = scmp.eq.s32.totalorder %s18, 0
    %p72 = por %p70, %p71
    %p73 = scmp.ne.s32.totalorder %s61, %s62
    %p74 = scmp.eq.s32.totalorder %s19, 1
    %p75 = por %p73, %p74
    %p77 = scmp.ne.s32.totalorder %s62, %s76
    %p78 = scmp.eq.s32.totalorder %s19, 0
    %p79 = por %p77, %p78
    %s81 = sadd.s32 %s80, 1
    %p84 = scmp.eq.s32.totalorder %s13, 1
    %p85 = scmp.ne.s32.totalorder %s80, %s82
    %p86 = scmp.eq.s32.totalorder %s13, 0
    %p87 = por %p85, %p86
    %p88 = scmp.ne.s32.totalorder %s80, %s82
    %p89 = scmp.eq.s32.totalorder %s18, 1
    %p90 = por %p88, %p89
    %p91 = scmp.ne.s32.totalorder %s82, %s83
    %p92 = scmp.eq.s32.totalorder %s18, 0
    %p93 = por %p91, %p92
    %p94 = scmp.ne.s32.totalorder %s82, %s83
    %p95 = scmp.eq.s32.totalorder %s19, 1
    %p96 = por %p94, %p95
    %p98 = scmp.ne.s32.totalorder %s83, %s97
    %p99 = scmp.eq.s32.totalorder %s19, 0
    %p100 = por %p98, %p99
    %s102 = sadd.s32 %s101, 1
    %p105 = scmp.eq.s32.totalorder %s13, 1
    %p106 = scmp.ne.s32.totalorder %s101, %s103
    %p107 = scmp.eq.s32.totalorder %s13, 0
    %p108 = por %p106, %p107
    %p109 = scmp.ne.s32.totalorder %s101, %s103
    %p110 = scmp.eq.s32.totalorder %s18, 1
    %p111 = por %p109, %p110
    %p112 = scmp.ne.s32.totalorder %s103, %s104
    %p113 = scmp.eq.s32.totalorder %s18, 0
    %p114 = por %p112, %p113
    %p115 = scmp.ne.s32.totalorder %s103, %s104
    %p116 = scmp.eq.s32.totalorder %s19, 1
    %p117 = por %p115, %p116
    %p119 = scmp.ne.s32.totalorder %s104, %s118
    %p120 = scmp.eq.s32.totalorder %s19, 0
    %p121 = por %p119, %p120
    %s122 = ssub.s32 %s20, %s32
    %p123 = scmp.eq.s32.totalorder %s122, 0
    %s125 = sadd.s32 %s124, 1
    %s126 = scalar_select %p123, %s124, %s125
    %p129 = pneg %p123
    %p130 = scmp.eq.s32.totalorder %s13, 1
    %p131 = por %p129, %p130
    %p132 = scmp.ne.s32.totalorder %s124, %s127
    %p133 = scmp.eq.s32.totalorder %s13, 0
    %p134 = por %p132, %p133
    %p135 = scmp.ne.s32.totalorder %s124, %s127
    %p136 = scmp.eq.s32.totalorder %s18, 1
    %p137 = por %p135, %p136
    %p138 = scmp.ne.s32.totalorder %s127, %s128
    %p139 = scmp.eq.s32.totalorder %s18, 0
    %p140 = por %p138, %p139
    %p141 = scmp.ne.s32.totalorder %s127, %s128
    %p142 = scmp.eq.s32.totalorder %s19, 1
    %p143 = por %p141, %p142
    %p145 = scmp.ne.s32.totalorder %s128, %s144
    %p146 = scmp.eq.s32.totalorder %s19, 0
    %p147 = por %p145, %p146
    %s148 = ssub.s32 %s20, %s32
    %p149 = scmp.eq.s32.totalorder %s148, 0
    %s151 = sadd.s32 %s150, 1
    %s152 = scalar_select %p149, %s150, %s151
    %p155 = pneg %p149
    %p156 = scmp.eq.s32.totalorder %s13, 1
    %p157 = por %p155, %p156
    %p158 = scmp.ne.s32.totalorder %s150, %s153
    %p159 = scmp.eq.s32.totalorder %s13, 0
    %p160 = por %p158, %p159
    %p161 = scmp.ne.s32.totalorder %s150, %s153
    %p162 = scmp.eq.s32.totalorder %s18, 1
    %p163 = por %p161, %p162
    %p164 = scmp.ne.s32.totalorder %s153, %s154
    %p165 = scmp.eq.s32.totalorder %s18, 0
    %p166 = por %p164, %p165
    %p167 = scmp.ne.s32.totalorder %s153, %s154
    %p168 = scmp.eq.s32.totalorder %s19, 1
    %p169 = por %p167, %p168
    %p171 = scmp.ne.s32.totalorder %s154, %s170
    %p172 = scmp.eq.s32.totalorder %s19, 0
    %p173 = por %p171, %p172
    %s174 = ssub.s32 %s20, %s32
    %p175 = scmp.eq.s32.totalorder %s174, 0
    %s177 = sadd.s32 %s176, 1
    %s178 = scalar_select %p175, %s176, %s177
    %p181 = pneg %p175
    %p182 = scmp.eq.s32.totalorder %s13, 1
    %p183 = por %p181, %p182
    %p184 = scmp.ne.s32.totalorder %s176, %s179
    %p185 = scmp.eq.s32.totalorder %s13, 0
    %p186 = por %p184, %p185
    %p187 = scmp.ne.s32.totalorder %s176, %s179
    %p188 = scmp.eq.s32.totalorder %s18, 1
    %p189 = por %p187, %p188
    %p190 = scmp.ne.s32.totalorder %s179, %s180
    %p191 = scmp.eq.s32.totalorder %s18, 0
    %p192 = por %p190, %p191
    %p193 = scmp.ne.s32.totalorder %s179, %s180
    %p194 = scmp.eq.s32.totalorder %s19, 1
    %p195 = por %p193, %p194
    %p197 = scmp.ne.s32.totalorder %s180, %s196
    %p198 = scmp.eq.s32.totalorder %s19, 0
    %p199 = por %p197, %p198
    %p200 = scmp.le.s32.totalorder 1, %s13
    %p201 = scmp.lt.s32.totalorder %s13, 3
    %p202 = pnand %p200, %p201
    %p203 = pneg %p202
    // Predicated region
    $region9: #{downsampling_forward.7} parent=5 // pred_check
      _
    $region10: #{downsampling_forward.7} parent=5 // pred_check_branch
      %205 = sbr.rel (%p202) target = $region12
    $region11: #{downsampling_forward.7} parent=5 // pred_region
      %s206 = ssub.s32 %s13, 1
      // Predicated region
      $region13: #{downsampling_forward.7} parent=11 // pred_check
        %p207 = pneg %p72
      $region14: #{downsampling_forward.7} parent=11 // pred_check_branch
        %209 = sbr.rel (%p207) target = $region16
      $region15: #{downsampling_forward.7} parent=11 // pred_region
        _
      $region16: #{downsampling_forward.7} parent=11 // pred_fallthru
        _
      // Predicated region
      $region17: #{downsampling_forward.7} parent=11 // pred_check
        %p210 = pneg %p93
      $region18: #{downsampling_forward.7} parent=11 // pred_check_branch
        %212 = sbr.rel (%p210) target = $region20
      $region19: #{downsampling_forward.7} parent=11 // pred_region
        _
      $region20: #{downsampling_forward.7} parent=11 // pred_fallthru
        _
      // Predicated region
      $region21: #{downsampling_forward.7} parent=11 // pred_check
        %p213 = pneg %p114
      $region22: #{downsampling_forward.7} parent=11 // pred_check_branch
        %215 = sbr.rel (%p213) target = $region24
      $region23: #{downsampling_forward.7} parent=11 // pred_region
        _
      $region24: #{downsampling_forward.7} parent=11 // pred_fallthru
        _
    $region12: #{downsampling_forward.7} parent=5 // pred_fallthru
      _
    %p216 = scmp.lt.s32.totalorder %s13, 2
    // Predicated region
    $region25: #{downsampling_forward.7} parent=5 // pred_check
      %p217 = pneg %p216
    $region26: #{downsampling_forward.7} parent=5 // pred_check_branch
      %219 = sbr.rel (%p217) target = $region28
    $region27: #{downsampling_forward.7} parent=5 // pred_region
      // Predicated region
      $region29: #{downsampling_forward.7} parent=27 // pred_check
        %p220 = pneg %p45
      $region30: #{downsampling_forward.7} parent=27 // pred_check_branch
        %222 = sbr.rel (%p220) target = $region32
      $region31: #{downsampling_forward.7} parent=27 // pred_region
        %p223 = scmp.lt.s32.totalorder %s20, 1
        %s224 = scalar_select %p223, %s20, 1
        %s225 = smul.addr %s224, 20
        %s226 = smul.addr %s225, 4
        %s227 = scalar_lea.vmem %s0, %s226
      $region32: #{downsampling_forward.7} parent=27 // pred_fallthru
        _
    $region28: #{downsampling_forward.7} parent=5 // pred_fallthru
      _
    %p228 = scmp.le.s32.totalorder 1, %s13
    %p229 = scmp.lt.s32.totalorder %s13, 3
    %p230 = pnand %p228, %p229
    %p231 = pneg %p230
    // Predicated region
    $region33: #{downsampling_forward.7} parent=5 // pred_check
      _
    $region34: #{downsampling_forward.7} parent=5 // pred_check_branch
      %233 = sbr.rel (%p230) target = $region36
    $region35: #{downsampling_forward.7} parent=5 // pred_region
      %s234 = ssub.s32 %s13, 1
      %p235 = scmp.lt.s32.totalorder %s22, 1
      %s236 = scalar_select %p235, %s22, 1
      %s237 = smul.addr %s236, 20
      %s238 = smul.addr %s237, 4
      %s239 = scalar_lea.vmem %s0, %s238
      %p240 = pneg %p51
      %p241 = pneg %p48
      %p242 = pneg %p72
      %p243 = pneg %p69
      %p244 = pneg %p93
      %p245 = pneg %p90
      %p246 = pneg %p114
      %p247 = pneg %p111
      %p248 = pneg %p140
      %p249 = pneg %p137
      %p250 = scmp.lt.s32.totalorder %s22, 1
      %s251 = scalar_select %p250, %s22, 1
      %s252 = smul.addr %s251, 20
      %s253 = smul.addr %s252, 4
      %s254 = scalar_lea.vmem %s4, %s253
      %p255 = pneg %p166
      %p256 = pneg %p163
      %p257 = scmp.lt.s32.totalorder %s22, 1
      %s258 = scalar_select %p257, %s22, 1
      %s259 = scalar_lea.vmem %s5, %s258
      %p260 = pneg %p192
      %p261 = pneg %p189
      %p262 = scmp.lt.s32.totalorder %s22, 1
      %s263 = scalar_select %p262, %s22, 1
      %s264 = scalar_lea.vmem %s6, %s263
      %p265 = scmp.lt.s32.totalorder %s22, 1
      %s266 = scalar_select %p265, %s22, 1
      %s267 = smul.addr %s266, 20
      %s268 = smul.addr %s267, 4
      %s269 = scalar_lea.vmem %s0, %s268
      %p270 = scmp.lt.s32.totalorder %s22, 1
      %s271 = scalar_select %p270, %s22, 1
      %s272 = smul.addr %s271, 20
      %s273 = smul.addr %s272, 4
      %s274 = scalar_lea.vmem %s4, %s273
      %p275 = scmp.lt.s32.totalorder %s22, 1
      %s276 = scalar_select %p275, %s22, 1
      %s277 = scalar_lea.vmem %s5, %s276
      %p278 = scmp.lt.s32.totalorder %s22, 1
      %s279 = scalar_select %p278, %s22, 1
      %s280 = scalar_lea.vmem %s6, %s279
      %p282 = scmp.eq.s32.totalorder %s23, 0
      // Predicated region
      $region37: #{downsampling_forward.7} parent=35 // pred_check
        %p283 = pneg %p282
      $region38: #{downsampling_forward.7} parent=35 // pred_check_branch
        %285 = sbr.rel (%p283) target = $region40
      $region39: #{downsampling_forward.7} parent=35 // pred_region
        %vm286 = vcmask 57344
        %287 = vst.msk [vmem:[%s277] sm:$0x1] %vm286, 0.0
        %288 = vst.msk [vmem:[%s280] sm:$0x1] %vm286, 0.0
        %vm289 = vcmask 60416
        %290 = vst.msk [vmem:[%s274] sm:$0xf] %vm289, 0
        %291 = vst.msk [vmem:[%s274 + $0x4] sm:$0x1] %vm286, 0
        %s292 = scalar_lea.vmem %s274, 72
        %293 = vst.msk [vmem:[%s292] sm:$0xf] %vm289, 0
        %294 = vst.msk [vmem:[%s292 + $0x4] sm:$0x1] %vm286, 0
        %vm295 = vcmask 57344
        %vm296 = vsmask.f32 256
        %vm297 = vmand %vm295, %vm296
        %v298 = vld [vmem:[%s274] sm:$0x1]
        %v299 = vsel %vm297, 0, %v298
        %300 = vst [vmem:[%s274] sm:$0x1] %v299
        %v301 = vld [vmem:[%s274 + $0x8] sm:$0x1]
        %v302 = vsel %vm297, 0, %v301
        %303 = vst [vmem:[%s274 + $0x8] sm:$0x1] %v302
        %v304 = vld [vmem:[%s274 + $0x10] sm:$0x1]
        %v305 = vsel %vm297, 0, %v304
        %306 = vst [vmem:[%s274 + $0x10] sm:$0x1] %v305
        %v307 = vld [vmem:[%s274 + $0x18] sm:$0x1]
        %v308 = vsel %vm297, 0, %v307
        %309 = vst [vmem:[%s274 + $0x18] sm:$0x1] %v308
        %v310 = vld [vmem:[%s274 + $0x20] sm:$0x1]
        %v311 = vsel %vm297, 0, %v310
        %312 = vst [vmem:[%s274 + $0x20] sm:$0x1] %v311
        %v313 = vld [vmem:[%s274 + $0x28] sm:$0x1]
        %v314 = vsel %vm297, 0, %v313
        %315 = vst [vmem:[%s274 + $0x28] sm:$0x1] %v314
        %v316 = vld [vmem:[%s274 + $0x30] sm:$0x1]
        %v317 = vsel %vm297, 0, %v316
        %318 = vst [vmem:[%s274 + $0x30] sm:$0x1] %v317
        %v319 = vld [vmem:[%s274 + $0x38] sm:$0x1]
        %v320 = vsel %vm297, 0, %v319
        %321 = vst [vmem:[%s274 + $0x38] sm:$0x1] %v320
        %v322 = vld [vmem:[%s274 + $0x40] sm:$0x1]
        %v323 = vsel %vm297, 0, %v322
        %324 = vst [vmem:[%s274 + $0x40] sm:$0x1] %v323
        %v325 = vld [vmem:[%s274 + $0x48] sm:$0x1]
        %v326 = vsel %vm297, 0, %v325
        %327 = vst [vmem:[%s274 + $0x48] sm:$0x1] %v326
        %vm328 = vsmask.f32 7938
        %vm329 = vmand %vm295, %vm328
        %v330 = vld [vmem:[%s274 + $0x4] sm:$0x1]
        %v331 = vsel %vm329, 0, %v330
        %332 = vst [vmem:[%s274 + $0x4] sm:$0x1] %v331
        %v333 = vld [vmem:[%s274 + $0xc] sm:$0x1]
        %v334 = vsel %vm329, 0, %v333
        %335 = vst [vmem:[%s274 + $0xc] sm:$0x1] %v334
        %v336 = vld [vmem:[%s274 + $0x14] sm:$0x1]
        %v337 = vsel %vm329, 0, %v336
        %338 = vst [vmem:[%s274 + $0x14] sm:$0x1] %v337
        %v339 = vld [vmem:[%s274 + $0x1c] sm:$0x1]
        %v340 = vsel %vm329, 0, %v339
        %341 = vst [vmem:[%s274 + $0x1c] sm:$0x1] %v340
        %v342 = vld [vmem:[%s274 + $0x24] sm:$0x1]
        %v343 = vsel %vm329, 0, %v342
        %344 = vst [vmem:[%s274 + $0x24] sm:$0x1] %v343
        %v345 = vld [vmem:[%s274 + $0x2c] sm:$0x1]
        %v346 = vsel %vm329, 0, %v345
        %347 = vst [vmem:[%s274 + $0x2c] sm:$0x1] %v346
        %v348 = vld [vmem:[%s274 + $0x34] sm:$0x1]
        %v349 = vsel %vm329, 0, %v348
        %350 = vst [vmem:[%s274 + $0x34] sm:$0x1] %v349
        %v351 = vld [vmem:[%s274 + $0x3c] sm:$0x1]
        %v352 = vsel %vm329, 0, %v351
        %353 = vst [vmem:[%s274 + $0x3c] sm:$0x1] %v352
        %v354 = vld [vmem:[%s274 + $0x44] sm:$0x1]
        %v355 = vsel %vm329, 0, %v354
        %356 = vst [vmem:[%s274 + $0x44] sm:$0x1] %v355
        %v357 = vld [vmem:[%s274 + $0x4c] sm:$0x1]
        %v358 = vsel %vm329, 0, %v357
        %359 = vst [vmem:[%s274 + $0x4c] sm:$0x1] %v358
      $region40: #{downsampling_forward.7} parent=35 // pred_fallthru
        _
      %s360 = smul.u32 %s23, 8
      %s361 = smul.u32 %s360, 2
      %s362 = smul.addr %s361, 4
      %s363 = scalar_lea.vmem %s269, %s362
      %v364 = vld [vmem:[%s363] sm:$0xf]
      %v365 = vld [vmem:[%s363 + $0x4] sm:$0x1]
      %v366 = vld [vmem:[%s363 + $0x8] sm:$0xf]
      %v367 = vld [vmem:[%s363 + $0xc] sm:$0x1]
      %v368 = vld [vmem:[%s363 + $0x10] sm:$0xf]
      %v369 = vld [vmem:[%s363 + $0x14] sm:$0x1]
      %v370 = vld [vmem:[%s363 + $0x18] sm:$0xf]
      %v371 = vld [vmem:[%s363 + $0x1c] sm:$0x1]
      %v372 = vld [vmem:[%s363 + $0x20] sm:$0xf]
      %v373 = vld [vmem:[%s363 + $0x24] sm:$0x1]
      %v374 = vld [vmem:[%s363 + $0x28] sm:$0xf]
      %v375 = vld [vmem:[%s363 + $0x2c] sm:$0x1]
      %v376 = vld [vmem:[%s363 + $0x30] sm:$0xf]
      %v377 = vld [vmem:[%s363 + $0x34] sm:$0x1]
      %v378 = vld [vmem:[%s363 + $0x38] sm:$0xf]
      %v379 = vld [vmem:[%s363 + $0x3c] sm:$0x1]
      %v380 = vld [vmem:[%s363 + $0x40] sm:$0xf]
      %v381 = vld [vmem:[%s363 + $0x44] sm:$0x1]
      %v382 = vld [vmem:[%s363 + $0x48] sm:$0xf]
      %v383 = vld [vmem:[%s363 + $0x4c] sm:$0x1]
      %v384 = vunpack.c.l.bf16 %v364
      %v385 = vunpack.c.l.bf16 %v365
      %v386 = vunpack.c.l.bf16 %v366
      %v387 = vunpack.c.l.bf16 %v367
      %v388 = vunpack.c.l.bf16 %v368
      %v389 = vunpack.c.l.bf16 %v369
      %v390 = vunpack.c.l.bf16 %v370
      %v391 = vunpack.c.l.bf16 %v371
      %v392 = vunpack.c.l.bf16 %v372
      %v393 = vunpack.c.l.bf16 %v373
      %v394 = vunpack.c.l.bf16 %v374
      %v395 = vunpack.c.l.bf16 %v375
      %v396 = vunpack.c.l.bf16 %v376
      %v397 = vunpack.c.l.bf16 %v377
      %v398 = vunpack.c.l.bf16 %v378
      %v399 = vunpack.c.l.bf16 %v379
      %v400 = vunpack.c.l.bf16 %v380
      %v401 = vunpack.c.l.bf16 %v381
      %v402 = vunpack.c.l.bf16 %v382
      %v403 = vunpack.c.l.bf16 %v383
      %v404 = vld [vmem:[%s1] sm:$0x1]
      %v406 = vperm.slane %v404, 0
      %v408 = vmul.f32 %v384, %v406
      %v409 = vmul.f32 %v385, %v406
      %v410 = vmul.f32 %v386, %v406
      %v411 = vmul.f32 %v387, %v406
      %v412 = vmul.f32 %v388, %v406
      %v413 = vmul.f32 %v389, %v406
      %v414 = vmul.f32 %v390, %v406
      %v415 = vmul.f32 %v391, %v406
      %v416 = vmul.f32 %v392, %v406
      %v417 = vmul.f32 %v393, %v406
      %v418 = vmul.f32 %v394, %v406
      %v419 = vmul.f32 %v395, %v406
      %v420 = vmul.f32 %v396, %v406
      %v421 = vmul.f32 %v397, %v406
      %v422 = vmul.f32 %v398, %v406
      %v423 = vmul.f32 %v399, %v406
      %v424 = vmul.f32 %v400, %v406
      %v425 = vmul.f32 %v401, %v406
      %v426 = vmul.f32 %v402, %v406
      %v427 = vmul.f32 %v403, %v406
      %v428 = vld [vmem:[%s2] sm:$0x1]
      %v430 = vperm.slane %v428, 0
      %v432 = vadd.f32 %v408, %v430
      %v433 = vadd.f32 %v409, %v430
      %v434 = vadd.f32 %v410, %v430
      %v435 = vadd.f32 %v411, %v430
      %v436 = vadd.f32 %v412, %v430
      %v437 = vadd.f32 %v413, %v430
      %v438 = vadd.f32 %v414, %v430
      %v439 = vadd.f32 %v415, %v430
      %v440 = vadd.f32 %v416, %v430
      %v441 = vadd.f32 %v417, %v430
      %v442 = vadd.f32 %v418, %v430
      %v443 = vadd.f32 %v419, %v430
      %v444 = vadd.f32 %v420, %v430
      %v445 = vadd.f32 %v421, %v430
      %v446 = vadd.f32 %v422, %v430
      %v447 = vadd.f32 %v423, %v430
      %v448 = vadd.f32 %v424, %v430
      %v449 = vadd.f32 %v425, %v430
      %v450 = vadd.f32 %v426, %v430
      %v451 = vadd.f32 %v427, %v430
      %v452 = vmax.f32 %v432, 0.0
      %v453 = vmax.f32 %v433, 0.0
      %v454 = vmax.f32 %v434, 0.0
      %v455 = vmax.f32 %v435, 0.0
      %v456 = vmax.f32 %v436, 0.0
      %v457 = vmax.f32 %v437, 0.0
      %v458 = vmax.f32 %v438, 0.0
      %v459 = vmax.f32 %v439, 0.0
      %v460 = vmax.f32 %v440, 0.0
      %v461 = vmax.f32 %v441, 0.0
      %v462 = vmax.f32 %v442, 0.0
      %v463 = vmax.f32 %v443, 0.0
      %v464 = vmax.f32 %v444, 0.0
      %v465 = vmax.f32 %v445, 0.0
      %v466 = vmax.f32 %v446, 0.0
      %v467 = vmax.f32 %v447, 0.0
      %v468 = vmax.f32 %v448, 0.0
      %v469 = vmax.f32 %v449, 0.0
      %v470 = vmax.f32 %v450, 0.0
      %v471 = vmax.f32 %v451, 0.0
      %v472 = vstv %s360
      %v473 = vadd.s32 %v472, 1
      %v474 = vadd.s32 %v472, 2
      %v475 = vadd.s32 %v472, 3
      %v476 = vadd.s32 %v472, 4
      %v477 = vadd.s32 %v472, 5
      %v478 = vadd.s32 %v472, 6
      %v479 = vadd.s32 %v472, 7
      %v480 = vadd.s32 %v472, 8
      %v481 = vadd.s32 %v472, 9
      %v482 = vlaneseq
      %v483 = vshrl.u32 %v482, 7
      %v484 = vadd.s32 %v483, 8
      %vm485 = vcmp.ge.s32.totalorder %v472, 1
      %vm486 = vcmp.ge.s32.totalorder %v473, 1
      %vm487 = vcmp.ge.s32.totalorder %v474, 1
      %vm488 = vcmp.ge.s32.totalorder %v475, 1
      %vm489 = vcmp.ge.s32.totalorder %v476, 1
      %vm490 = vcmp.ge.s32.totalorder %v477, 1
      %vm491 = vcmp.ge.s32.totalorder %v478, 1
      %vm492 = vcmp.ge.s32.totalorder %v479, 1
      %vm493 = vcmp.ge.s32.totalorder %v480, 1
      %vm494 = vcmp.ge.s32.totalorder %v481, 1
      %vm495 = vcmp.le.s32.totalorder %v472, 8
      %vm496 = vcmp.le.s32.totalorder %v473, 8
      %vm497 = vcmp.le.s32.totalorder %v474, 8
      %vm498 = vcmp.le.s32.totalorder %v475, 8
      %vm499 = vcmp.le.s32.totalorder %v476, 8
      %vm500 = vcmp.le.s32.totalorder %v477, 8
      %vm501 = vcmp.le.s32.totalorder %v478, 8
      %vm502 = vcmp.le.s32.totalorder %v479, 8
      %vm503 = vcmp.le.s32.totalorder %v480, 8
      %vm504 = vcmp.le.s32.totalorder %v481, 8
      %vm505 = vmand %vm485, %vm495
      %vm506 = vmand %vm486, %vm496
      %vm507 = vmand %vm487, %vm497
      %vm508 = vmand %vm488, %vm498
      %vm509 = vmand %vm489, %vm499
      %vm510 = vmand %vm490, %vm500
      %vm511 = vmand %vm491, %vm501
      %vm512 = vmand %vm492, %vm502
      %vm513 = vmand %vm493, %vm503
      %vm514 = vmand %vm494, %vm504
      %vm515 = vcmp.ge.s32.totalorder %v483, 1
      %vm516 = vcmp.ge.s32.totalorder %v484, 1
      %vm517 = vmand %vm505, %vm515
      %vm518 = vmand %vm505, %vm516
      %vm519 = vmand %vm506, %vm515
      %vm520 = vmand %vm506, %vm516
      %vm521 = vmand %vm507, %vm515
      %vm522 = vmand %vm507, %vm516
      %vm523 = vmand %vm508, %vm515
      %vm524 = vmand %vm508, %vm516
      %vm525 = vmand %vm509, %vm515
      %vm526 = vmand %vm509, %vm516
      %vm527 = vmand %vm510, %vm515
      %vm528 = vmand %vm510, %vm516
      %vm529 = vmand %vm511, %vm515
      %vm530 = vmand %vm511, %vm516
      %vm531 = vmand %vm512, %vm515
      %vm532 = vmand %vm512, %vm516
      %vm533 = vmand %vm513, %vm515
      %vm534 = vmand %vm513, %vm516
      %vm535 = vmand %vm514, %vm515
      %vm536 = vmand %vm514, %vm516
      %vm537 = vcmp.le.s32.totalorder %v483, 8
      %vm538 = vcmp.le.s32.totalorder %v484, 8
      %vm539 = vmand %vm517, %vm537
      %vm540 = vmand %vm518, %vm538
      %vm541 = vmand %vm519, %vm537
      %vm542 = vmand %vm520, %vm538
      %vm543 = vmand %vm521, %vm537
      %vm544 = vmand %vm522, %vm538
      %vm545 = vmand %vm523, %vm537
      %vm546 = vmand %vm524, %vm538
      %vm547 = vmand %vm525, %vm537
      %vm548 = vmand %vm526, %vm538
      %vm549 = vmand %vm527, %vm537
      %vm550 = vmand %vm528, %vm538
      %vm551 = vmand %vm529, %vm537
      %vm552 = vmand %vm530, %vm538
      %vm553 = vmand %vm531, %vm537
      %vm554 = vmand %vm532, %vm538
      %vm555 = vmand %vm533, %vm537
      %vm556 = vmand %vm534, %vm538
      %vm557 = vmand %vm535, %vm537
      %vm558 = vmand %vm536, %vm538
      %v559 = vsel %vm539, 1, 0
      %v560 = vsel %vm540, 1, 0
      %v561 = vsel %vm541, 1, 0
      %v562 = vsel %vm542, 1, 0
      %v563 = vsel %vm543, 1, 0
      %v564 = vsel %vm544, 1, 0
      %v565 = vsel %vm545, 1, 0
      %v566 = vsel %vm546, 1, 0
      %v567 = vsel %vm547, 1, 0
      %v568 = vsel %vm548, 1, 0
      %v569 = vsel %vm549, 1, 0
      %v570 = vsel %vm550, 1, 0
      %v571 = vsel %vm551, 1, 0
      %v572 = vsel %vm552, 1, 0
      %v573 = vsel %vm553, 1, 0
      %v574 = vsel %vm554, 1, 0
      %v575 = vsel %vm555, 1, 0
      %v576 = vsel %vm556, 1, 0
      %v577 = vsel %vm557, 1, 0
      %v578 = vsel %vm558, 1, 0
      %vm579 = vcmp.eq.s32.totalorder %v559, 1
      %vm580 = vcmp.eq.s32.totalorder %v560, 1
      %vm581 = vcmp.eq.s32.totalorder %v561, 1
      %vm582 = vcmp.eq.s32.totalorder %v562, 1
      %vm583 = vcmp.eq.s32.totalorder %v563, 1
      %vm584 = vcmp.eq.s32.totalorder %v564, 1
      %vm585 = vcmp.eq.s32.totalorder %v565, 1
      %vm586 = vcmp.eq.s32.totalorder %v566, 1
      %vm587 = vcmp.eq.s32.totalorder %v567, 1
      %vm588 = vcmp.eq.s32.totalorder %v568, 1
      %vm589 = vcmp.eq.s32.totalorder %v569, 1
      %vm590 = vcmp.eq.s32.totalorder %v570, 1
      %vm591 = vcmp.eq.s32.totalorder %v571, 1
      %vm592 = vcmp.eq.s32.totalorder %v572, 1
      %vm593 = vcmp.eq.s32.totalorder %v573, 1
      %vm594 = vcmp.eq.s32.totalorder %v574, 1
      %vm595 = vcmp.eq.s32.totalorder %v575, 1
      %vm596 = vcmp.eq.s32.totalorder %v576, 1
      %vm597 = vcmp.eq.s32.totalorder %v577, 1
      %vm598 = vcmp.eq.s32.totalorder %v578, 1
      %v599 = vsel %vm579, %v452, 0.0
      %v600 = vsel %vm580, %v453, 0.0
      %v601 = vsel %vm581, %v454, 0.0
      %v602 = vsel %vm582, %v455, 0.0
      %v603 = vsel %vm583, %v456, 0.0
      %v604 = vsel %vm584, %v457, 0.0
      %v605 = vsel %vm585, %v458, 0.0
      %v606 = vsel %vm586, %v459, 0.0
      %v607 = vsel %vm587, %v460, 0.0
      %v608 = vsel %vm588, %v461, 0.0
      %v609 = vsel %vm589, %v462, 0.0
      %v610 = vsel %vm590, %v463, 0.0
      %v611 = vsel %vm591, %v464, 0.0
      %v612 = vsel %vm592, %v465, 0.0
      %v613 = vsel %vm593, %v466, 0.0
      %v614 = vsel %vm594, %v467, 0.0
      %v615 = vsel %vm595, %v468, 0.0
      %v616 = vsel %vm596, %v469, 0.0
      %v617 = vsel %vm597, %v470, 0.0
      %v618 = vsel %vm598, %v471, 0.0
      %v619 = vpack.c.bf16 %v599, %v599
      %v620 = vpack.c.bf16 %v601, %v601
      %v621 = vpack.c.bf16 %v603, %v603
      %v622 = vpack.c.bf16 %v605, %v605
      %v623 = vpack.c.bf16 %v607, %v607
      %v624 = vpack.c.bf16 %v609, %v609
      %v625 = vpack.c.bf16 %v611, %v611
      %v626 = vpack.c.bf16 %v613, %v613
      %vm627 = vcmask 60416
      %628 = vst.msk [vmem:[#allocation2] sm:$0xf] %vm627, %v619
      %629 = vst.msk [vmem:[#allocation2 + $0x4] sm:$0xf] %vm627, %v620
      %630 = vst.msk [vmem:[#allocation2 + $0x8] sm:$0xf] %vm627, %v621
      %631 = vst.msk [vmem:[#allocation2 + $0xc] sm:$0xf] %vm627, %v622
      %632 = vst.msk [vmem:[#allocation2 + $0x10] sm:$0xf] %vm627, %v623
      %633 = vst.msk [vmem:[#allocation2 + $0x14] sm:$0xf] %vm627, %v624
      %634 = vst.msk [vmem:[#allocation2 + $0x18] sm:$0xf] %vm627, %v625
      %635 = vst.msk [vmem:[#allocation2 + $0x1c] sm:$0xf] %vm627, %v626
      %vm652 = vcmask 1046528
      %v653 = vrot.slane %v599, 1
      %v654 = vrot.slane %v600, 1
      %v655 = vsel %vm652, %v653, %v654
      %v656 = vrot.slane %v601, 1
      %v657 = vrot.slane %v602, 1
      %v658 = vsel %vm652, %v656, %v657
      %v659 = vrot.slane %v603, 1
      %v660 = vrot.slane %v604, 1
      %v661 = vsel %vm652, %v659, %v660
      %v662 = vrot.slane %v605, 1
      %v663 = vrot.slane %v606, 1
      %v664 = vsel %vm652, %v662, %v663
      %v665 = vrot.slane %v607, 1
      %v666 = vrot.slane %v608, 1
      %v667 = vsel %vm652, %v665, %v666
      %v668 = vrot.slane %v609, 1
      %v669 = vrot.slane %v610, 1
      %v670 = vsel %vm652, %v668, %v669
      %v671 = vrot.slane %v611, 1
      %v672 = vrot.slane %v612, 1
      %v673 = vsel %vm652, %v671, %v672
      %v674 = vrot.slane %v613, 1
      %v675 = vrot.slane %v614, 1
      %v676 = vsel %vm652, %v674, %v675
      %v685 = vpack.c.bf16 %v655, %v655
      %v686 = vpack.c.bf16 %v658, %v658
      %v687 = vpack.c.bf16 %v661, %v661
      %v688 = vpack.c.bf16 %v664, %v664
      %v689 = vpack.c.bf16 %v667, %v667
      %v690 = vpack.c.bf16 %v670, %v670
      %v691 = vpack.c.bf16 %v673, %v673
      %v692 = vpack.c.bf16 %v676, %v676
      %701 = vrot.lane.b32.xlu0 %v685, 8
      %v702 = vpop.permute.xlu0 %701
      %703 = vrot.lane.b32.xlu0 %v686, 8
      %v704 = vpop.permute.xlu0 %703
      %705 = vrot.lane.b32.xlu0 %v687, 8
      %v706 = vpop.permute.xlu0 %705
      %707 = vrot.lane.b32.xlu0 %v688, 8
      %v708 = vpop.permute.xlu0 %707
      %709 = vrot.lane.b32.xlu0 %v689, 8
      %v710 = vpop.permute.xlu0 %709
      %711 = vrot.lane.b32.xlu0 %v690, 8
      %v712 = vpop.permute.xlu0 %711
      %713 = vrot.lane.b32.xlu0 %v691, 8
      %v714 = vpop.permute.xlu0 %713
      %715 = vrot.lane.b32.xlu0 %v692, 8
      %v716 = vpop.permute.xlu0 %715
      %vm725 = vcmask 126016
      %726 = vst.msk [vmem:[#allocation2] sm:$0xf] %vm725, %v702
      %727 = vst.msk [vmem:[#allocation2 + $0x4] sm:$0xf] %vm725, %v704
      %728 = vst.msk [vmem:[#allocation2 + $0x8] sm:$0xf] %vm725, %v706
      %729 = vst.msk [vmem:[#allocation2 + $0xc] sm:$0xf] %vm725, %v708
      %730 = vst.msk [vmem:[#allocation2 + $0x10] sm:$0xf] %vm725, %v710
      %731 = vst.msk [vmem:[#allocation2 + $0x14] sm:$0xf] %vm725, %v712
      %732 = vst.msk [vmem:[#allocation2 + $0x18] sm:$0xf] %vm725, %v714
      %733 = vst.msk [vmem:[#allocation2 + $0x1c] sm:$0xf] %vm725, %v716
      %vm734 = vcmask 1045504
      %v735 = vrot.slane %v599, 2
      %v736 = vrot.slane %v600, 2
      %v737 = vsel %vm734, %v735, %v736
      %v738 = vrot.slane %v601, 2
      %v739 = vrot.slane %v602, 2
      %v740 = vsel %vm734, %v738, %v739
      %v741 = vrot.slane %v603, 2
      %v742 = vrot.slane %v604, 2
      %v743 = vsel %vm734, %v741, %v742
      %v744 = vrot.slane %v605, 2
      %v745 = vrot.slane %v606, 2
      %v746 = vsel %vm734, %v744, %v745
      %v747 = vrot.slane %v607, 2
      %v748 = vrot.slane %v608, 2
      %v749 = vsel %vm734, %v747, %v748
      %v750 = vrot.slane %v609, 2
      %v751 = vrot.slane %v610, 2
      %v752 = vsel %vm734, %v750, %v751
      %v753 = vrot.slane %v611, 2
      %v754 = vrot.slane %v612, 2
      %v755 = vsel %vm734, %v753, %v754
      %v756 = vrot.slane %v613, 2
      %v757 = vrot.slane %v614, 2
      %v758 = vsel %vm734, %v756, %v757
      %v767 = vpack.c.bf16 %v737, %v737
      %v768 = vpack.c.bf16 %v740, %v740
      %v769 = vpack.c.bf16 %v743, %v743
      %v770 = vpack.c.bf16 %v746, %v746
      %v771 = vpack.c.bf16 %v749, %v749
      %v772 = vpack.c.bf16 %v752, %v752
      %v773 = vpack.c.bf16 %v755, %v755
      %v774 = vpack.c.bf16 %v758, %v758
      %783 = vrot.lane.b32.xlu0 %v767, 16
      %v784 = vpop.permute.xlu0 %783
      %785 = vrot.lane.b32.xlu0 %v768, 16
      %v786 = vpop.permute.xlu0 %785
      %787 = vrot.lane.b32.xlu0 %v769, 16
      %v788 = vpop.permute.xlu0 %787
      %789 = vrot.lane.b32.xlu0 %v770, 16
      %v790 = vpop.permute.xlu0 %789
      %791 = vrot.lane.b32.xlu0 %v771, 16
      %v792 = vpop.permute.xlu0 %791
      %793 = vrot.lane.b32.xlu0 %v772, 16
      %v794 = vpop.permute.xlu0 %793
      %795 = vrot.lane.b32.xlu0 %v773, 16
      %v796 = vpop.permute.xlu0 %795
      %797 = vrot.lane.b32.xlu0 %v774, 16
      %v798 = vpop.permute.xlu0 %797
      %vm807 = vcmask 191616
      %808 = vst.msk [vmem:[#allocation2] sm:$0xf] %vm807, %v784
      %809 = vst.msk [vmem:[#allocation2 + $0x4] sm:$0xf] %vm807, %v786
      %810 = vst.msk [vmem:[#allocation2 + $0x8] sm:$0xf] %vm807, %v788
      %811 = vst.msk [vmem:[#allocation2 + $0xc] sm:$0xf] %vm807, %v790
      %812 = vst.msk [vmem:[#allocation2 + $0x10] sm:$0xf] %vm807, %v792
      %813 = vst.msk [vmem:[#allocation2 + $0x14] sm:$0xf] %vm807, %v794
      %814 = vst.msk [vmem:[#allocation2 + $0x18] sm:$0xf] %vm807, %v796
      %815 = vst.msk [vmem:[#allocation2 + $0x1c] sm:$0xf] %vm807, %v798
      %v816 = vpack.c.bf16 %v615, %v615
      %825 = vrot.lane.b32.xlu0 %v620, 24
      %v826 = vpop.permute.xlu0 %825
      %827 = vrot.lane.b32.xlu0 %v621, 24
      %v828 = vpop.permute.xlu0 %827
      %829 = vrot.lane.b32.xlu0 %v622, 24
      %v830 = vpop.permute.xlu0 %829
      %831 = vrot.lane.b32.xlu0 %v623, 24
      %v832 = vpop.permute.xlu0 %831
      %833 = vrot.lane.b32.xlu0 %v624, 24
      %v834 = vpop.permute.xlu0 %833
      %835 = vrot.lane.b32.xlu0 %v625, 24
      %v836 = vpop.permute.xlu0 %835
      %837 = vrot.lane.b32.xlu0 %v626, 24
      %v838 = vpop.permute.xlu0 %837
      %839 = vrot.lane.b32.xlu0 %v816, 24
      %v840 = vpop.permute.xlu0 %839
      %vm849 = vcmask 257216
      %850 = vst.msk [vmem:[#allocation2] sm:$0xf] %vm849, %v826
      %851 = vst.msk [vmem:[#allocation2 + $0x4] sm:$0xf] %vm849, %v828
      %852 = vst.msk [vmem:[#allocation2 + $0x8] sm:$0xf] %vm849, %v830
      %853 = vst.msk [vmem:[#allocation2 + $0xc] sm:$0xf] %vm849, %v832
      %854 = vst.msk [vmem:[#allocation2 + $0x10] sm:$0xf] %vm849, %v834
      %855 = vst.msk [vmem:[#allocation2 + $0x14] sm:$0xf] %vm849, %v836
      %856 = vst.msk [vmem:[#allocation2 + $0x18] sm:$0xf] %vm849, %v838
      %857 = vst.msk [vmem:[#allocation2 + $0x1c] sm:$0xf] %vm849, %v840
      %v860 = vrot.slane %v615, 1
      %v861 = vrot.slane %v616, 1
      %v862 = vsel %vm652, %v860, %v861
      %v864 = vpack.c.bf16 %v862, %v862
      %866 = vrot.lane.b32.xlu0 %v686, 32
      %v867 = vpop.permute.xlu0 %866
      %868 = vrot.lane.b32.xlu0 %v687, 32
      %v869 = vpop.permute.xlu0 %868
      %870 = vrot.lane.b32.xlu0 %v688, 32
      %v871 = vpop.permute.xlu0 %870
      %872 = vrot.lane.b32.xlu0 %v689, 32
      %v873 = vpop.permute.xlu0 %872
      %874 = vrot.lane.b32.xlu0 %v690, 32
      %v875 = vpop.permute.xlu0 %874
      %876 = vrot.lane.b32.xlu0 %v691, 32
      %v877 = vpop.permute.xlu0 %876
      %878 = vrot.lane.b32.xlu0 %v692, 32
      %v879 = vpop.permute.xlu0 %878
      %880 = vrot.lane.b32.xlu0 %v864, 32
      %v881 = vpop.permute.xlu0 %880
      %vm890 = vcmask 322816
      %891 = vst.msk [vmem:[#allocation2] sm:$0xf] %vm890, %v867
      %892 = vst.msk [vmem:[#allocation2 + $0x4] sm:$0xf] %vm890, %v869
      %893 = vst.msk [vmem:[#allocation2 + $0x8] sm:$0xf] %vm890, %v871
      %894 = vst.msk [vmem:[#allocation2 + $0xc] sm:$0xf] %vm890, %v873
      %895 = vst.msk [vmem:[#allocation2 + $0x10] sm:$0xf] %vm890, %v875
      %896 = vst.msk [vmem:[#allocation2 + $0x14] sm:$0xf] %vm890, %v877
      %897 = vst.msk [vmem:[#allocation2 + $0x18] sm:$0xf] %vm890, %v879
      %898 = vst.msk [vmem:[#allocation2 + $0x1c] sm:$0xf] %vm890, %v881
      %v899 = vrot.slane %v615, 2
      %v900 = vrot.slane %v616, 2
      %v901 = vsel %vm734, %v899, %v900
      %v903 = vpack.c.bf16 %v901, %v901
      %905 = vrot.lane.b32.xlu0 %v768, 40
      %v906 = vpop.permute.xlu0 %905
      %907 = vrot.lane.b32.xlu0 %v769, 40
      %v908 = vpop.permute.xlu0 %907
      %909 = vrot.lane.b32.xlu0 %v770, 40
      %v910 = vpop.permute.xlu0 %909
      %911 = vrot.lane.b32.xlu0 %v771, 40
      %v912 = vpop.permute.xlu0 %911
      %913 = vrot.lane.b32.xlu0 %v772, 40
      %v914 = vpop.permute.xlu0 %913
      %915 = vrot.lane.b32.xlu0 %v773, 40
      %v916 = vpop.permute.xlu0 %915
      %917 = vrot.lane.b32.xlu0 %v774, 40
      %v918 = vpop.permute.xlu0 %917
      %919 = vrot.lane.b32.xlu0 %v903, 40
      %v920 = vpop.permute.xlu0 %919
      %vm929 = vcmask 388416
      %930 = vst.msk [vmem:[#allocation2] sm:$0xf] %vm929, %v906
      %931 = vst.msk [vmem:[#allocation2 + $0x4] sm:$0xf] %vm929, %v908
      %932 = vst.msk [vmem:[#allocation2 + $0x8] sm:$0xf] %vm929, %v910
      %933 = vst.msk [vmem:[#allocation2 + $0xc] sm:$0xf] %vm929, %v912
      %934 = vst.msk [vmem:[#allocation2 + $0x10] sm:$0xf] %vm929, %v914
      %935 = vst.msk [vmem:[#allocation2 + $0x14] sm:$0xf] %vm929, %v916
      %936 = vst.msk [vmem:[#allocation2 + $0x18] sm:$0xf] %vm929, %v918
      %937 = vst.msk [vmem:[#allocation2 + $0x1c] sm:$0xf] %vm929, %v920
      %v938 = vpack.c.bf16 %v617, %v617
      %940 = vrot.lane.b32.xlu0 %v621, 48
      %v941 = vpop.permute.xlu0 %940
      %942 = vrot.lane.b32.xlu0 %v622, 48
      %v943 = vpop.permute.xlu0 %942
      %944 = vrot.lane.b32.xlu0 %v623, 48
      %v945 = vpop.permute.xlu0 %944
      %946 = vrot.lane.b32.xlu0 %v624, 48
      %v947 = vpop.permute.xlu0 %946
      %948 = vrot.lane.b32.xlu0 %v625, 48
      %v949 = vpop.permute.xlu0 %948
      %950 = vrot.lane.b32.xlu0 %v626, 48
      %v951 = vpop.permute.xlu0 %950
      %952 = vrot.lane.b32.xlu0 %v816, 48
      %v953 = vpop.permute.xlu0 %952
      %954 = vrot.lane.b32.xlu0 %v938, 48
      %v955 = vpop.permute.xlu0 %954
      %vm964 = vcmask 454016
      %965 = vst.msk [vmem:[#allocation2] sm:$0xf] %vm964, %v941
      %966 = vst.msk [vmem:[#allocation2 + $0x4] sm:$0xf] %vm964, %v943
      %967 = vst.msk [vmem:[#allocation2 + $0x8] sm:$0xf] %vm964, %v945
      %968 = vst.msk [vmem:[#allocation2 + $0xc] sm:$0xf] %vm964, %v947
      %969 = vst.msk [vmem:[#allocation2 + $0x10] sm:$0xf] %vm964, %v949
      %970 = vst.msk [vmem:[#allocation2 + $0x14] sm:$0xf] %vm964, %v951
      %971 = vst.msk [vmem:[#allocation2 + $0x18] sm:$0xf] %vm964, %v953
      %972 = vst.msk [vmem:[#allocation2 + $0x1c] sm:$0xf] %vm964, %v955
      %v975 = vrot.slane %v617, 1
      %v976 = vrot.slane %v618, 1
      %v977 = vsel %vm652, %v975, %v976
      %v979 = vpack.c.bf16 %v977, %v977
      %981 = vrot.lane.b32.xlu0 %v687, 56
      %v982 = vpop.permute.xlu0 %981
      %983 = vrot.lane.b32.xlu0 %v688, 56
      %v984 = vpop.permute.xlu0 %983
      %985 = vrot.lane.b32.xlu0 %v689, 56
      %v986 = vpop.permute.xlu0 %985
      %987 = vrot.lane.b32.xlu0 %v690, 56
      %v988 = vpop.permute.xlu0 %987
      %989 = vrot.lane.b32.xlu0 %v691, 56
      %v990 = vpop.permute.xlu0 %989
      %991 = vrot.lane.b32.xlu0 %v692, 56
      %v992 = vpop.permute.xlu0 %991
      %993 = vrot.lane.b32.xlu0 %v864, 56
      %v994 = vpop.permute.xlu0 %993
      %995 = vrot.lane.b32.xlu0 %v979, 56
      %v996 = vpop.permute.xlu0 %995
      %vm1005 = vcmask 519616
      %1006 = vst.msk [vmem:[#allocation2] sm:$0xf] %vm1005, %v982
      %1007 = vst.msk [vmem:[#allocation2 + $0x4] sm:$0xf] %vm1005, %v984
      %1008 = vst.msk [vmem:[#allocation2 + $0x8] sm:$0xf] %vm1005, %v986
      %1009 = vst.msk [vmem:[#allocation2 + $0xc] sm:$0xf] %vm1005, %v988
      %1010 = vst.msk [vmem:[#allocation2 + $0x10] sm:$0xf] %vm1005, %v990
      %1011 = vst.msk [vmem:[#allocation2 + $0x14] sm:$0xf] %vm1005, %v992
      %1012 = vst.msk [vmem:[#allocation2 + $0x18] sm:$0xf] %vm1005, %v994
      %1013 = vst.msk [vmem:[#allocation2 + $0x1c] sm:$0xf] %vm1005, %v996
      %v1014 = vrot.slane %v617, 2
      %v1015 = vrot.slane %v618, 2
      %v1016 = vsel %vm734, %v1014, %v1015
      %v1018 = vpack.c.bf16 %v1016, %v1016
      %1020 = vrot.lane.b32.xlu0 %v769, 64
      %v1021 = vpop.permute.xlu0 %1020
      %1022 = vrot.lane.b32.xlu0 %v770, 64
      %v1023 = vpop.permute.xlu0 %1022
      %1024 = vrot.lane.b32.xlu0 %v771, 64
      %v1025 = vpop.permute.xlu0 %1024
      %1026 = vrot.lane.b32.xlu0 %v772, 64
      %v1027 = vpop.permute.xlu0 %1026
      %1028 = vrot.lane.b32.xlu0 %v773, 64
      %v1029 = vpop.permute.xlu0 %1028
      %1030 = vrot.lane.b32.xlu0 %v774, 64
      %v1031 = vpop.permute.xlu0 %1030
      %1032 = vrot.lane.b32.xlu0 %v903, 64
      %v1033 = vpop.permute.xlu0 %1032
      %1034 = vrot.lane.b32.xlu0 %v1018, 64
      %v1035 = vpop.permute.xlu0 %1034
      %vm1044 = vcmask 585216
      %1045 = vst.msk [vmem:[#allocation2] sm:$0xf] %vm1044, %v1021
      %1046 = vst.msk [vmem:[#allocation2 + $0x4] sm:$0xf] %vm1044, %v1023
      %1047 = vst.msk [vmem:[#allocation2 + $0x8] sm:$0xf] %vm1044, %v1025
      %1048 = vst.msk [vmem:[#allocation2 + $0xc] sm:$0xf] %vm1044, %v1027
      %1049 = vst.msk [vmem:[#allocation2 + $0x10] sm:$0xf] %vm1044, %v1029
      %1050 = vst.msk [vmem:[#allocation2 + $0x14] sm:$0xf] %vm1044, %v1031
      %1051 = vst.msk [vmem:[#allocation2 + $0x18] sm:$0xf] %vm1044, %v1033
      %1052 = vst.msk [vmem:[#allocation2 + $0x1c] sm:$0xf] %vm1044, %v1035
      %v1053 = vld [vmem:[#allocation2] sm:$0xf]
      %v1054 = vld [vmem:[#allocation2 + $0x4] sm:$0xf]
      %v1055 = vld [vmem:[#allocation2 + $0x8] sm:$0xf]
      %v1056 = vld [vmem:[#allocation2 + $0xc] sm:$0xf]
      %v1057 = vld [vmem:[#allocation2 + $0x10] sm:$0xf]
      %v1058 = vld [vmem:[#allocation2 + $0x14] sm:$0xf]
      %v1059 = vld [vmem:[#allocation2 + $0x18] sm:$0xf]
      %v1060 = vld [vmem:[#allocation2 + $0x1c] sm:$0xf]
      %v1061 = vld [vmem:[%s3] sm:$0xf]
      %v1062 = vld [vmem:[%s3 + $0x4] sm:$0xf]
      %v1063 = vld [vmem:[%s3 + $0x8] sm:$0xf]
      %v1064 = vld [vmem:[%s3 + $0xc] sm:$0xf]
      %v1065 = vld [vmem:[%s3 + $0x10] sm:$0xf]
      %v1066 = vld [vmem:[%s3 + $0x14] sm:$0xf]
      %v1067 = vld [vmem:[%s3 + $0x18] sm:$0xf]
      %v1068 = vld [vmem:[%s3 + $0x1c] sm:$0xf]
      %v1069 = vld [vmem:[%s3 + $0x20] sm:$0xf]
      %v1078 = vunpack.c.l.b16 %v1053
      %v1079 = vunpack.c.l.b16 %v1054
      %v1080 = vunpack.c.l.b16 %v1055
      %v1081 = vunpack.c.l.b16 %v1056
      %v1082 = vunpack.c.l.b16 %v1057
      %v1083 = vunpack.c.l.b16 %v1058
      %v1084 = vunpack.c.l.b16 %v1059
      %v1085 = vunpack.c.l.b16 %v1060
      %v1086 = vpack.c.b16 %v1079, %v1078
      %v1087 = vpack.c.b16 %v1081, %v1080
      %v1088 = vpack.c.b16 %v1083, %v1082
      %v1089 = vpack.c.b16 %v1085, %v1084
      %v1099 = vunpack.c.l.b16 %v1061
      %v1100 = vunpack.c.l.b16 %v1062
      %v1101 = vunpack.c.l.b16 %v1063
      %v1102 = vunpack.c.l.b16 %v1064
      %v1103 = vunpack.c.l.b16 %v1065
      %v1104 = vunpack.c.l.b16 %v1066
      %v1105 = vunpack.c.l.b16 %v1067
      %v1106 = vunpack.c.l.b16 %v1068
      %v1107 = vunpack.c.l.b16 %v1069
      %v1108 = vpack.c.b16 %v1100, %v1099
      %v1109 = vpack.c.b16 %v1102, %v1101
      %v1110 = vpack.c.b16 %v1104, %v1103
      %v1111 = vpack.c.b16 %v1106, %v1105
      %v1112 = vpack.c.b16 %v1107, %v1107
      %vm1117 = vcmask 588800
      %v1119 = vsel %vm1117, %v1086, 0
      %v1122 = vsel %vm1117, %v1087, 0
      %v1125 = vsel %vm1117, %v1088, 0
      %v1128 = vsel %vm1117, %v1089, 0
      %vm1130 = vcmask 1043456
      %v1132 = vsel %vm1130, %v1112, 0
      %1134 = vmatpush.bf16.msra.mxu0 0
      %1135 = vmatpush.bf16.msra.mxu0 0
      %1136 = vmatpush.bf16.msra.mxu0 0
      %1137 = vmatpush.bf16.msra.mxu0 %v1132
      %1138 = vmatpush.bf16.msra.mxu0 %v1111
      %1139 = vmatpush.bf16.msra.mxu0 %v1110
      %1140 = vmatpush.bf16.msra.mxu0 %v1109
      %1141 = vmatpush.bf16.msra.mxu0 %v1108
      %1142 = vmatmul.bf16.gmra.mxu0 %v1119
      %v1143 = vpop.f32.mrf.mxu0
      %v1144 = vadd.f32 0.0, %v1143
      %v1145 = vpop.f32.mrf.mxu0
      %v1146 = vadd.f32 0.0, %v1145
      %1147 = vmatmul.bf16.gmra.mxu0 %v1122
      %v1148 = vpop.f32.mrf.mxu0
      %v1149 = vadd.f32 0.0, %v1148
      %v1150 = vpop.f32.mrf.mxu0
      %v1151 = vadd.f32 0.0, %v1150
      %1152 = vmatmul.bf16.gmra.mxu0 %v1125
      %v1153 = vpop.f32.mrf.mxu0
      %v1154 = vadd.f32 0.0, %v1153
      %v1155 = vpop.f32.mrf.mxu0
      %v1156 = vadd.f32 0.0, %v1155
      %1157 = vmatmul.bf16.gmra.mxu0 %v1128
      %v1158 = vpop.f32.mrf.mxu0
      %v1159 = vadd.f32 0.0, %v1158
      %v1160 = vpop.f32.mrf.mxu0
      %v1161 = vadd.f32 0.0, %v1160
      %1162 = vdwg.mxu0
      %v1163 = vld [vmem:[%s277] sm:$0x1]
      %vm1164 = vcmask 64512
      %v1165 = vsel %vm1164, %v1144, 0.0
      %v1166 = vsel %vm1164, %v1146, 0.0
      %v1167 = vadd.f32 %v1165, %v1166
      %v1168 = vsel %vm1164, %v1149, 0.0
      %v1169 = vadd.f32 %v1167, %v1168
      %v1170 = vsel %vm1164, %v1151, 0.0
      %v1171 = vadd.f32 %v1169, %v1170
      %v1172 = vsel %vm1164, %v1154, 0.0
      %v1173 = vadd.f32 %v1171, %v1172
      %v1174 = vsel %vm1164, %v1156, 0.0
      %v1175 = vadd.f32 %v1173, %v1174
      %v1176 = vsel %vm1164, %v1159, 0.0
      %v1177 = vadd.f32 %v1175, %v1176
      %v1178 = vsel %vm1164, %v1161, 0.0
      %v1179 = vadd.f32 %v1177, %v1178
      %v1180 = vrot.slane %v1179, 4
      %v1181 = vadd.f32 %v1179, %v1180
      %v1182 = vrot.slane %v1181, 2
      %v1183 = vadd.f32 %v1181, %v1182
      %v1184 = vrot.slane %v1183, 1
      %v1185 = vadd.f32 %v1183, %v1184
      %v1186 = vadd.f32 %v1163, %v1185
      %vm1187 = vcmask 57344
      %1188 = vst.msk [vmem:[%s277] sm:$0x1] %vm1187, %v1186
      %v1189 = vld [vmem:[%s280] sm:$0x1]
      %v1190 = vmul.f32 %v1144, %v1144
      %v1191 = vmul.f32 %v1146, %v1146
      %v1192 = vmul.f32 %v1149, %v1149
      %v1193 = vmul.f32 %v1151, %v1151
      %v1194 = vmul.f32 %v1154, %v1154
      %v1195 = vmul.f32 %v1156, %v1156
      %v1196 = vmul.f32 %v1159, %v1159
      %v1197 = vmul.f32 %v1161, %v1161
      %v1198 = vsel %vm1164, %v1190, 0.0
      %v1199 = vsel %vm1164, %v1191, 0.0
      %v1200 = vadd.f32 %v1198, %v1199
      %v1201 = vsel %vm1164, %v1192, 0.0
      %v1202 = vadd.f32 %v1200, %v1201
      %v1203 = vsel %vm1164, %v1193, 0.0
      %v1204 = vadd.f32 %v1202, %v1203
      %v1205 = vsel %vm1164, %v1194, 0.0
      %v1206 = vadd.f32 %v1204, %v1205
      %v1207 = vsel %vm1164, %v1195, 0.0
      %v1208 = vadd.f32 %v1206, %v1207
      %v1209 = vsel %vm1164, %v1196, 0.0
      %v1210 = vadd.f32 %v1208, %v1209
      %v1211 = vsel %vm1164, %v1197, 0.0
      %v1212 = vadd.f32 %v1210, %v1211
      %v1213 = vrot.slane %v1212, 4
      %v1214 = vadd.f32 %v1212, %v1213
      %v1215 = vrot.slane %v1214, 2
      %v1216 = vadd.f32 %v1214, %v1215
      %v1217 = vrot.slane %v1216, 1
      %v1218 = vadd.f32 %v1216, %v1217
      %v1219 = vadd.f32 %v1189, %v1218
      %1220 = vst.msk [vmem:[%s280] sm:$0x1] %vm1187, %v1219
      %v1221 = vpack.c.bf16 %v1144, %v1144
      %v1222 = vpack.c.bf16 %v1146, %v1146
      %v1223 = vpack.c.bf16 %v1149, %v1149
      %v1224 = vpack.c.bf16 %v1151, %v1151
      %v1225 = vpack.c.bf16 %v1154, %v1154
      %v1226 = vpack.c.bf16 %v1156, %v1156
      %v1227 = vpack.c.bf16 %v1159, %v1159
      %v1228 = vpack.c.bf16 %v1161, %v1161
      %s1229 = sadd.s32 %s360, 1
      %v1231 = vshrl.u32 %v1221, 16
      %v1233 = vrot.slane %v1231, 7
      %v1234 = vshll.u32 %v1221, 16
      %v1236 = vor.u32 %v1233, %v1234
      %v1237 = vrot.slane %v1233, 4
      %v1239 = vshrl.u32 %v1222, 16
      %v1241 = vrot.slane %v1239, 7
      %v1242 = vshll.u32 %v1222, 16
      %v1244 = vor.u32 %v1241, %v1242
      %v1245 = vrot.slane %v1241, 4
      %v1247 = vshrl.u32 %v1223, 16
      %v1249 = vrot.slane %v1247, 7
      %v1250 = vshll.u32 %v1223, 16
      %v1252 = vor.u32 %v1249, %v1250
      %v1253 = vrot.slane %v1249, 4
      %v1255 = vshrl.u32 %v1224, 16
      %v1257 = vrot.slane %v1255, 7
      %v1258 = vshll.u32 %v1224, 16
      %v1260 = vor.u32 %v1257, %v1258
      %v1261 = vrot.slane %v1257, 4
      %v1263 = vshrl.u32 %v1225, 16
      %v1265 = vrot.slane %v1263, 7
      %v1266 = vshll.u32 %v1225, 16
      %v1268 = vor.u32 %v1265, %v1266
      %v1269 = vrot.slane %v1265, 4
      %v1271 = vshrl.u32 %v1226, 16
      %v1273 = vrot.slane %v1271, 7
      %v1274 = vshll.u32 %v1226, 16
      %v1276 = vor.u32 %v1273, %v1274
      %v1277 = vrot.slane %v1273, 4
      %v1279 = vshrl.u32 %v1227, 16
      %v1281 = vrot.slane %v1279, 7
      %v1282 = vshll.u32 %v1227, 16
      %v1284 = vor.u32 %v1281, %v1282
      %v1285 = vrot.slane %v1281, 4
      %v1287 = vshrl.u32 %v1228, 16
      %v1289 = vrot.slane %v1287, 7
      %v1290 = vshll.u32 %v1228, 16
      %v1292 = vor.u32 %v1289, %v1290
      %v1293 = vrot.slane %v1289, 4
      %s1310 = smul.u32 %s1229, 2
      %s1311 = smul.addr %s1310, 4
      %s1312 = scalar_lea.vmem %s274, %s1311
      %vm1313 = vcmask 60416
      %vm1314 = vsmask.f32 7938
      %vm1315 = vmand %vm1313, %vm1314
      %v1316 = vld [vmem:[%s1312] sm:$0xf]
      %v1317 = vsel %vm1315, %v1236, %v1316
      %1318 = vst [vmem:[%s1312] sm:$0xf] %v1317
      %vm1319 = vcmask 57344
      %vm1320 = vsmask.f32 256
      %vm1321 = vmand %vm1319, %vm1320
      %v1322 = vld [vmem:[%s1312 + $0x4] sm:$0x1]
      %v1323 = vsel %vm1321, %v1237, %v1322
      %1324 = vst [vmem:[%s1312 + $0x4] sm:$0x1] %v1323
      %v1325 = vld [vmem:[%s1312 + $0x8] sm:$0xf]
      %v1326 = vsel %vm1315, %v1244, %v1325
      %1327 = vst [vmem:[%s1312 + $0x8] sm:$0xf] %v1326
      %v1328 = vld [vmem:[%s1312 + $0xc] sm:$0x1]
      %v1329 = vsel %vm1321, %v1245, %v1328
      %1330 = vst [vmem:[%s1312 + $0xc] sm:$0x1] %v1329
      %v1331 = vld [vmem:[%s1312 + $0x10] sm:$0xf]
      %v1332 = vsel %vm1315, %v1252, %v1331
      %1333 = vst [vmem:[%s1312 + $0x10] sm:$0xf] %v1332
      %v1334 = vld [vmem:[%s1312 + $0x14] sm:$0x1]
      %v1335 = vsel %vm1321, %v1253, %v1334
      %1336 = vst [vmem:[%s1312 + $0x14] sm:$0x1] %v1335
      %v1337 = vld [vmem:[%s1312 + $0x18] sm:$0xf]
      %v1338 = vsel %vm1315, %v1260, %v1337
      %1339 = vst [vmem:[%s1312 + $0x18] sm:$0xf] %v1338
      %v1340 = vld [vmem:[%s1312 + $0x1c] sm:$0x1]
      %v1341 = vsel %vm1321, %v1261, %v1340
      %1342 = vst [vmem:[%s1312 + $0x1c] sm:$0x1] %v1341
      %v1343 = vld [vmem:[%s1312 + $0x20] sm:$0xf]
      %v1344 = vsel %vm1315, %v1268, %v1343
      %1345 = vst [vmem:[%s1312 + $0x20] sm:$0xf] %v1344
      %v1346 = vld [vmem:[%s1312 + $0x24] sm:$0x1]
      %v1347 = vsel %vm1321, %v1269, %v1346
      %1348 = vst [vmem:[%s1312 + $0x24] sm:$0x1] %v1347
      %v1349 = vld [vmem:[%s1312 + $0x28] sm:$0xf]
      %v1350 = vsel %vm1315, %v1276, %v1349
      %1351 = vst [vmem:[%s1312 + $0x28] sm:$0xf] %v1350
      %v1352 = vld [vmem:[%s1312 + $0x2c] sm:$0x1]
      %v1353 = vsel %vm1321, %v1277, %v1352
      %1354 = vst [vmem:[%s1312 + $0x2c] sm:$0x1] %v1353
      %v1355 = vld [vmem:[%s1312 + $0x30] sm:$0xf]
      %v1356 = vsel %vm1315, %v1284, %v1355
      %1357 = vst [vmem:[%s1312 + $0x30] sm:$0xf] %v1356
      %v1358 = vld [vmem:[%s1312 + $0x34] sm:$0x1]
      %v1359 = vsel %vm1321, %v1285, %v1358
      %1360 = vst [vmem:[%s1312 + $0x34] sm:$0x1] %v1359
      %v1361 = vld [vmem:[%s1312 + $0x38] sm:$0xf]
      %v1362 = vsel %vm1315, %v1292, %v1361
      %1363 = vst [vmem:[%s1312 + $0x38] sm:$0xf] %v1362
      %v1364 = vld [vmem:[%s1312 + $0x3c] sm:$0x1]
      %v1365 = vsel %vm1321, %v1293, %v1364
      %1366 = vst [vmem:[%s1312 + $0x3c] sm:$0x1] %v1365
      %p1367 = scmp.lt.s32.totalorder %s22, 1
      %s1368 = scalar_select %p1367, %s22, 1
      %s1369 = smul.addr %s1368, 20
      %s1370 = smul.addr %s1369, 4
      %s1371 = scalar_lea.vmem %s4, %s1370
      %p1372 = scmp.lt.s32.totalorder %s22, 1
      %s1373 = scalar_select %p1372, %s22, 1
      %s1374 = scalar_lea.vmem %s5, %s1373
      %p1375 = scmp.lt.s32.totalorder %s22, 1
      %s1376 = scalar_select %p1375, %s22, 1
      %s1377 = scalar_lea.vmem %s6, %s1376
      // Predicated region
      $region41: #{downsampling_forward.7} parent=35 // pred_check
        %p1378 = pneg %p137
      $region42: #{downsampling_forward.7} parent=35 // pred_check_branch
        %1380 = sbr.rel (%p1378) target = $region44
      $region43: #{downsampling_forward.7} parent=35 // pred_region
        _
      $region44: #{downsampling_forward.7} parent=35 // pred_fallthru
        _
      // Predicated region
      $region45: #{downsampling_forward.7} parent=35 // pred_check
        %p1381 = pneg %p163
      $region46: #{downsampling_forward.7} parent=35 // pred_check_branch
        %1383 = sbr.rel (%p1381) target = $region48
      $region47: #{downsampling_forward.7} parent=35 // pred_region
        _
      $region48: #{downsampling_forward.7} parent=35 // pred_fallthru
        _
      // Predicated region
      $region49: #{downsampling_forward.7} parent=35 // pred_check
        %p1384 = pneg %p189
      $region50: #{downsampling_forward.7} parent=35 // pred_check_branch
        %1386 = sbr.rel (%p1384) target = $region52
      $region51: #{downsampling_forward.7} parent=35 // pred_region
        _
      $region52: #{downsampling_forward.7} parent=35 // pred_fallthru
        _
    $region36: #{downsampling_forward.7} parent=5 // pred_fallthru
      _
    %p1387 = scmp.le.s32.totalorder 2, %s13
    // Predicated region
    $region53: #{downsampling_forward.7} parent=5 // pred_check
      %p1388 = pneg %p1387
    $region54: #{downsampling_forward.7} parent=5 // pred_check_branch
      %1390 = sbr.rel (%p1388) target = $region56
    $region55: #{downsampling_forward.7} parent=5 // pred_region
      %s1391 = ssub.s32 %s13, 2
      // Predicated region
      $region57: #{downsampling_forward.7} parent=55 // pred_check
        %p1392 = pneg %p143
      $region58: #{downsampling_forward.7} parent=55 // pred_check_branch
        %1394 = sbr.rel (%p1392) target = $region60
      $region59: #{downsampling_forward.7} parent=55 // pred_region
        %p1395 = scmp.lt.s32.totalorder %s24, 1
        %s1396 = scalar_select %p1395, %s24, 1
        %s1397 = smul.addr %s1396, 20
        %s1398 = smul.addr %s1397, 4
        %s1399 = scalar_lea.vmem %s4, %s1398
      $region60: #{downsampling_forward.7} parent=55 // pred_fallthru
        _
      // Predicated region
      $region61: #{downsampling_forward.7} parent=55 // pred_check
        %p1400 = pneg %p169
      $region62: #{downsampling_forward.7} parent=55 // pred_check_branch
        %1402 = sbr.rel (%p1400) target = $region64
      $region63: #{downsampling_forward.7} parent=55 // pred_region
        %p1403 = scmp.lt.s32.totalorder %s24, 1
        %s1404 = scalar_select %p1403, %s24, 1
        %s1405 = scalar_lea.vmem %s5, %s1404
      $region64: #{downsampling_forward.7} parent=55 // pred_fallthru
        _
      // Predicated region
      $region65: #{downsampling_forward.7} parent=55 // pred_check
        %p1406 = pneg %p195
      $region66: #{downsampling_forward.7} parent=55 // pred_check_branch
        %1408 = sbr.rel (%p1406) target = $region68
      $region67: #{downsampling_forward.7} parent=55 // pred_region
        %p1409 = scmp.lt.s32.totalorder %s24, 1
        %s1410 = scalar_select %p1409, %s24, 1
        %s1411 = scalar_lea.vmem %s6, %s1410
      $region68: #{downsampling_forward.7} parent=55 // pred_fallthru
        _
    $region56: #{downsampling_forward.7} parent=5 // pred_fallthru
      _
  $region6: #{downsampling_forward.7} parent=0 // loop_footer
    %s17 = sadd.s32 1, %s13
  $region7: #{downsampling_forward.7} parent=0 // loop_footer_branch
    %12 = sbr.rel target = $region3
  $region8: #{downsampling_forward.7} parent=0 // loop_exit
    _

</llo_original>
